<compile_context>
chip_gen: v5e
topology: v5e:2x2
jax: 0.10.0
libtpu: 0.0.40
codegen_flags: <defaults>
</compile_context>

<pallas_src>
import functools

import jax
import jax.numpy as jnp
from jax.experimental import pallas as pl
from jax.experimental.pallas import tpu as pltpu

HEAD_LANES = 128  # lane-dense fused (rgb | density) output width


# ----------------------------------------------------------------------------
# Parameter init (mirrors shapes built in NeRFMLP.__init__).
# nn.Linear computes y = x @ W.T + b with W:(out,in); stored here transposed
# as (in,out).  xavier_uniform_ is symmetric in fan_in/fan_out so initializing
# the transposed matrix is equivalent.
# ----------------------------------------------------------------------------
def _linear_params(key, fan_in, fan_out):
    kw, kb = jax.random.split(key)
    bound_w = (6.0 / (fan_in + fan_out)) ** 0.5            # xavier_uniform_
    W = jax.random.uniform(kw, (fan_in, fan_out), jnp.float32, -bound_w, bound_w)
    bound_b = 1.0 / (fan_in ** 0.5)                        # torch Linear default bias
    b = jax.random.uniform(kb, (1, fan_out), jnp.float32, -bound_b, bound_b)
    return W, b


def init_nerf_params(key, cfg):
    pos_size = cfg["pos_size"]
    view_pos_size = cfg["view_pos_size"]
    nw = cfg["netwidth"]
    nwc = cfg["netwidth_condition"]

    keys = iter(jax.random.split(key, 64))
    params = {}

    pts = []
    for idx in range(cfg["netdepth"]):
        if idx == 0:
            fan_in = pos_size
        elif (idx - 1) % cfg["skip_layer"] == 0 and (idx - 1) > 0:
            fan_in = nw + pos_size
        else:
            fan_in = nw
        pts.append(_linear_params(next(keys), fan_in, nw))
    params["pts"] = pts

    params["bottleneck"] = _linear_params(next(keys), nw, nw)
    params["density"] = _linear_params(next(keys), nw, cfg["num_density_channels"])

    # views_linear[0] takes cat([bottleneck, condition_tile]); store its weight
    # split so the kernel can do two matmuls instead of a lane-concat.
    Wv0, bv0 = _linear_params(next(keys), nw + view_pos_size, nwc)
    params["views0"] = (Wv0[:nw], Wv0[nw:], bv0)

    views_rest = []
    for _ in range(1, cfg["netdepth_condition"]):
        views_rest.append(_linear_params(next(keys), nwc, nwc))
    params["views_rest"] = views_rest

    params["rgb"] = _linear_params(next(keys), nwc, cfg["num_rgb_channels"])
    return params


# ----------------------------------------------------------------------------
# Flatten params (bf16 weights, f32 biases) in the exact order the kernel
# consumes them.  The rgb + density heads are fused into one lane-padded
# 128-wide head so the kernel's final store is lane-dense.
# ----------------------------------------------------------------------------
def _flatten_params(params, cfg, wdtype=jnp.bfloat16):
    nd = cfg["netdepth"]
    cl = cfg["combine_layer"]
    pf = cfg["point_feat"]
    nrgb = cfg["num_rgb_channels"]
    nden = cfg["num_density_channels"]

    flat = []

    def add_linear(W, b):
        flat.append(W.astype(wdtype))
        flat.append(b.astype(jnp.float32))

    # trunk layer 0: weight split over [points | latent] (no host-side concat)
    W0, b0 = params["pts"][0]
    flat += [W0[:pf].astype(wdtype), W0[pf:].astype(wdtype), b0.astype(jnp.float32)]
    if cl == 0:
        add_linear(*params["bottleneck"])
    for idx in range(1, nd):
        add_linear(*params["pts"][idx])
        if idx == cl:
            add_linear(*params["bottleneck"])

    # view branch layer 0: weight split over [bottleneck | condition_tile]
    Wv0a, Wv0b, bv0 = params["views0"]
    flat += [Wv0a.astype(wdtype), Wv0b.astype(wdtype), bv0.astype(jnp.float32)]
    for W, b in params["views_rest"]:
        add_linear(W, b)

    # fused lane-dense head: lanes [0:nrgb] = rgb, lanes [nrgb:nrgb+nden] = density
    Wr, br = params["rgb"]
    Wd, bd = params["density"]
    Wr_pad = jnp.zeros((Wr.shape[0], HEAD_LANES), jnp.float32).at[:, :nrgb].set(Wr)
    Wd_pad = jnp.zeros((Wd.shape[0], HEAD_LANES), jnp.float32).at[:, nrgb:nrgb + nden].set(Wd)
    bh = (jnp.zeros((1, HEAD_LANES), jnp.float32)
          .at[:, :nrgb].set(br)
          .at[:, nrgb:nrgb + nden].set(bd))
    flat += [Wr_pad.astype(wdtype), Wd_pad.astype(wdtype), bh]
    return flat


# ----------------------------------------------------------------------------
# Pallas kernel: one grid step = OBJ objects.  All trunk / bottleneck / view /
# head matmuls run bf16 x bf16 -> f32 on the MXU; bias, relu and the per-object
# view average stay f32 on the VPU.
# ----------------------------------------------------------------------------
def _make_kernel(cfg, OBJ, V, S):
    nd = cfg["netdepth"]
    ndc = cfg["netdepth_condition"]
    skip = cfg["skip_layer"]
    cl = cfg["combine_layer"]
    inv_V = 1.0 / V

    assert 0 <= cl < nd, "combine_layer must be a valid trunk layer index"
    # Post-combine skip connections would mix per-view rows (OBJ*V*S) with
    # combined rows (OBJ*S) when V > 1; they are also ill-defined (shape
    # mismatch) in the torch module, so we only support them for V == 1.
    for idx in range(nd):
        if idx % skip == 0 and idx > 0 and V > 1:
            assert idx < cl, "skip connection after combine_layer needs V == 1"

    def relu(v):
        return jnp.maximum(v, 0.0)

    def mm(a, w_ref):
        # bf16 operands, f32 accumulation on the MXU
        return jnp.dot(a.astype(jnp.bfloat16), w_ref[...],
                       preferred_element_type=jnp.float32)

    def combine_avg(t):
        # rows in the block are ordered (object, view, sample); average over
        # the V views per object.  S is a multiple of 8, so every reshape /
        # slice below is sublane-tile aligned (pure re-tiling, no relayout).
        F = t.shape[-1]
        t4 = t.reshape(OBJ, V, S, F)
        acc = t4[:, 0]
        for v in range(1, V):
            acc = acc + t4[:, v]
        return (acc * inv_V).reshape(OBJ * S, F)

    def kernel(xp_ref, lat_ref, cond_ref, *refs):
        param_refs = refs[:-1]
        out_ref = refs[-1]
        it = iter(param_refs)

        def nxt():
            return next(it)

        bottleneck = None
        skip_inputs = None
        x = None

        # ---- trunk ----
        for idx in range(nd):
            if idx == 0:
                W0a, W0b, b0 = nxt(), nxt(), nxt()
                x = mm(xp_ref[...], W0a) + mm(lat_ref[...], W0b) + b0[...]
            else:
                W, b = nxt(), nxt()
                x = mm(x, W) + b[...]
            x = relu(x)
            if idx == cl:
                Wbn, bbn = nxt(), nxt()
                bottleneck = mm(x, Wbn) + bbn[...]     # pre-combine rows (OBJ*V*S)
                x = combine_avg(x)                     # -> (OBJ*S, netwidth)
            if idx % skip == 0 and idx > 0:            # pre-combine / V==1 (asserted)
                if skip_inputs is None:
                    skip_inputs = jnp.concatenate(
                        [xp_ref[...].astype(jnp.float32),
                         lat_ref[...].astype(jnp.float32)], axis=-1)
                x = jnp.concatenate([x, skip_inputs], axis=-1)

        # ---- view-conditioned branch ----
        Wv0a, Wv0b, bv0 = nxt(), nxt(), nxt()
        xv = mm(bottleneck, Wv0a) + mm(cond_ref[...], Wv0b) + bv0[...]
        xv = relu(combine_avg(xv))                     # combine at idx == 0, then relu
        for _ in range(1, ndc):
            W, b = nxt(), nxt()
            xv = relu(mm(xv, W) + b[...])

        # ---- fused lane-dense head (rgb lanes [0:nrgb], density next) ----
        Wr, Wd, bh = nxt(), nxt(), nxt()
        out_ref[...] = (mm(xv, Wr) + mm(x, Wd) + bh[...]).astype(out_ref.dtype)

    return kernel


def _choose_obj_per_block(SB, V, S, target_rows=1024):
    """Largest divisor of SB whose input block (OBJ*V*S rows) fits target_rows,
    preferring to keep >= 2 grid steps so both v7x TensorCores stay busy."""
    rows_per_obj = V * S
    feasible = [d for d in range(1, SB + 1)
                if SB % d == 0 and d * rows_per_obj <= target_rows]
    if not feasible:
        return 1
    two_step = [d for d in feasible if SB // d >= 2]
    return max(two_step) if two_step else max(feasible)


def nerf_mlp_forward(params, x, condition_tile, latent, combine_inner_dims, cfg):
    """Pallas implementation of NeRFMLP.forward.

    x:              (SB*V, S, point_feat)
    condition_tile: (SB*V*S, view_pos_size)
    latent:         (SB*V*S, latent_size)
    combine_inner_dims = (V, S)
    returns (raw_rgb (SB, S, 3), raw_density (SB, S, 1))
    """
    V, S = combine_inner_dims
    num_rays, num_samples, point_feat = x.shape
    assert num_samples == S and num_rays % V == 0
    assert point_feat == cfg["point_feat"]
    SB = num_rays // V

    # TODO(synk): pad rows when S is not a multiple of 8 (sublane tile); the
    # in-kernel (OBJ, V, S, F) view-average reshape assumes tile-aligned S.
    assert S % 8 == 0, "samples-per-object must be a multiple of 8"

    nrgb = cfg["num_rgb_channels"]
    nden = cfg["num_density_channels"]
    assert nrgb + nden <= HEAD_LANES

    x_flat = x.reshape(-1, point_feat)          # no host-side concat with latent
    latent_size = latent.shape[-1]
    view_pos_size = condition_tile.shape[-1]

    flat_params = _flatten_params(params, cfg)

    OBJ = _choose_obj_per_block(SB, V, S)
    grid = (SB // OBJ,)
    in_rows = OBJ * V * S
    out_rows = OBJ * S

    kernel = _make_kernel(cfg, OBJ, V, S)

    in_specs = [
        pl.BlockSpec((in_rows, point_feat), lambda b: (b, 0)),
        pl.BlockSpec((in_rows, latent_size), lambda b: (b, 0)),
        pl.BlockSpec((in_rows, view_pos_size), lambda b: (b, 0)),
    ] + [pl.BlockSpec(p.shape, lambda b: (0, 0)) for p in flat_params]

    out_specs = pl.BlockSpec((out_rows, HEAD_LANES), lambda b: (b, 0))
    out_shape = jax.ShapeDtypeStruct((SB * S, HEAD_LANES), jnp.float32)

    fused = pl.pallas_call(
        kernel,
        out_shape=out_shape,
        grid=grid,
        in_specs=in_specs,
        out_specs=out_specs,
        compiler_params=pltpu.CompilerParams(
            dimension_semantics=("parallel",)),
    )(x_flat, latent, condition_tile, *flat_params)

    raw_rgb = fused[:, :nrgb].reshape(SB, S, nrgb)
    raw_density = fused[:, nrgb:nrgb + nden].reshape(SB, S, nden)
    return raw_rgb, raw_density


# ----------------------------------------------------------------------------
# Pure-JAX reference mirroring the PyTorch forward with the kernel's numerics
# (bf16 operands, f32 accumulation) for the correctness check.
# ----------------------------------------------------------------------------
def reference_forward(params, x, condition_tile, latent, combine_inner_dims, cfg):
    V, S = combine_inner_dims
    nrgb = cfg["num_rgb_channels"]
    nden = cfg["num_density_channels"]
    pf = cfg["point_feat"]

    def mm(a, w):
        return jnp.dot(a.astype(jnp.bfloat16), w.astype(jnp.bfloat16),
                       preferred_element_type=jnp.float32)

    def combine(t):
        F = t.shape[-1]
        return (t.reshape(-1, V, S, F).sum(axis=1) * (1.0 / V)).reshape(-1, F)

    xp = x.reshape(-1, x.shape[-1])
    W0, b0 = params["pts"][0]
    h = jnp.maximum(mm(xp, W0[:pf]) + mm(latent, W0[pf:]) + b0, 0.0)
    bottleneck = None
    if cfg["combine_layer"] == 0:
        Wbn, bbn = params["bottleneck"]
        bottleneck = mm(h, Wbn) + bbn
        h = combine(h)
    inputs_cat = jnp.concatenate([xp, latent], axis=-1)
    for idx in range(1, cfg["netdepth"]):
        W, b = params["pts"][idx]
        h = jnp.maximum(mm(h, W) + b, 0.0)
        if idx == cfg["combine_layer"]:
            Wbn, bbn = params["bottleneck"]
            bottleneck = mm(h, Wbn) + bbn
            h = combine(h)
        if idx % cfg["skip_layer"] == 0 and idx > 0:
            h = jnp.concatenate([h, inputs_cat], axis=-1)

    Wd, bd = params["density"]
    raw_density = (mm(h, Wd) + bd).reshape(-1, S, nden)

    Wv0a, Wv0b, bv0 = params["views0"]
    hv = mm(bottleneck, Wv0a) + mm(condition_tile, Wv0b) + bv0
    hv = jnp.maximum(combine(hv), 0.0)
    for W, b in params["views_rest"]:
        hv = jnp.maximum(mm(hv, W) + b, 0.0)
    Wr, br = params["rgb"]
    raw_rgb = (mm(hv, Wr) + br).reshape(-1, S, nrgb)
    return raw_rgb, raw_density


if __name__ == "__main__":
    # Small, TPU-friendly configuration of the module.
    min_deg_point, max_deg_point, deg_view = 0, 4, 2
    input_ch = input_ch_view = 3
    point_feat = ((max_deg_point - min_deg_point) * 2 + 1) * input_ch   # 27
    latent_size = 101                                                   # -> pos_size = 128
    cfg = dict(
        netdepth=4, netwidth=128,
        netdepth_condition=2, netwidth_condition=128,
        skip_layer=4, combine_layer=3,
        num_rgb_channels=3, num_density_channels=1,
        point_feat=point_feat, latent_size=latent_size,
        pos_size=point_feat + latent_size,
        view_pos_size=(deg_view * 2 + 1) * input_ch_view,               # 15
    )

    SB, V, S = 64, 2, 8         # objects, views per object, samples per object
    combine_inner_dims = (V, S)

    key = jax.random.PRNGKey(0)
    k0, k1, k2, k3 = jax.random.split(key, 4)
    x = jax.random.normal(k0, (SB * V, S, point_feat), jnp.float32)
    latent = jax.random.normal(k1, (SB * V * S, latent_size), jnp.float32)
    condition_tile = jax.random.normal(k2, (SB * V * S, cfg["view_pos_size"]), jnp.float32)

    params = init_nerf_params(k3, cfg)

    fwd = jax.jit(functools.partial(
        nerf_mlp_forward, combine_inner_dims=combine_inner_dims, cfg=cfg))
    raw_rgb, raw_density = fwd(params, x, condition_tile, latent)
    jax.block_until_ready((raw_rgb, raw_density))

    rgb_ref, den_ref = reference_forward(
        params, x, condition_tile, latent, combine_inner_dims, cfg)

    assert raw_rgb.shape == (SB, S, cfg["num_rgb_channels"])
    assert raw_density.shape == (SB, S, cfg["num_density_channels"])
    assert jnp.allclose(raw_rgb, rgb_ref, atol=5e-3, rtol=5e-3), \
        float(jnp.max(jnp.abs(raw_rgb - rgb_ref)))
    assert jnp.allclose(raw_density, den_ref, atol=5e-3, rtol=5e-3), \
        float(jnp.max(jnp.abs(raw_density - den_ref)))

    print("KERNEL_OK")
</pallas_src>

<mosaic_0001>
module attributes {stable_mosaic.version = 11 : i64} {
  func.func @kernel(%arg0: i32, %arg1: memref<512x27xf32, #tpu.memory_space<vmem>>, %arg2: memref<512x101xf32, #tpu.memory_space<vmem>>, %arg3: memref<512x15xf32, #tpu.memory_space<vmem>>, %arg4: memref<27x128xbf16, #tpu.memory_space<vmem>>, %arg5: memref<101x128xbf16, #tpu.memory_space<vmem>>, %arg6: memref<1x128xf32, #tpu.memory_space<vmem>>, %arg7: memref<128x128xbf16, #tpu.memory_space<vmem>>, %arg8: memref<1x128xf32, #tpu.memory_space<vmem>>, %arg9: memref<128x128xbf16, #tpu.memory_space<vmem>>, %arg10: memref<1x128xf32, #tpu.memory_space<vmem>>, %arg11: memref<128x128xbf16, #tpu.memory_space<vmem>>, %arg12: memref<1x128xf32, #tpu.memory_space<vmem>>, %arg13: memref<128x128xbf16, #tpu.memory_space<vmem>>, %arg14: memref<1x128xf32, #tpu.memory_space<vmem>>, %arg15: memref<128x128xbf16, #tpu.memory_space<vmem>>, %arg16: memref<15x128xbf16, #tpu.memory_space<vmem>>, %arg17: memref<1x128xf32, #tpu.memory_space<vmem>>, %arg18: memref<128x128xbf16, #tpu.memory_space<vmem>>, %arg19: memref<1x128xf32, #tpu.memory_space<vmem>>, %arg20: memref<128x128xbf16, #tpu.memory_space<vmem>>, %arg21: memref<128x128xbf16, #tpu.memory_space<vmem>>, %arg22: memref<1x128xf32, #tpu.memory_space<vmem>>, %arg23: memref<256x128xf32, #tpu.memory_space<vmem>>) attributes {dimension_semantics = [#tpu.dimension_semantics<parallel>], iteration_bounds = array<i64: 2>, scalar_prefetch = 0 : i64, scratch_operands = 0 : i64, tpu.core_type = #tpu.core_type<tc>, window_params = [{transform_indices = @transform_0, window_bounds = array<i64: 512, 27>}, {transform_indices = @transform_1, window_bounds = array<i64: 512, 101>}, {transform_indices = @transform_2, window_bounds = array<i64: 512, 15>}, {pipeline_mode = #tpu.pipeline_mode<synchronous>, transform_indices = @transform_3, window_bounds = array<i64: 27, 128>}, {pipeline_mode = #tpu.pipeline_mode<synchronous>, transform_indices = @transform_4, window_bounds = array<i64: 101, 128>}, {pipeline_mode = #tpu.pipeline_mode<synchronous>, transform_indices = @transform_5, window_bounds = array<i64: 1, 128>}, {pipeline_mode = #tpu.pipeline_mode<synchronous>, transform_indices = @transform_6, window_bounds = array<i64: 128, 128>}, {pipeline_mode = #tpu.pipeline_mode<synchronous>, transform_indices = @transform_7, window_bounds = array<i64: 1, 128>}, {pipeline_mode = #tpu.pipeline_mode<synchronous>, transform_indices = @transform_8, window_bounds = array<i64: 128, 128>}, {pipeline_mode = #tpu.pipeline_mode<synchronous>, transform_indices = @transform_9, window_bounds = array<i64: 1, 128>}, {pipeline_mode = #tpu.pipeline_mode<synchronous>, transform_indices = @transform_10, window_bounds = array<i64: 128, 128>}, {pipeline_mode = #tpu.pipeline_mode<synchronous>, transform_indices = @transform_11, window_bounds = array<i64: 1, 128>}, {pipeline_mode = #tpu.pipeline_mode<synchronous>, transform_indices = @transform_12, window_bounds = array<i64: 128, 128>}, {pipeline_mode = #tpu.pipeline_mode<synchronous>, transform_indices = @transform_13, window_bounds = array<i64: 1, 128>}, {pipeline_mode = #tpu.pipeline_mode<synchronous>, transform_indices = @transform_14, window_bounds = array<i64: 128, 128>}, {pipeline_mode = #tpu.pipeline_mode<synchronous>, transform_indices = @transform_15, window_bounds = array<i64: 15, 128>}, {pipeline_mode = #tpu.pipeline_mode<synchronous>, transform_indices = @transform_16, window_bounds = array<i64: 1, 128>}, {pipeline_mode = #tpu.pipeline_mode<synchronous>, transform_indices = @transform_17, window_bounds = array<i64: 128, 128>}, {pipeline_mode = #tpu.pipeline_mode<synchronous>, transform_indices = @transform_18, window_bounds = array<i64: 1, 128>}, {pipeline_mode = #tpu.pipeline_mode<synchronous>, transform_indices = @transform_19, window_bounds = array<i64: 128, 128>}, {pipeline_mode = #tpu.pipeline_mode<synchronous>, transform_indices = @transform_20, window_bounds = array<i64: 128, 128>}, {pipeline_mode = #tpu.pipeline_mode<synchronous>, transform_indices = @transform_21, window_bounds = array<i64: 1, 128>}, {transform_indices = @transform_22, window_bounds = array<i64: 256, 128>}]} {
    %c0 = arith.constant 0 : index
    %c0_0 = arith.constant 0 : index
    %0 = vector.load %arg1[%c0, %c0_0] : memref<512x27xf32, #tpu.memory_space<vmem>>, vector<512x27xf32>
    %1 = arith.truncf %0 : vector<512x27xf32> to vector<512x27xbf16>
    %c0_1 = arith.constant 0 : index
    %c0_2 = arith.constant 0 : index
    %2 = vector.load %arg4[%c0_1, %c0_2] : memref<27x128xbf16, #tpu.memory_space<vmem>>, vector<27x128xbf16>
    %cst = arith.constant dense<0.000000e+00> : vector<512x128xf32>
    %3 = tpu.matmul %1, %2, %cst {dimension_numbers = #tpu.dot_dimension_numbers<[1], [0], [0], [1], [0, 0, 1, 1], [], []>} : vector<512x27xbf16>, vector<27x128xbf16>, vector<512x128xf32> -> vector<512x128xf32>
    %c0_3 = arith.constant 0 : index
    %c0_4 = arith.constant 0 : index
    %4 = vector.load %arg2[%c0_3, %c0_4] : memref<512x101xf32, #tpu.memory_space<vmem>>, vector<512x101xf32>
    %5 = arith.truncf %4 : vector<512x101xf32> to vector<512x101xbf16>
    %c0_5 = arith.constant 0 : index
    %c0_6 = arith.constant 0 : index
    %6 = vector.load %arg5[%c0_5, %c0_6] : memref<101x128xbf16, #tpu.memory_space<vmem>>, vector<101x128xbf16>
    %cst_7 = arith.constant dense<0.000000e+00> : vector<512x128xf32>
    %7 = tpu.matmul %5, %6, %cst_7 {dimension_numbers = #tpu.dot_dimension_numbers<[1], [0], [0], [1], [0, 0, 1, 1], [], []>} : vector<512x101xbf16>, vector<101x128xbf16>, vector<512x128xf32> -> vector<512x128xf32>
    %8 = arith.addf %3, %7 : vector<512x128xf32>
    %c0_8 = arith.constant 0 : index
    %c0_9 = arith.constant 0 : index
    %9 = vector.load %arg6[%c0_8, %c0_9] : memref<1x128xf32, #tpu.memory_space<vmem>>, vector<1x128xf32>
    %10 = vector.broadcast %9 : vector<1x128xf32> to vector<512x128xf32>
    %11 = arith.addf %8, %10 : vector<512x128xf32>
    %cst_10 = arith.constant 0.000000e+00 : f32
    %12 = vector.broadcast %cst_10 : f32 to vector<512x128xf32>
    %13 = arith.maximumf %11, %12 : vector<512x128xf32>
    %14 = arith.truncf %13 : vector<512x128xf32> to vector<512x128xbf16>
    %c0_11 = arith.constant 0 : index
    %c0_12 = arith.constant 0 : index
    %15 = vector.load %arg7[%c0_11, %c0_12] : memref<128x128xbf16, #tpu.memory_space<vmem>>, vector<128x128xbf16>
    %cst_13 = arith.constant dense<0.000000e+00> : vector<512x128xf32>
    %16 = tpu.matmul %14, %15, %cst_13 {dimension_numbers = #tpu.dot_dimension_numbers<[1], [0], [0], [1], [0, 0, 1, 1], [], []>} : vector<512x128xbf16>, vector<128x128xbf16>, vector<512x128xf32> -> vector<512x128xf32>
    %c0_14 = arith.constant 0 : index
    %c0_15 = arith.constant 0 : index
    %17 = vector.load %arg8[%c0_14, %c0_15] : memref<1x128xf32, #tpu.memory_space<vmem>>, vector<1x128xf32>
    %18 = vector.broadcast %17 : vector<1x128xf32> to vector<512x128xf32>
    %19 = arith.addf %16, %18 : vector<512x128xf32>
    %cst_16 = arith.constant 0.000000e+00 : f32
    %20 = vector.broadcast %cst_16 : f32 to vector<512x128xf32>
    %21 = arith.maximumf %19, %20 : vector<512x128xf32>
    %22 = arith.truncf %21 : vector<512x128xf32> to vector<512x128xbf16>
    %c0_17 = arith.constant 0 : index
    %c0_18 = arith.constant 0 : index
    %23 = vector.load %arg9[%c0_17, %c0_18] : memref<128x128xbf16, #tpu.memory_space<vmem>>, vector<128x128xbf16>
    %cst_19 = arith.constant dense<0.000000e+00> : vector<512x128xf32>
    %24 = tpu.matmul %22, %23, %cst_19 {dimension_numbers = #tpu.dot_dimension_numbers<[1], [0], [0], [1], [0, 0, 1, 1], [], []>} : vector<512x128xbf16>, vector<128x128xbf16>, vector<512x128xf32> -> vector<512x128xf32>
    %c0_20 = arith.constant 0 : index
    %c0_21 = arith.constant 0 : index
    %25 = vector.load %arg10[%c0_20, %c0_21] : memref<1x128xf32, #tpu.memory_space<vmem>>, vector<1x128xf32>
    %26 = vector.broadcast %25 : vector<1x128xf32> to vector<512x128xf32>
    %27 = arith.addf %24, %26 : vector<512x128xf32>
    %cst_22 = arith.constant 0.000000e+00 : f32
    %28 = vector.broadcast %cst_22 : f32 to vector<512x128xf32>
    %29 = arith.maximumf %27, %28 : vector<512x128xf32>
    %30 = arith.truncf %29 : vector<512x128xf32> to vector<512x128xbf16>
    %c0_23 = arith.constant 0 : index
    %c0_24 = arith.constant 0 : index
    %31 = vector.load %arg11[%c0_23, %c0_24] : memref<128x128xbf16, #tpu.memory_space<vmem>>, vector<128x128xbf16>
    %cst_25 = arith.constant dense<0.000000e+00> : vector<512x128xf32>
    %32 = tpu.matmul %30, %31, %cst_25 {dimension_numbers = #tpu.dot_dimension_numbers<[1], [0], [0], [1], [0, 0, 1, 1], [], []>} : vector<512x128xbf16>, vector<128x128xbf16>, vector<512x128xf32> -> vector<512x128xf32>
    %c0_26 = arith.constant 0 : index
    %c0_27 = arith.constant 0 : index
    %33 = vector.load %arg12[%c0_26, %c0_27] : memref<1x128xf32, #tpu.memory_space<vmem>>, vector<1x128xf32>
    %34 = vector.broadcast %33 : vector<1x128xf32> to vector<512x128xf32>
    %35 = arith.addf %32, %34 : vector<512x128xf32>
    %cst_28 = arith.constant 0.000000e+00 : f32
    %36 = vector.broadcast %cst_28 : f32 to vector<512x128xf32>
    %37 = arith.maximumf %35, %36 : vector<512x128xf32>
    %38 = arith.truncf %37 : vector<512x128xf32> to vector<512x128xbf16>
    %c0_29 = arith.constant 0 : index
    %c0_30 = arith.constant 0 : index
    %39 = vector.load %arg13[%c0_29, %c0_30] : memref<128x128xbf16, #tpu.memory_space<vmem>>, vector<128x128xbf16>
    %cst_31 = arith.constant dense<0.000000e+00> : vector<512x128xf32>
    %40 = tpu.matmul %38, %39, %cst_31 {dimension_numbers = #tpu.dot_dimension_numbers<[1], [0], [0], [1], [0, 0, 1, 1], [], []>} : vector<512x128xbf16>, vector<128x128xbf16>, vector<512x128xf32> -> vector<512x128xf32>
    %c0_32 = arith.constant 0 : index
    %c0_33 = arith.constant 0 : index
    %41 = vector.load %arg14[%c0_32, %c0_33] : memref<1x128xf32, #tpu.memory_space<vmem>>, vector<1x128xf32>
    %42 = vector.broadcast %41 : vector<1x128xf32> to vector<512x128xf32>
    %43 = arith.addf %40, %42 : vector<512x128xf32>
    %44 = vector.shape_cast %37 : vector<512x128xf32> to vector<32x2x8x128xf32>
    %45 = vector.extract_strided_slice %44 {offsets = [0, 0, 0, 0], sizes = [32, 1, 8, 128], strides = [1, 1, 1, 1]} : vector<32x2x8x128xf32> to vector<32x1x8x128xf32>
    %46 = vector.shape_cast %45 : vector<32x1x8x128xf32> to vector<32x8x128xf32>
    %47 = vector.extract_strided_slice %44 {offsets = [0, 1, 0, 0], sizes = [32, 1, 8, 128], strides = [1, 1, 1, 1]} : vector<32x2x8x128xf32> to vector<32x1x8x128xf32>
    %48 = vector.shape_cast %47 : vector<32x1x8x128xf32> to vector<32x8x128xf32>
    %49 = arith.addf %46, %48 : vector<32x8x128xf32>
    %cst_34 = arith.constant 5.000000e-01 : f32
    %50 = vector.broadcast %cst_34 : f32 to vector<32x8x128xf32>
    %51 = arith.mulf %49, %50 : vector<32x8x128xf32>
    %52 = vector.shape_cast %51 : vector<32x8x128xf32> to vector<256x128xf32>
    %53 = arith.truncf %43 : vector<512x128xf32> to vector<512x128xbf16>
    %c0_35 = arith.constant 0 : index
    %c0_36 = arith.constant 0 : index
    %54 = vector.load %arg15[%c0_35, %c0_36] : memref<128x128xbf16, #tpu.memory_space<vmem>>, vector<128x128xbf16>
    %cst_37 = arith.constant dense<0.000000e+00> : vector<512x128xf32>
    %55 = tpu.matmul %53, %54, %cst_37 {dimension_numbers = #tpu.dot_dimension_numbers<[1], [0], [0], [1], [0, 0, 1, 1], [], []>} : vector<512x128xbf16>, vector<128x128xbf16>, vector<512x128xf32> -> vector<512x128xf32>
    %c0_38 = arith.constant 0 : index
    %c0_39 = arith.constant 0 : index
    %56 = vector.load %arg3[%c0_38, %c0_39] : memref<512x15xf32, #tpu.memory_space<vmem>>, vector<512x15xf32>
    %57 = arith.truncf %56 : vector<512x15xf32> to vector<512x15xbf16>
    %c0_40 = arith.constant 0 : index
    %c0_41 = arith.constant 0 : index
    %58 = vector.load %arg16[%c0_40, %c0_41] : memref<15x128xbf16, #tpu.memory_space<vmem>>, vector<15x128xbf16>
    %cst_42 = arith.constant dense<0.000000e+00> : vector<512x128xf32>
    %59 = tpu.matmul %57, %58, %cst_42 {dimension_numbers = #tpu.dot_dimension_numbers<[1], [0], [0], [1], [0, 0, 1, 1], [], []>} : vector<512x15xbf16>, vector<15x128xbf16>, vector<512x128xf32> -> vector<512x128xf32>
    %60 = arith.addf %55, %59 : vector<512x128xf32>
    %c0_43 = arith.constant 0 : index
    %c0_44 = arith.constant 0 : index
    %61 = vector.load %arg17[%c0_43, %c0_44] : memref<1x128xf32, #tpu.memory_space<vmem>>, vector<1x128xf32>
    %62 = vector.broadcast %61 : vector<1x128xf32> to vector<512x128xf32>
    %63 = arith.addf %60, %62 : vector<512x128xf32>
    %64 = vector.shape_cast %63 : vector<512x128xf32> to vector<32x2x8x128xf32>
    %65 = vector.extract_strided_slice %64 {offsets = [0, 0, 0, 0], sizes = [32, 1, 8, 128], strides = [1, 1, 1, 1]} : vector<32x2x8x128xf32> to vector<32x1x8x128xf32>
    %66 = vector.shape_cast %65 : vector<32x1x8x128xf32> to vector<32x8x128xf32>
    %67 = vector.extract_strided_slice %64 {offsets = [0, 1, 0, 0], sizes = [32, 1, 8, 128], strides = [1, 1, 1, 1]} : vector<32x2x8x128xf32> to vector<32x1x8x128xf32>
    %68 = vector.shape_cast %67 : vector<32x1x8x128xf32> to vector<32x8x128xf32>
    %69 = arith.addf %66, %68 : vector<32x8x128xf32>
    %cst_45 = arith.constant 5.000000e-01 : f32
    %70 = vector.broadcast %cst_45 : f32 to vector<32x8x128xf32>
    %71 = arith.mulf %69, %70 : vector<32x8x128xf32>
    %72 = vector.shape_cast %71 : vector<32x8x128xf32> to vector<256x128xf32>
    %cst_46 = arith.constant 0.000000e+00 : f32
    %73 = vector.broadcast %cst_46 : f32 to vector<256x128xf32>
    %74 = arith.maximumf %72, %73 : vector<256x128xf32>
    %75 = arith.truncf %74 : vector<256x128xf32> to vector<256x128xbf16>
    %c0_47 = arith.constant 0 : index
    %c0_48 = arith.constant 0 : index
    %76 = vector.load %arg18[%c0_47, %c0_48] : memref<128x128xbf16, #tpu.memory_space<vmem>>, vector<128x128xbf16>
    %cst_49 = arith.constant dense<0.000000e+00> : vector<256x128xf32>
    %77 = tpu.matmul %75, %76, %cst_49 {dimension_numbers = #tpu.dot_dimension_numbers<[1], [0], [0], [1], [0, 0, 1, 1], [], []>} : vector<256x128xbf16>, vector<128x128xbf16>, vector<256x128xf32> -> vector<256x128xf32>
    %c0_50 = arith.constant 0 : index
    %c0_51 = arith.constant 0 : index
    %78 = vector.load %arg19[%c0_50, %c0_51] : memref<1x128xf32, #tpu.memory_space<vmem>>, vector<1x128xf32>
    %79 = vector.broadcast %78 : vector<1x128xf32> to vector<256x128xf32>
    %80 = arith.addf %77, %79 : vector<256x128xf32>
    %cst_52 = arith.constant 0.000000e+00 : f32
    %81 = vector.broadcast %cst_52 : f32 to vector<256x128xf32>
    %82 = arith.maximumf %80, %81 : vector<256x128xf32>
    %83 = arith.truncf %82 : vector<256x128xf32> to vector<256x128xbf16>
    %c0_53 = arith.constant 0 : index
    %c0_54 = arith.constant 0 : index
    %84 = vector.load %arg20[%c0_53, %c0_54] : memref<128x128xbf16, #tpu.memory_space<vmem>>, vector<128x128xbf16>
    %cst_55 = arith.constant dense<0.000000e+00> : vector<256x128xf32>
    %85 = tpu.matmul %83, %84, %cst_55 {dimension_numbers = #tpu.dot_dimension_numbers<[1], [0], [0], [1], [0, 0, 1, 1], [], []>} : vector<256x128xbf16>, vector<128x128xbf16>, vector<256x128xf32> -> vector<256x128xf32>
    %86 = arith.truncf %52 : vector<256x128xf32> to vector<256x128xbf16>
    %c0_56 = arith.constant 0 : index
    %c0_57 = arith.constant 0 : index
    %87 = vector.load %arg21[%c0_56, %c0_57] : memref<128x128xbf16, #tpu.memory_space<vmem>>, vector<128x128xbf16>
    %cst_58 = arith.constant dense<0.000000e+00> : vector<256x128xf32>
    %88 = tpu.matmul %86, %87, %cst_58 {dimension_numbers = #tpu.dot_dimension_numbers<[1], [0], [0], [1], [0, 0, 1, 1], [], []>} : vector<256x128xbf16>, vector<128x128xbf16>, vector<256x128xf32> -> vector<256x128xf32>
    %89 = arith.addf %85, %88 : vector<256x128xf32>
    %c0_59 = arith.constant 0 : index
    %c0_60 = arith.constant 0 : index
    %90 = vector.load %arg22[%c0_59, %c0_60] : memref<1x128xf32, #tpu.memory_space<vmem>>, vector<1x128xf32>
    %91 = vector.broadcast %90 : vector<1x128xf32> to vector<256x128xf32>
    %92 = arith.addf %89, %91 : vector<256x128xf32>
    %c0_61 = arith.constant 0 : index
    %c0_62 = arith.constant 0 : index
    %93 = vector.load %arg23[%c0_61, %c0_62] : memref<256x128xf32, #tpu.memory_space<vmem>>, vector<256x128xf32>
    tpu.vector_store %arg23[%c0_61, %c0_62], %92 {strides = array<i32>} : memref<256x128xf32, #tpu.memory_space<vmem>>, vector<256x128xf32>,
    return
  }
  func.func @transform_0(%arg0: i32) -> (i32, i32) {
    %c0_i32 = arith.constant 0 : i32
    %c0_i32_0 = arith.constant 0 : i32
    return %arg0, %c0_i32 : i32, i32
  }
  func.func @transform_1(%arg0: i32) -> (i32, i32) {
    %c0_i32 = arith.constant 0 : i32
    %c0_i32_0 = arith.constant 0 : i32
    return %arg0, %c0_i32 : i32, i32
  }
  func.func @transform_2(%arg0: i32) -> (i32, i32) {
    %c0_i32 = arith.constant 0 : i32
    %c0_i32_0 = arith.constant 0 : i32
    return %arg0, %c0_i32 : i32, i32
  }
  func.func @transform_3(%arg0: i32) -> (i32, i32) {
    %c0_i32 = arith.constant 0 : i32
    %c0_i32_0 = arith.constant 0 : i32
    %c0_i32_1 = arith.constant 0 : i32
    return %c0_i32, %c0_i32_0 : i32, i32
  }
  func.func @transform_4(%arg0: i32) -> (i32, i32) {
    %c0_i32 = arith.constant 0 : i32
    %c0_i32_0 = arith.constant 0 : i32
    %c0_i32_1 = arith.constant 0 : i32
    return %c0_i32, %c0_i32_0 : i32, i32
  }
  func.func @transform_5(%arg0: i32) -> (i32, i32) {
    %c0_i32 = arith.constant 0 : i32
    %c0_i32_0 = arith.constant 0 : i32
    %c0_i32_1 = arith.constant 0 : i32
    return %c0_i32, %c0_i32_0 : i32, i32
  }
  func.func @transform_6(%arg0: i32) -> (i32, i32) {
    %c0_i32 = arith.constant 0 : i32
    %c0_i32_0 = arith.constant 0 : i32
    %c0_i32_1 = arith.constant 0 : i32
    return %c0_i32, %c0_i32_0 : i32, i32
  }
  func.func @transform_7(%arg0: i32) -> (i32, i32) {
    %c0_i32 = arith.constant 0 : i32
    %c0_i32_0 = arith.constant 0 : i32
    %c0_i32_1 = arith.constant 0 : i32
    return %c0_i32, %c0_i32_0 : i32, i32
  }
  func.func @transform_8(%arg0: i32) -> (i32, i32) {
    %c0_i32 = arith.constant 0 : i32
    %c0_i32_0 = arith.constant 0 : i32
    %c0_i32_1 = arith.constant 0 : i32
    return %c0_i32, %c0_i32_0 : i32, i32
  }
  func.func @transform_9(%arg0: i32) -> (i32, i32) {
    %c0_i32 = arith.constant 0 : i32
    %c0_i32_0 = arith.constant 0 : i32
    %c0_i32_1 = arith.constant 0 : i32
    return %c0_i32, %c0_i32_0 : i32, i32
  }
  func.func @transform_10(%arg0: i32) -> (i32, i32) {
    %c0_i32 = arith.constant 0 : i32
    %c0_i32_0 = arith.constant 0 : i32
    %c0_i32_1 = arith.constant 0 : i32
    return %c0_i32, %c0_i32_0 : i32, i32
  }
  func.func @transform_11(%arg0: i32) -> (i32, i32) {
    %c0_i32 = arith.constant 0 : i32
    %c0_i32_0 = arith.constant 0 : i32
    %c0_i32_1 = arith.constant 0 : i32
    return %c0_i32, %c0_i32_0 : i32, i32
  }
  func.func @transform_12(%arg0: i32) -> (i32, i32) {
    %c0_i32 = arith.constant 0 : i32
    %c0_i32_0 = arith.constant 0 : i32
    %c0_i32_1 = arith.constant 0 : i32
    return %c0_i32, %c0_i32_0 : i32, i32
  }
  func.func @transform_13(%arg0: i32) -> (i32, i32) {
    %c0_i32 = arith.constant 0 : i32
    %c0_i32_0 = arith.constant 0 : i32
    %c0_i32_1 = arith.constant 0 : i32
    return %c0_i32, %c0_i32_0 : i32, i32
  }
  func.func @transform_14(%arg0: i32) -> (i32, i32) {
    %c0_i32 = arith.constant 0 : i32
    %c0_i32_0 = arith.constant 0 : i32
    %c0_i32_1 = arith.constant 0 : i32
    return %c0_i32, %c0_i32_0 : i32, i32
  }
  func.func @transform_15(%arg0: i32) -> (i32, i32) {
    %c0_i32 = arith.constant 0 : i32
    %c0_i32_0 = arith.constant 0 : i32
    %c0_i32_1 = arith.constant 0 : i32
    return %c0_i32, %c0_i32_0 : i32, i32
  }
  func.func @transform_16(%arg0: i32) -> (i32, i32) {
    %c0_i32 = arith.constant 0 : i32
    %c0_i32_0 = arith.constant 0 : i32
    %c0_i32_1 = arith.constant 0 : i32
    return %c0_i32, %c0_i32_0 : i32, i32
  }
  func.func @transform_17(%arg0: i32) -> (i32, i32) {
    %c0_i32 = arith.constant 0 : i32
    %c0_i32_0 = arith.constant 0 : i32
    %c0_i32_1 = arith.constant 0 : i32
    return %c0_i32, %c0_i32_0 : i32, i32
  }
  func.func @transform_18(%arg0: i32) -> (i32, i32) {
    %c0_i32 = arith.constant 0 : i32
    %c0_i32_0 = arith.constant 0 : i32
    %c0_i32_1 = arith.constant 0 : i32
    return %c0_i32, %c0_i32_0 : i32, i32
  }
  func.func @transform_19(%arg0: i32) -> (i32, i32) {
    %c0_i32 = arith.constant 0 : i32
    %c0_i32_0 = arith.constant 0 : i32
    %c0_i32_1 = arith.constant 0 : i32
    return %c0_i32, %c0_i32_0 : i32, i32
  }
  func.func @transform_20(%arg0: i32) -> (i32, i32) {
    %c0_i32 = arith.constant 0 : i32
    %c0_i32_0 = arith.constant 0 : i32
    %c0_i32_1 = arith.constant 0 : i32
    return %c0_i32, %c0_i32_0 : i32, i32
  }
  func.func @transform_21(%arg0: i32) -> (i32, i32) {
    %c0_i32 = arith.constant 0 : i32
    %c0_i32_0 = arith.constant 0 : i32
    %c0_i32_1 = arith.constant 0 : i32
    return %c0_i32, %c0_i32_0 : i32, i32
  }
  func.func @transform_22(%arg0: i32) -> (i32, i32) {
    %c0_i32 = arith.constant 0 : i32
    %c0_i32_0 = arith.constant 0 : i32
    return %arg0, %c0_i32 : i32, i32
  }
}

</mosaic_0001>

<llo_original>
// kernel: nerf_mlp_forward.1
$region0: #{nerf_mlp_forward.1}
  #allocation0 [shape = 'u32[]', space=smem, size = 0x4, offset = 0x4, fixed_abs, tag = 'smem constant byte address 0x4 - core index']
  #allocation1 [shape = 'u32[72,128]{1,0:T(1,128)}', space=vmem, size = 0x9000, scoped, tag = 'internal scratch']
  %s0 = inlined_call_operand.vmem [shape: f32[1024,27], index: 0, kind: input, shape index: {}]
  %s1 = inlined_call_operand.vmem [shape: f32[1024,101], index: 1, kind: input, shape index: {}]
  %s2 = inlined_call_operand.vmem [shape: f32[1024,15], index: 2, kind: input, shape index: {}]
  %s3 = inlined_call_operand.vmem [shape: bf16[27,128], index: 3, kind: input, shape index: {}]
  %s4 = inlined_call_operand.vmem [shape: bf16[101,128], index: 4, kind: input, shape index: {}]
  %s5 = inlined_call_operand.vmem [shape: f32[1,128], index: 5, kind: input, shape index: {}]
  %s6 = inlined_call_operand.vmem [shape: bf16[128,128], index: 6, kind: input, shape index: {}]
  %s7 = inlined_call_operand.vmem [shape: f32[1,128], index: 7, kind: input, shape index: {}]
  %s8 = inlined_call_operand.vmem [shape: bf16[128,128], index: 8, kind: input, shape index: {}]
  %s9 = inlined_call_operand.vmem [shape: f32[1,128], index: 9, kind: input, shape index: {}]
  %s10 = inlined_call_operand.vmem [shape: bf16[128,128], index: 10, kind: input, shape index: {}]
  %s11 = inlined_call_operand.vmem [shape: f32[1,128], index: 11, kind: input, shape index: {}]
  %s12 = inlined_call_operand.vmem [shape: bf16[128,128], index: 12, kind: input, shape index: {}]
  %s13 = inlined_call_operand.vmem [shape: f32[1,128], index: 13, kind: input, shape index: {}]
  %s14 = inlined_call_operand.vmem [shape: bf16[128,128], index: 14, kind: input, shape index: {}]
  %s15 = inlined_call_operand.vmem [shape: bf16[15,128], index: 15, kind: input, shape index: {}]
  %s16 = inlined_call_operand.vmem [shape: f32[1,128], index: 16, kind: input, shape index: {}]
  %s17 = inlined_call_operand.vmem [shape: bf16[128,128], index: 17, kind: input, shape index: {}]
  %s18 = inlined_call_operand.vmem [shape: f32[1,128], index: 18, kind: input, shape index: {}]
  %s19 = inlined_call_operand.vmem [shape: bf16[128,128], index: 19, kind: input, shape index: {}]
  %s20 = inlined_call_operand.vmem [shape: bf16[128,128], index: 20, kind: input, shape index: {}]
  %s21 = inlined_call_operand.vmem [shape: f32[1,128], index: 21, kind: input, shape index: {}]
  %s22 = inlined_call_operand.vmem [shape: f32[512,128], index: 22, kind: output, shape index: {}]
  %s23 = sld [smem:[#allocation0]]
  $region121: #{nerf_mlp_forward.1} parent=0
    _
  %s25 = ssub.s32 1, %s23
  %s26 = scalar_select 0, %s25, %s23
  loop: start=0, step=1, limit=4
  $region2: #{nerf_mlp_forward.1} parent=0 // loop_pre_header
    _
  $region3: #{nerf_mlp_forward.1} parent=0 // loop_header
    %s28 = sphi 0, %s32
    %p29 = scmp.ge.s32.totalorder %s28, 4
    %s38 = sphi 0, %s40
    %s41 = sphi 0, %s38
    %s42 = sphi 0, %s41
    %s58 = sphi 0, %s42
    %s64 = sphi 0, %s66
    %s67 = sphi 0, %s64
    %s68 = sphi 0, %s67
    %s84 = sphi 0, %s68
    %s90 = sphi 0, %s92
    %s93 = sphi 0, %s90
    %s94 = sphi 0, %s93
    %s110 = sphi 0, %s94
    %s114 = sphi 0, %s114
    %s116 = sphi 0, %s114
    %s117 = sphi 0, %s116
    %s131 = sphi 0, %s117
    %s135 = sphi 0, %s135
    %s137 = sphi 0, %s135
    %s138 = sphi 0, %s137
    %s152 = sphi 0, %s138
    %s156 = sphi 0, %s156
    %s158 = sphi 0, %s156
    %s159 = sphi 0, %s158
    %s173 = sphi 0, %s159
    %s177 = sphi 0, %s177
    %s179 = sphi 0, %s177
    %s180 = sphi 0, %s179
    %s194 = sphi 0, %s180
    %s198 = sphi 0, %s198
    %s200 = sphi 0, %s198
    %s201 = sphi 0, %s200
    %s215 = sphi 0, %s201
    %s219 = sphi 0, %s219
    %s221 = sphi 0, %s219
    %s222 = sphi 0, %s221
    %s236 = sphi 0, %s222
    %s240 = sphi 0, %s240
    %s242 = sphi 0, %s240
    %s243 = sphi 0, %s242
    %s257 = sphi 0, %s243
    %s261 = sphi 0, %s261
    %s263 = sphi 0, %s261
    %s264 = sphi 0, %s263
    %s278 = sphi 0, %s264
    %s282 = sphi 0, %s282
    %s284 = sphi 0, %s282
    %s285 = sphi 0, %s284
    %s299 = sphi 0, %s285
    %s303 = sphi 0, %s303
    %s305 = sphi 0, %s303
    %s306 = sphi 0, %s305
    %s320 = sphi 0, %s306
    %s324 = sphi 0, %s324
    %s326 = sphi 0, %s324
    %s327 = sphi 0, %s326
    %s341 = sphi 0, %s327
    %s345 = sphi 0, %s345
    %s347 = sphi 0, %s345
    %s348 = sphi 0, %s347
    %s362 = sphi 0, %s348
    %s366 = sphi 0, %s366
    %s368 = sphi 0, %s366
    %s369 = sphi 0, %s368
    %s383 = sphi 0, %s369
    %s387 = sphi 0, %s387
    %s389 = sphi 0, %s387
    %s390 = sphi 0, %s389
    %s404 = sphi 0, %s390
    %s408 = sphi 0, %s408
    %s410 = sphi 0, %s408
    %s411 = sphi 0, %s410
    %s425 = sphi 0, %s411
    %s429 = sphi 0, %s429
    %s431 = sphi 0, %s429
    %s432 = sphi 0, %s431
    %s446 = sphi 0, %s432
    %s450 = sphi 0, %s450
    %s452 = sphi 0, %s450
    %s453 = sphi 0, %s452
    %s467 = sphi 0, %s453
    %s471 = sphi 0, %s471
    %s473 = sphi 0, %s471
    %s474 = sphi 0, %s473
    %s488 = sphi 0, %s474
    %s492 = sphi 0, %s492
    %s494 = sphi 0, %s492
    %s495 = sphi 0, %s494
    %s509 = sphi 0, %s495
    %s515 = sphi 0, %s517
    %s518 = sphi 0, %s515
    %s519 = sphi 0, %s518
    %s535 = sphi 0, %s519
  $region4: #{nerf_mlp_forward.1} parent=0 // loop_header_branch
    %31 = sbr.rel (%p29) target = $region8
  $region5: #{nerf_mlp_forward.1} parent=0 // loop_body
    %s33 = ssub.s32 %s28, 1
    %s34 = ssub.s32 %s28, 2
    %s35 = sadd.s32 %s28, 1
    %s36 = ssub.s32 %s28, %s35
    %p37 = scmp.eq.s32.totalorder %s36, 0
    %s39 = sadd.s32 %s38, 1
    %s40 = scalar_select %p37, %s38, %s39
    %p43 = pneg %p37
    %p44 = scmp.eq.s32.totalorder %s28, 1
    %p45 = por %p43, %p44
    %p46 = scmp.ne.s32.totalorder %s38, %s41
    %p47 = scmp.eq.s32.totalorder %s28, 0
    %p48 = por %p46, %p47
    %p49 = scmp.ne.s32.totalorder %s38, %s41
    %p50 = scmp.eq.s32.totalorder %s33, 1
    %p51 = por %p49, %p50
    %p52 = scmp.ne.s32.totalorder %s41, %s42
    %p53 = scmp.eq.s32.totalorder %s33, 0
    %p54 = por %p52, %p53
    %p55 = scmp.ne.s32.totalorder %s41, %s42
    %p56 = scmp.eq.s32.totalorder %s34, 1
    %p57 = por %p55, %p56
    %p59 = scmp.ne.s32.totalorder %s42, %s58
    %p60 = scmp.eq.s32.totalorder %s34, 0
    %p61 = por %p59, %p60
    %s62 = ssub.s32 %s28, %s35
    %p63 = scmp.eq.s32.totalorder %s62, 0
    %s65 = sadd.s32 %s64, 1
    %s66 = scalar_select %p63, %s64, %s65
    %p69 = pneg %p63
    %p70 = scmp.eq.s32.totalorder %s28, 1
    %p71 = por %p69, %p70
    %p72 = scmp.ne.s32.totalorder %s64, %s67
    %p73 = scmp.eq.s32.totalorder %s28, 0
    %p74 = por %p72, %p73
    %p75 = scmp.ne.s32.totalorder %s64, %s67
    %p76 = scmp.eq.s32.totalorder %s33, 1
    %p77 = por %p75, %p76
    %p78 = scmp.ne.s32.totalorder %s67, %s68
    %p79 = scmp.eq.s32.totalorder %s33, 0
    %p80 = por %p78, %p79
    %p81 = scmp.ne.s32.totalorder %s67, %s68
    %p82 = scmp.eq.s32.totalorder %s34, 1
    %p83 = por %p81, %p82
    %p85 = scmp.ne.s32.totalorder %s68, %s84
    %p86 = scmp.eq.s32.totalorder %s34, 0
    %p87 = por %p85, %p86
    %s88 = ssub.s32 %s28, %s35
    %p89 = scmp.eq.s32.totalorder %s88, 0
    %s91 = sadd.s32 %s90, 1
    %s92 = scalar_select %p89, %s90, %s91
    %p95 = pneg %p89
    %p96 = scmp.eq.s32.totalorder %s28, 1
    %p97 = por %p95, %p96
    %p98 = scmp.ne.s32.totalorder %s90, %s93
    %p99 = scmp.eq.s32.totalorder %s28, 0
    %p100 = por %p98, %p99
    %p101 = scmp.ne.s32.totalorder %s90, %s93
    %p102 = scmp.eq.s32.totalorder %s33, 1
    %p103 = por %p101, %p102
    %p104 = scmp.ne.s32.totalorder %s93, %s94
    %p105 = scmp.eq.s32.totalorder %s33, 0
    %p106 = por %p104, %p105
    %p107 = scmp.ne.s32.totalorder %s93, %s94
    %p108 = scmp.eq.s32.totalorder %s34, 1
    %p109 = por %p107, %p108
    %p111 = scmp.ne.s32.totalorder %s94, %s110
    %p112 = scmp.eq.s32.totalorder %s34, 0
    %p113 = por %p111, %p112
    %s115 = sadd.s32 %s114, 1
    %p118 = scmp.eq.s32.totalorder %s28, 1
    %p119 = scmp.ne.s32.totalorder %s114, %s116
    %p120 = scmp.eq.s32.totalorder %s28, 0
    %p121 = por %p119, %p120
    %p122 = scmp.ne.s32.totalorder %s114, %s116
    %p123 = scmp.eq.s32.totalorder %s33, 1
    %p124 = por %p122, %p123
    %p125 = scmp.ne.s32.totalorder %s116, %s117
    %p126 = scmp.eq.s32.totalorder %s33, 0
    %p127 = por %p125, %p126
    %p128 = scmp.ne.s32.totalorder %s116, %s117
    %p129 = scmp.eq.s32.totalorder %s34, 1
    %p130 = por %p128, %p129
    %p132 = scmp.ne.s32.totalorder %s117, %s131
    %p133 = scmp.eq.s32.totalorder %s34, 0
    %p134 = por %p132, %p133
    %s136 = sadd.s32 %s135, 1
    %p139 = scmp.eq.s32.totalorder %s28, 1
    %p140 = scmp.ne.s32.totalorder %s135, %s137
    %p141 = scmp.eq.s32.totalorder %s28, 0
    %p142 = por %p140, %p141
    %p143 = scmp.ne.s32.totalorder %s135, %s137
    %p144 = scmp.eq.s32.totalorder %s33, 1
    %p145 = por %p143, %p144
    %p146 = scmp.ne.s32.totalorder %s137, %s138
    %p147 = scmp.eq.s32.totalorder %s33, 0
    %p148 = por %p146, %p147
    %p149 = scmp.ne.s32.totalorder %s137, %s138
    %p150 = scmp.eq.s32.totalorder %s34, 1
    %p151 = por %p149, %p150
    %p153 = scmp.ne.s32.totalorder %s138, %s152
    %p154 = scmp.eq.s32.totalorder %s34, 0
    %p155 = por %p153, %p154
    %s157 = sadd.s32 %s156, 1
    %p160 = scmp.eq.s32.totalorder %s28, 1
    %p161 = scmp.ne.s32.totalorder %s156, %s158
    %p162 = scmp.eq.s32.totalorder %s28, 0
    %p163 = por %p161, %p162
    %p164 = scmp.ne.s32.totalorder %s156, %s158
    %p165 = scmp.eq.s32.totalorder %s33, 1
    %p166 = por %p164, %p165
    %p167 = scmp.ne.s32.totalorder %s158, %s159
    %p168 = scmp.eq.s32.totalorder %s33, 0
    %p169 = por %p167, %p168
    %p170 = scmp.ne.s32.totalorder %s158, %s159
    %p171 = scmp.eq.s32.totalorder %s34, 1
    %p172 = por %p170, %p171
    %p174 = scmp.ne.s32.totalorder %s159, %s173
    %p175 = scmp.eq.s32.totalorder %s34, 0
    %p176 = por %p174, %p175
    %s178 = sadd.s32 %s177, 1
    %p181 = scmp.eq.s32.totalorder %s28, 1
    %p182 = scmp.ne.s32.totalorder %s177, %s179
    %p183 = scmp.eq.s32.totalorder %s28, 0
    %p184 = por %p182, %p183
    %p185 = scmp.ne.s32.totalorder %s177, %s179
    %p186 = scmp.eq.s32.totalorder %s33, 1
    %p187 = por %p185, %p186
    %p188 = scmp.ne.s32.totalorder %s179, %s180
    %p189 = scmp.eq.s32.totalorder %s33, 0
    %p190 = por %p188, %p189
    %p191 = scmp.ne.s32.totalorder %s179, %s180
    %p192 = scmp.eq.s32.totalorder %s34, 1
    %p193 = por %p191, %p192
    %p195 = scmp.ne.s32.totalorder %s180, %s194
    %p196 = scmp.eq.s32.totalorder %s34, 0
    %p197 = por %p195, %p196
    %s199 = sadd.s32 %s198, 1
    %p202 = scmp.eq.s32.totalorder %s28, 1
    %p203 = scmp.ne.s32.totalorder %s198, %s200
    %p204 = scmp.eq.s32.totalorder %s28, 0
    %p205 = por %p203, %p204
    %p206 = scmp.ne.s32.totalorder %s198, %s200
    %p207 = scmp.eq.s32.totalorder %s33, 1
    %p208 = por %p206, %p207
    %p209 = scmp.ne.s32.totalorder %s200, %s201
    %p210 = scmp.eq.s32.totalorder %s33, 0
    %p211 = por %p209, %p210
    %p212 = scmp.ne.s32.totalorder %s200, %s201
    %p213 = scmp.eq.s32.totalorder %s34, 1
    %p214 = por %p212, %p213
    %p216 = scmp.ne.s32.totalorder %s201, %s215
    %p217 = scmp.eq.s32.totalorder %s34, 0
    %p218 = por %p216, %p217
    %s220 = sadd.s32 %s219, 1
    %p223 = scmp.eq.s32.totalorder %s28, 1
    %p224 = scmp.ne.s32.totalorder %s219, %s221
    %p225 = scmp.eq.s32.totalorder %s28, 0
    %p226 = por %p224, %p225
    %p227 = scmp.ne.s32.totalorder %s219, %s221
    %p228 = scmp.eq.s32.totalorder %s33, 1
    %p229 = por %p227, %p228
    %p230 = scmp.ne.s32.totalorder %s221, %s222
    %p231 = scmp.eq.s32.totalorder %s33, 0
    %p232 = por %p230, %p231
    %p233 = scmp.ne.s32.totalorder %s221, %s222
    %p234 = scmp.eq.s32.totalorder %s34, 1
    %p235 = por %p233, %p234
    %p237 = scmp.ne.s32.totalorder %s222, %s236
    %p238 = scmp.eq.s32.totalorder %s34, 0
    %p239 = por %p237, %p238
    %s241 = sadd.s32 %s240, 1
    %p244 = scmp.eq.s32.totalorder %s28, 1
    %p245 = scmp.ne.s32.totalorder %s240, %s242
    %p246 = scmp.eq.s32.totalorder %s28, 0
    %p247 = por %p245, %p246
    %p248 = scmp.ne.s32.totalorder %s240, %s242
    %p249 = scmp.eq.s32.totalorder %s33, 1
    %p250 = por %p248, %p249
    %p251 = scmp.ne.s32.totalorder %s242, %s243
    %p252 = scmp.eq.s32.totalorder %s33, 0
    %p253 = por %p251, %p252
    %p254 = scmp.ne.s32.totalorder %s242, %s243
    %p255 = scmp.eq.s32.totalorder %s34, 1
    %p256 = por %p254, %p255
    %p258 = scmp.ne.s32.totalorder %s243, %s257
    %p259 = scmp.eq.s32.totalorder %s34, 0
    %p260 = por %p258, %p259
    %s262 = sadd.s32 %s261, 1
    %p265 = scmp.eq.s32.totalorder %s28, 1
    %p266 = scmp.ne.s32.totalorder %s261, %s263
    %p267 = scmp.eq.s32.totalorder %s28, 0
    %p268 = por %p266, %p267
    %p269 = scmp.ne.s32.totalorder %s261, %s263
    %p270 = scmp.eq.s32.totalorder %s33, 1
    %p271 = por %p269, %p270
    %p272 = scmp.ne.s32.totalorder %s263, %s264
    %p273 = scmp.eq.s32.totalorder %s33, 0
    %p274 = por %p272, %p273
    %p275 = scmp.ne.s32.totalorder %s263, %s264
    %p276 = scmp.eq.s32.totalorder %s34, 1
    %p277 = por %p275, %p276
    %p279 = scmp.ne.s32.totalorder %s264, %s278
    %p280 = scmp.eq.s32.totalorder %s34, 0
    %p281 = por %p279, %p280
    %s283 = sadd.s32 %s282, 1
    %p286 = scmp.eq.s32.totalorder %s28, 1
    %p287 = scmp.ne.s32.totalorder %s282, %s284
    %p288 = scmp.eq.s32.totalorder %s28, 0
    %p289 = por %p287, %p288
    %p290 = scmp.ne.s32.totalorder %s282, %s284
    %p291 = scmp.eq.s32.totalorder %s33, 1
    %p292 = por %p290, %p291
    %p293 = scmp.ne.s32.totalorder %s284, %s285
    %p294 = scmp.eq.s32.totalorder %s33, 0
    %p295 = por %p293, %p294
    %p296 = scmp.ne.s32.totalorder %s284, %s285
    %p297 = scmp.eq.s32.totalorder %s34, 1
    %p298 = por %p296, %p297
    %p300 = scmp.ne.s32.totalorder %s285, %s299
    %p301 = scmp.eq.s32.totalorder %s34, 0
    %p302 = por %p300, %p301
    %s304 = sadd.s32 %s303, 1
    %p307 = scmp.eq.s32.totalorder %s28, 1
    %p308 = scmp.ne.s32.totalorder %s303, %s305
    %p309 = scmp.eq.s32.totalorder %s28, 0
    %p310 = por %p308, %p309
    %p311 = scmp.ne.s32.totalorder %s303, %s305
    %p312 = scmp.eq.s32.totalorder %s33, 1
    %p313 = por %p311, %p312
    %p314 = scmp.ne.s32.totalorder %s305, %s306
    %p315 = scmp.eq.s32.totalorder %s33, 0
    %p316 = por %p314, %p315
    %p317 = scmp.ne.s32.totalorder %s305, %s306
    %p318 = scmp.eq.s32.totalorder %s34, 1
    %p319 = por %p317, %p318
    %p321 = scmp.ne.s32.totalorder %s306, %s320
    %p322 = scmp.eq.s32.totalorder %s34, 0
    %p323 = por %p321, %p322
    %s325 = sadd.s32 %s324, 1
    %p328 = scmp.eq.s32.totalorder %s28, 1
    %p329 = scmp.ne.s32.totalorder %s324, %s326
    %p330 = scmp.eq.s32.totalorder %s28, 0
    %p331 = por %p329, %p330
    %p332 = scmp.ne.s32.totalorder %s324, %s326
    %p333 = scmp.eq.s32.totalorder %s33, 1
    %p334 = por %p332, %p333
    %p335 = scmp.ne.s32.totalorder %s326, %s327
    %p336 = scmp.eq.s32.totalorder %s33, 0
    %p337 = por %p335, %p336
    %p338 = scmp.ne.s32.totalorder %s326, %s327
    %p339 = scmp.eq.s32.totalorder %s34, 1
    %p340 = por %p338, %p339
    %p342 = scmp.ne.s32.totalorder %s327, %s341
    %p343 = scmp.eq.s32.totalorder %s34, 0
    %p344 = por %p342, %p343
    %s346 = sadd.s32 %s345, 1
    %p349 = scmp.eq.s32.totalorder %s28, 1
    %p350 = scmp.ne.s32.totalorder %s345, %s347
    %p351 = scmp.eq.s32.totalorder %s28, 0
    %p352 = por %p350, %p351
    %p353 = scmp.ne.s32.totalorder %s345, %s347
    %p354 = scmp.eq.s32.totalorder %s33, 1
    %p355 = por %p353, %p354
    %p356 = scmp.ne.s32.totalorder %s347, %s348
    %p357 = scmp.eq.s32.totalorder %s33, 0
    %p358 = por %p356, %p357
    %p359 = scmp.ne.s32.totalorder %s347, %s348
    %p360 = scmp.eq.s32.totalorder %s34, 1
    %p361 = por %p359, %p360
    %p363 = scmp.ne.s32.totalorder %s348, %s362
    %p364 = scmp.eq.s32.totalorder %s34, 0
    %p365 = por %p363, %p364
    %s367 = sadd.s32 %s366, 1
    %p370 = scmp.eq.s32.totalorder %s28, 1
    %p371 = scmp.ne.s32.totalorder %s366, %s368
    %p372 = scmp.eq.s32.totalorder %s28, 0
    %p373 = por %p371, %p372
    %p374 = scmp.ne.s32.totalorder %s366, %s368
    %p375 = scmp.eq.s32.totalorder %s33, 1
    %p376 = por %p374, %p375
    %p377 = scmp.ne.s32.totalorder %s368, %s369
    %p378 = scmp.eq.s32.totalorder %s33, 0
    %p379 = por %p377, %p378
    %p380 = scmp.ne.s32.totalorder %s368, %s369
    %p381 = scmp.eq.s32.totalorder %s34, 1
    %p382 = por %p380, %p381
    %p384 = scmp.ne.s32.totalorder %s369, %s383
    %p385 = scmp.eq.s32.totalorder %s34, 0
    %p386 = por %p384, %p385
    %s388 = sadd.s32 %s387, 1
    %p391 = scmp.eq.s32.totalorder %s28, 1
    %p392 = scmp.ne.s32.totalorder %s387, %s389
    %p393 = scmp.eq.s32.totalorder %s28, 0
    %p394 = por %p392, %p393
    %p395 = scmp.ne.s32.totalorder %s387, %s389
    %p396 = scmp.eq.s32.totalorder %s33, 1
    %p397 = por %p395, %p396
    %p398 = scmp.ne.s32.totalorder %s389, %s390
    %p399 = scmp.eq.s32.totalorder %s33, 0
    %p400 = por %p398, %p399
    %p401 = scmp.ne.s32.totalorder %s389, %s390
    %p402 = scmp.eq.s32.totalorder %s34, 1
    %p403 = por %p401, %p402
    %p405 = scmp.ne.s32.totalorder %s390, %s404
    %p406 = scmp.eq.s32.totalorder %s34, 0
    %p407 = por %p405, %p406
    %s409 = sadd.s32 %s408, 1
    %p412 = scmp.eq.s32.totalorder %s28, 1
    %p413 = scmp.ne.s32.totalorder %s408, %s410
    %p414 = scmp.eq.s32.totalorder %s28, 0
    %p415 = por %p413, %p414
    %p416 = scmp.ne.s32.totalorder %s408, %s410
    %p417 = scmp.eq.s32.totalorder %s33, 1
    %p418 = por %p416, %p417
    %p419 = scmp.ne.s32.totalorder %s410, %s411
    %p420 = scmp.eq.s32.totalorder %s33, 0
    %p421 = por %p419, %p420
    %p422 = scmp.ne.s32.totalorder %s410, %s411
    %p423 = scmp.eq.s32.totalorder %s34, 1
    %p424 = por %p422, %p423
    %p426 = scmp.ne.s32.totalorder %s411, %s425
    %p427 = scmp.eq.s32.totalorder %s34, 0
    %p428 = por %p426, %p427
    %s430 = sadd.s32 %s429, 1
    %p433 = scmp.eq.s32.totalorder %s28, 1
    %p434 = scmp.ne.s32.totalorder %s429, %s431
    %p435 = scmp.eq.s32.totalorder %s28, 0
    %p436 = por %p434, %p435
    %p437 = scmp.ne.s32.totalorder %s429, %s431
    %p438 = scmp.eq.s32.totalorder %s33, 1
    %p439 = por %p437, %p438
    %p440 = scmp.ne.s32.totalorder %s431, %s432
    %p441 = scmp.eq.s32.totalorder %s33, 0
    %p442 = por %p440, %p441
    %p443 = scmp.ne.s32.totalorder %s431, %s432
    %p444 = scmp.eq.s32.totalorder %s34, 1
    %p445 = por %p443, %p444
    %p447 = scmp.ne.s32.totalorder %s432, %s446
    %p448 = scmp.eq.s32.totalorder %s34, 0
    %p449 = por %p447, %p448
    %s451 = sadd.s32 %s450, 1
    %p454 = scmp.eq.s32.totalorder %s28, 1
    %p455 = scmp.ne.s32.totalorder %s450, %s452
    %p456 = scmp.eq.s32.totalorder %s28, 0
    %p457 = por %p455, %p456
    %p458 = scmp.ne.s32.totalorder %s450, %s452
    %p459 = scmp.eq.s32.totalorder %s33, 1
    %p460 = por %p458, %p459
    %p461 = scmp.ne.s32.totalorder %s452, %s453
    %p462 = scmp.eq.s32.totalorder %s33, 0
    %p463 = por %p461, %p462
    %p464 = scmp.ne.s32.totalorder %s452, %s453
    %p465 = scmp.eq.s32.totalorder %s34, 1
    %p466 = por %p464, %p465
    %p468 = scmp.ne.s32.totalorder %s453, %s467
    %p469 = scmp.eq.s32.totalorder %s34, 0
    %p470 = por %p468, %p469
    %s472 = sadd.s32 %s471, 1
    %p475 = scmp.eq.s32.totalorder %s28, 1
    %p476 = scmp.ne.s32.totalorder %s471, %s473
    %p477 = scmp.eq.s32.totalorder %s28, 0
    %p478 = por %p476, %p477
    %p479 = scmp.ne.s32.totalorder %s471, %s473
    %p480 = scmp.eq.s32.totalorder %s33, 1
    %p481 = por %p479, %p480
    %p482 = scmp.ne.s32.totalorder %s473, %s474
    %p483 = scmp.eq.s32.totalorder %s33, 0
    %p484 = por %p482, %p483
    %p485 = scmp.ne.s32.totalorder %s473, %s474
    %p486 = scmp.eq.s32.totalorder %s34, 1
    %p487 = por %p485, %p486
    %p489 = scmp.ne.s32.totalorder %s474, %s488
    %p490 = scmp.eq.s32.totalorder %s34, 0
    %p491 = por %p489, %p490
    %s493 = sadd.s32 %s492, 1
    %p496 = scmp.eq.s32.totalorder %s28, 1
    %p497 = scmp.ne.s32.totalorder %s492, %s494
    %p498 = scmp.eq.s32.totalorder %s28, 0
    %p499 = por %p497, %p498
    %p500 = scmp.ne.s32.totalorder %s492, %s494
    %p501 = scmp.eq.s32.totalorder %s33, 1
    %p502 = por %p500, %p501
    %p503 = scmp.ne.s32.totalorder %s494, %s495
    %p504 = scmp.eq.s32.totalorder %s33, 0
    %p505 = por %p503, %p504
    %p506 = scmp.ne.s32.totalorder %s494, %s495
    %p507 = scmp.eq.s32.totalorder %s34, 1
    %p508 = por %p506, %p507
    %p510 = scmp.ne.s32.totalorder %s495, %s509
    %p511 = scmp.eq.s32.totalorder %s34, 0
    %p512 = por %p510, %p511
    %s513 = ssub.s32 %s28, %s35
    %p514 = scmp.eq.s32.totalorder %s513, 0
    %s516 = sadd.s32 %s515, 1
    %s517 = scalar_select %p514, %s515, %s516
    %p520 = pneg %p514
    %p521 = scmp.eq.s32.totalorder %s28, 1
    %p522 = por %p520, %p521
    %p523 = scmp.ne.s32.totalorder %s515, %s518
    %p524 = scmp.eq.s32.totalorder %s28, 0
    %p525 = por %p523, %p524
    %p526 = scmp.ne.s32.totalorder %s515, %s518
    %p527 = scmp.eq.s32.totalorder %s33, 1
    %p528 = por %p526, %p527
    %p529 = scmp.ne.s32.totalorder %s518, %s519
    %p530 = scmp.eq.s32.totalorder %s33, 0
    %p531 = por %p529, %p530
    %p532 = scmp.ne.s32.totalorder %s518, %s519
    %p533 = scmp.eq.s32.totalorder %s34, 1
    %p534 = por %p532, %p533
    %p536 = scmp.ne.s32.totalorder %s519, %s535
    %p537 = scmp.eq.s32.totalorder %s34, 0
    %p538 = por %p536, %p537
    %p539 = scmp.le.s32.totalorder 1, %s28
    %p540 = scmp.lt.s32.totalorder %s28, 3
    %p541 = pnand %p539, %p540
    %p542 = pneg %p541
    // Predicated region
    $region9: #{nerf_mlp_forward.1} parent=5 // pred_check
      _
    $region10: #{nerf_mlp_forward.1} parent=5 // pred_check_branch
      %544 = sbr.rel (%p541) target = $region12
    $region11: #{nerf_mlp_forward.1} parent=5 // pred_region
      %s545 = ssub.s32 %s28, 1
      // Predicated region
      $region13: #{nerf_mlp_forward.1} parent=11 // pred_check
        %p546 = pneg %p127
      $region14: #{nerf_mlp_forward.1} parent=11 // pred_check_branch
        %548 = sbr.rel (%p546) target = $region16
      $region15: #{nerf_mlp_forward.1} parent=11 // pred_region
        _
      $region16: #{nerf_mlp_forward.1} parent=11 // pred_fallthru
        _
      // Predicated region
      $region17: #{nerf_mlp_forward.1} parent=11 // pred_check
        %p549 = pneg %p148
      $region18: #{nerf_mlp_forward.1} parent=11 // pred_check_branch
        %551 = sbr.rel (%p549) target = $region20
      $region19: #{nerf_mlp_forward.1} parent=11 // pred_region
        _
      $region20: #{nerf_mlp_forward.1} parent=11 // pred_fallthru
        _
      // Predicated region
      $region21: #{nerf_mlp_forward.1} parent=11 // pred_check
        %p552 = pneg %p169
      $region22: #{nerf_mlp_forward.1} parent=11 // pred_check_branch
        %554 = sbr.rel (%p552) target = $region24
      $region23: #{nerf_mlp_forward.1} parent=11 // pred_region
        _
      $region24: #{nerf_mlp_forward.1} parent=11 // pred_fallthru
        _
      // Predicated region
      $region25: #{nerf_mlp_forward.1} parent=11 // pred_check
        %p555 = pneg %p190
      $region26: #{nerf_mlp_forward.1} parent=11 // pred_check_branch
        %557 = sbr.rel (%p555) target = $region28
      $region27: #{nerf_mlp_forward.1} parent=11 // pred_region
        _
      $region28: #{nerf_mlp_forward.1} parent=11 // pred_fallthru
        _
      // Predicated region
      $region29: #{nerf_mlp_forward.1} parent=11 // pred_check
        %p558 = pneg %p211
      $region30: #{nerf_mlp_forward.1} parent=11 // pred_check_branch
        %560 = sbr.rel (%p558) target = $region32
      $region31: #{nerf_mlp_forward.1} parent=11 // pred_region
        _
      $region32: #{nerf_mlp_forward.1} parent=11 // pred_fallthru
        _
      // Predicated region
      $region33: #{nerf_mlp_forward.1} parent=11 // pred_check
        %p561 = pneg %p232
      $region34: #{nerf_mlp_forward.1} parent=11 // pred_check_branch
        %563 = sbr.rel (%p561) target = $region36
      $region35: #{nerf_mlp_forward.1} parent=11 // pred_region
        _
      $region36: #{nerf_mlp_forward.1} parent=11 // pred_fallthru
        _
      // Predicated region
      $region37: #{nerf_mlp_forward.1} parent=11 // pred_check
        %p564 = pneg %p253
      $region38: #{nerf_mlp_forward.1} parent=11 // pred_check_branch
        %566 = sbr.rel (%p564) target = $region40
      $region39: #{nerf_mlp_forward.1} parent=11 // pred_region
        _
      $region40: #{nerf_mlp_forward.1} parent=11 // pred_fallthru
        _
      // Predicated region
      $region41: #{nerf_mlp_forward.1} parent=11 // pred_check
        %p567 = pneg %p274
      $region42: #{nerf_mlp_forward.1} parent=11 // pred_check_branch
        %569 = sbr.rel (%p567) target = $region44
      $region43: #{nerf_mlp_forward.1} parent=11 // pred_region
        _
      $region44: #{nerf_mlp_forward.1} parent=11 // pred_fallthru
        _
      // Predicated region
      $region45: #{nerf_mlp_forward.1} parent=11 // pred_check
        %p570 = pneg %p295
      $region46: #{nerf_mlp_forward.1} parent=11 // pred_check_branch
        %572 = sbr.rel (%p570) target = $region48
      $region47: #{nerf_mlp_forward.1} parent=11 // pred_region
        _
      $region48: #{nerf_mlp_forward.1} parent=11 // pred_fallthru
        _
      // Predicated region
      $region49: #{nerf_mlp_forward.1} parent=11 // pred_check
        %p573 = pneg %p316
      $region50: #{nerf_mlp_forward.1} parent=11 // pred_check_branch
        %575 = sbr.rel (%p573) target = $region52
      $region51: #{nerf_mlp_forward.1} parent=11 // pred_region
        _
      $region52: #{nerf_mlp_forward.1} parent=11 // pred_fallthru
        _
      // Predicated region
      $region53: #{nerf_mlp_forward.1} parent=11 // pred_check
        %p576 = pneg %p337
      $region54: #{nerf_mlp_forward.1} parent=11 // pred_check_branch
        %578 = sbr.rel (%p576) target = $region56
      $region55: #{nerf_mlp_forward.1} parent=11 // pred_region
        _
      $region56: #{nerf_mlp_forward.1} parent=11 // pred_fallthru
        _
      // Predicated region
      $region57: #{nerf_mlp_forward.1} parent=11 // pred_check
        %p579 = pneg %p358
      $region58: #{nerf_mlp_forward.1} parent=11 // pred_check_branch
        %581 = sbr.rel (%p579) target = $region60
      $region59: #{nerf_mlp_forward.1} parent=11 // pred_region
        _
      $region60: #{nerf_mlp_forward.1} parent=11 // pred_fallthru
        _
      // Predicated region
      $region61: #{nerf_mlp_forward.1} parent=11 // pred_check
        %p582 = pneg %p379
      $region62: #{nerf_mlp_forward.1} parent=11 // pred_check_branch
        %584 = sbr.rel (%p582) target = $region64
      $region63: #{nerf_mlp_forward.1} parent=11 // pred_region
        _
      $region64: #{nerf_mlp_forward.1} parent=11 // pred_fallthru
        _
      // Predicated region
      $region65: #{nerf_mlp_forward.1} parent=11 // pred_check
        %p585 = pneg %p400
      $region66: #{nerf_mlp_forward.1} parent=11 // pred_check_branch
        %587 = sbr.rel (%p585) target = $region68
      $region67: #{nerf_mlp_forward.1} parent=11 // pred_region
        _
      $region68: #{nerf_mlp_forward.1} parent=11 // pred_fallthru
        _
      // Predicated region
      $region69: #{nerf_mlp_forward.1} parent=11 // pred_check
        %p588 = pneg %p421
      $region70: #{nerf_mlp_forward.1} parent=11 // pred_check_branch
        %590 = sbr.rel (%p588) target = $region72
      $region71: #{nerf_mlp_forward.1} parent=11 // pred_region
        _
      $region72: #{nerf_mlp_forward.1} parent=11 // pred_fallthru
        _
      // Predicated region
      $region73: #{nerf_mlp_forward.1} parent=11 // pred_check
        %p591 = pneg %p442
      $region74: #{nerf_mlp_forward.1} parent=11 // pred_check_branch
        %593 = sbr.rel (%p591) target = $region76
      $region75: #{nerf_mlp_forward.1} parent=11 // pred_region
        _
      $region76: #{nerf_mlp_forward.1} parent=11 // pred_fallthru
        _
      // Predicated region
      $region77: #{nerf_mlp_forward.1} parent=11 // pred_check
        %p594 = pneg %p463
      $region78: #{nerf_mlp_forward.1} parent=11 // pred_check_branch
        %596 = sbr.rel (%p594) target = $region80
      $region79: #{nerf_mlp_forward.1} parent=11 // pred_region
        _
      $region80: #{nerf_mlp_forward.1} parent=11 // pred_fallthru
        _
      // Predicated region
      $region81: #{nerf_mlp_forward.1} parent=11 // pred_check
        %p597 = pneg %p484
      $region82: #{nerf_mlp_forward.1} parent=11 // pred_check_branch
        %599 = sbr.rel (%p597) target = $region84
      $region83: #{nerf_mlp_forward.1} parent=11 // pred_region
        _
      $region84: #{nerf_mlp_forward.1} parent=11 // pred_fallthru
        _
      // Predicated region
      $region85: #{nerf_mlp_forward.1} parent=11 // pred_check
        %p600 = pneg %p505
      $region86: #{nerf_mlp_forward.1} parent=11 // pred_check_branch
        %602 = sbr.rel (%p600) target = $region88
      $region87: #{nerf_mlp_forward.1} parent=11 // pred_region
        _
      $region88: #{nerf_mlp_forward.1} parent=11 // pred_fallthru
        _
    $region12: #{nerf_mlp_forward.1} parent=5 // pred_fallthru
      _
    %p603 = scmp.lt.s32.totalorder %s28, 2
    // Predicated region
    $region89: #{nerf_mlp_forward.1} parent=5 // pred_check
      %p604 = pneg %p603
    $region90: #{nerf_mlp_forward.1} parent=5 // pred_check_branch
      %606 = sbr.rel (%p604) target = $region92
    $region91: #{nerf_mlp_forward.1} parent=5 // pred_region
      // Predicated region
      $region93: #{nerf_mlp_forward.1} parent=91 // pred_check
        %p607 = pneg %p48
      $region94: #{nerf_mlp_forward.1} parent=91 // pred_check_branch
        %609 = sbr.rel (%p607) target = $region96
      $region95: #{nerf_mlp_forward.1} parent=91 // pred_region
        %s610 = smul.u32 64, %s28
        %p611 = scmp.lt.s32.totalorder %s610, 127
        %s612 = scalar_select %p611, %s610, 127
        %s613 = smul.addr %s612, 8
        %s614 = scalar_lea.vmem %s0, %s613
        %s615 = smul.u32 64, %s28
      $region96: #{nerf_mlp_forward.1} parent=91 // pred_fallthru
        _
      // Predicated region
      $region97: #{nerf_mlp_forward.1} parent=91 // pred_check
        %p616 = pneg %p74
      $region98: #{nerf_mlp_forward.1} parent=91 // pred_check_branch
        %618 = sbr.rel (%p616) target = $region100
      $region99: #{nerf_mlp_forward.1} parent=91 // pred_region
        %s619 = smul.u32 64, %s28
        %p620 = scmp.lt.s32.totalorder %s619, 127
        %s621 = scalar_select %p620, %s619, 127
        %s622 = smul.addr %s621, 8
        %s623 = scalar_lea.vmem %s1, %s622
        %s624 = smul.u32 64, %s28
      $region100: #{nerf_mlp_forward.1} parent=91 // pred_fallthru
        _
      // Predicated region
      $region101: #{nerf_mlp_forward.1} parent=91 // pred_check
        %p625 = pneg %p100
      $region102: #{nerf_mlp_forward.1} parent=91 // pred_check_branch
        %627 = sbr.rel (%p625) target = $region104
      $region103: #{nerf_mlp_forward.1} parent=91 // pred_region
        %s628 = smul.u32 64, %s28
        %p629 = scmp.lt.s32.totalorder %s628, 127
        %s630 = scalar_select %p629, %s628, 127
        %s631 = smul.addr %s630, 8
        %s632 = scalar_lea.vmem %s2, %s631
        %s633 = smul.u32 64, %s28
      $region104: #{nerf_mlp_forward.1} parent=91 // pred_fallthru
        _
    $region92: #{nerf_mlp_forward.1} parent=5 // pred_fallthru
      _
    %p634 = scmp.le.s32.totalorder 1, %s28
    %p635 = scmp.lt.s32.totalorder %s28, 3
    %p636 = pnand %p634, %p635
    %p637 = pneg %p636
    // Predicated region
    $region105: #{nerf_mlp_forward.1} parent=5 // pred_check
      _
    $region106: #{nerf_mlp_forward.1} parent=5 // pred_check_branch
      %639 = sbr.rel (%p636) target = $region108
    $region107: #{nerf_mlp_forward.1} parent=5 // pred_region
      %s640 = ssub.s32 %s28, 1
      %s641 = smul.u32 64, %s33
      %p642 = scmp.lt.s32.totalorder %s641, 127
      %s643 = scalar_select %p642, %s641, 127
      %s644 = smul.addr %s643, 8
      %s645 = scalar_lea.vmem %s0, %s644
      %p646 = pneg %p54
      %p647 = pneg %p51
      %s648 = smul.u32 64, %s33
      %p649 = scmp.lt.s32.totalorder %s648, 127
      %s650 = scalar_select %p649, %s648, 127
      %s651 = smul.addr %s650, 8
      %s652 = scalar_lea.vmem %s1, %s651
      %p653 = pneg %p80
      %p654 = pneg %p77
      %s655 = smul.u32 64, %s33
      %p656 = scmp.lt.s32.totalorder %s655, 127
      %s657 = scalar_select %p656, %s655, 127
      %s658 = smul.addr %s657, 8
      %s659 = scalar_lea.vmem %s2, %s658
      %p660 = pneg %p106
      %p661 = pneg %p103
      %p662 = pneg %p127
      %p663 = pneg %p124
      %p664 = pneg %p148
      %p665 = pneg %p145
      %p666 = pneg %p169
      %p667 = pneg %p166
      %p668 = pneg %p190
      %p669 = pneg %p187
      %p670 = pneg %p211
      %p671 = pneg %p208
      %p672 = pneg %p232
      %p673 = pneg %p229
      %p674 = pneg %p253
      %p675 = pneg %p250
      %p676 = pneg %p274
      %p677 = pneg %p271
      %p678 = pneg %p295
      %p679 = pneg %p292
      %p680 = pneg %p316
      %p681 = pneg %p313
      %p682 = pneg %p337
      %p683 = pneg %p334
      %p684 = pneg %p358
      %p685 = pneg %p355
      %p686 = pneg %p379
      %p687 = pneg %p376
      %p688 = pneg %p400
      %p689 = pneg %p397
      %p690 = pneg %p421
      %p691 = pneg %p418
      %p692 = pneg %p442
      %p693 = pneg %p439
      %p694 = pneg %p463
      %p695 = pneg %p460
      %p696 = pneg %p484
      %p697 = pneg %p481
      %p698 = pneg %p505
      %p699 = pneg %p502
      %p700 = pneg %p531
      %p701 = pneg %p528
      %s702 = smul.u32 32, %s33
      %p703 = scmp.lt.s32.totalorder %s702, 63
      %s704 = scalar_select %p703, %s702, 63
      %s705 = smul.addr %s704, 8
      %s706 = scalar_lea.vmem %s22, %s705
      %s707 = smul.u32 64, %s33
      %p708 = scmp.lt.s32.totalorder %s707, 127
      %s709 = scalar_select %p708, %s707, 127
      %s710 = smul.addr %s709, 8
      %s711 = scalar_lea.vmem %s0, %s710
      %s712 = smul.u32 64, %s33
      %s713 = smul.u32 64, %s33
      %p714 = scmp.lt.s32.totalorder %s713, 127
      %s715 = scalar_select %p714, %s713, 127
      %s716 = smul.addr %s715, 8
      %s717 = scalar_lea.vmem %s1, %s716
      %s718 = smul.u32 64, %s33
      %s719 = smul.u32 64, %s33
      %p720 = scmp.lt.s32.totalorder %s719, 127
      %s721 = scalar_select %p720, %s719, 127
      %s722 = smul.addr %s721, 8
      %s723 = scalar_lea.vmem %s2, %s722
      %s724 = smul.u32 64, %s33
      %s725 = smul.u32 32, %s33
      %p726 = scmp.lt.s32.totalorder %s725, 63
      %s727 = scalar_select %p726, %s725, 63
      %s728 = smul.addr %s727, 8
      %s729 = scalar_lea.vmem %s22, %s728
      %s730 = smul.u32 32, %s33
      %v732 = vld [vmem:[%s711] sm:$0xff]
      %v733 = vld [vmem:[%s711 + $0x8] sm:$0xff]
      %v734 = vld [vmem:[%s711 + $0x10] sm:$0xff]
      %v735 = vld [vmem:[%s711 + $0x18] sm:$0xff]
      %v736 = vld [vmem:[%s711 + $0x20] sm:$0xff]
      %v737 = vld [vmem:[%s711 + $0x28] sm:$0xff]
      %v738 = vld [vmem:[%s711 + $0x30] sm:$0xff]
      %v739 = vld [vmem:[%s711 + $0x38] sm:$0xff]
      %v740 = vld [vmem:[%s711 + $0x40] sm:$0xff]
      %v741 = vld [vmem:[%s711 + $0x48] sm:$0xff]
      %v742 = vld [vmem:[%s711 + $0x50] sm:$0xff]
      %v743 = vld [vmem:[%s711 + $0x58] sm:$0xff]
      %v744 = vld [vmem:[%s711 + $0x60] sm:$0xff]
      %v745 = vld [vmem:[%s711 + $0x68] sm:$0xff]
      %v746 = vld [vmem:[%s711 + $0x70] sm:$0xff]
      %v747 = vld [vmem:[%s711 + $0x78] sm:$0xff]
      %v748 = vld [vmem:[%s711 + $0x80] sm:$0xff]
      %v749 = vld [vmem:[%s711 + $0x88] sm:$0xff]
      %v750 = vld [vmem:[%s711 + $0x90] sm:$0xff]
      %v751 = vld [vmem:[%s711 + $0x98] sm:$0xff]
      %v752 = vld [vmem:[%s711 + $0xa0] sm:$0xff]
      %v753 = vld [vmem:[%s711 + $0xa8] sm:$0xff]
      %v754 = vld [vmem:[%s711 + $0xb0] sm:$0xff]
      %v755 = vld [vmem:[%s711 + $0xb8] sm:$0xff]
      %v756 = vld [vmem:[%s711 + $0xc0] sm:$0xff]
      %v757 = vld [vmem:[%s711 + $0xc8] sm:$0xff]
      %v758 = vld [vmem:[%s711 + $0xd0] sm:$0xff]
      %v759 = vld [vmem:[%s711 + $0xd8] sm:$0xff]
      %v760 = vld [vmem:[%s711 + $0xe0] sm:$0xff]
      %v761 = vld [vmem:[%s711 + $0xe8] sm:$0xff]
      %v762 = vld [vmem:[%s711 + $0xf0] sm:$0xff]
      %v763 = vld [vmem:[%s711 + $0xf8] sm:$0xff]
      %v764 = vld [vmem:[%s711 + $0x100] sm:$0xff]
      %v765 = vld [vmem:[%s711 + $0x108] sm:$0xff]
      %v766 = vld [vmem:[%s711 + $0x110] sm:$0xff]
      %v767 = vld [vmem:[%s711 + $0x118] sm:$0xff]
      %v768 = vld [vmem:[%s711 + $0x120] sm:$0xff]
      %v769 = vld [vmem:[%s711 + $0x128] sm:$0xff]
      %v770 = vld [vmem:[%s711 + $0x130] sm:$0xff]
      %v771 = vld [vmem:[%s711 + $0x138] sm:$0xff]
      %v772 = vld [vmem:[%s711 + $0x140] sm:$0xff]
      %v773 = vld [vmem:[%s711 + $0x148] sm:$0xff]
      %v774 = vld [vmem:[%s711 + $0x150] sm:$0xff]
      %v775 = vld [vmem:[%s711 + $0x158] sm:$0xff]
      %v776 = vld [vmem:[%s711 + $0x160] sm:$0xff]
      %v777 = vld [vmem:[%s711 + $0x168] sm:$0xff]
      %v778 = vld [vmem:[%s711 + $0x170] sm:$0xff]
      %v779 = vld [vmem:[%s711 + $0x178] sm:$0xff]
      %v780 = vld [vmem:[%s711 + $0x180] sm:$0xff]
      %v781 = vld [vmem:[%s711 + $0x188] sm:$0xff]
      %v782 = vld [vmem:[%s711 + $0x190] sm:$0xff]
      %v783 = vld [vmem:[%s711 + $0x198] sm:$0xff]
      %v784 = vld [vmem:[%s711 + $0x1a0] sm:$0xff]
      %v785 = vld [vmem:[%s711 + $0x1a8] sm:$0xff]
      %v786 = vld [vmem:[%s711 + $0x1b0] sm:$0xff]
      %v787 = vld [vmem:[%s711 + $0x1b8] sm:$0xff]
      %v788 = vld [vmem:[%s711 + $0x1c0] sm:$0xff]
      %v789 = vld [vmem:[%s711 + $0x1c8] sm:$0xff]
      %v790 = vld [vmem:[%s711 + $0x1d0] sm:$0xff]
      %v791 = vld [vmem:[%s711 + $0x1d8] sm:$0xff]
      %v792 = vld [vmem:[%s711 + $0x1e0] sm:$0xff]
      %v793 = vld [vmem:[%s711 + $0x1e8] sm:$0xff]
      %v794 = vld [vmem:[%s711 + $0x1f0] sm:$0xff]
      %v795 = vld [vmem:[%s711 + $0x1f8] sm:$0xff]
      %v796 = vpack.c.bf16 %v733, %v732
      %v797 = vpack.c.bf16 %v735, %v734
      %v798 = vpack.c.bf16 %v737, %v736
      %v799 = vpack.c.bf16 %v739, %v738
      %v800 = vpack.c.bf16 %v741, %v740
      %v801 = vpack.c.bf16 %v743, %v742
      %v802 = vpack.c.bf16 %v745, %v744
      %v803 = vpack.c.bf16 %v747, %v746
      %v804 = vpack.c.bf16 %v749, %v748
      %v805 = vpack.c.bf16 %v751, %v750
      %v806 = vpack.c.bf16 %v753, %v752
      %v807 = vpack.c.bf16 %v755, %v754
      %v808 = vpack.c.bf16 %v757, %v756
      %v809 = vpack.c.bf16 %v759, %v758
      %v810 = vpack.c.bf16 %v761, %v760
      %v811 = vpack.c.bf16 %v763, %v762
      %v812 = vpack.c.bf16 %v765, %v764
      %v813 = vpack.c.bf16 %v767, %v766
      %v814 = vpack.c.bf16 %v769, %v768
      %v815 = vpack.c.bf16 %v771, %v770
      %v816 = vpack.c.bf16 %v773, %v772
      %v817 = vpack.c.bf16 %v775, %v774
      %v818 = vpack.c.bf16 %v777, %v776
      %v819 = vpack.c.bf16 %v779, %v778
      %v820 = vpack.c.bf16 %v781, %v780
      %v821 = vpack.c.bf16 %v783, %v782
      %v822 = vpack.c.bf16 %v785, %v784
      %v823 = vpack.c.bf16 %v787, %v786
      %v824 = vpack.c.bf16 %v789, %v788
      %v825 = vpack.c.bf16 %v791, %v790
      %v826 = vpack.c.bf16 %v793, %v792
      %v827 = vpack.c.bf16 %v795, %v794
      %v828 = vld [vmem:[%s3] sm:$0xf]
      %v829 = vld [vmem:[%s3 + $0x4] sm:$0xf]
      %v830 = vld [vmem:[%s3 + $0x8] sm:$0xf]
      %v831 = vld [vmem:[%s3 + $0xc] sm:$0x3]
      %v832 = vld [vmem:[%s717] sm:$0xff]
      %v833 = vld [vmem:[%s717 + $0x8] sm:$0xff]
      %v834 = vld [vmem:[%s717 + $0x10] sm:$0xff]
      %v835 = vld [vmem:[%s717 + $0x18] sm:$0xff]
      %v836 = vld [vmem:[%s717 + $0x20] sm:$0xff]
      %v837 = vld [vmem:[%s717 + $0x28] sm:$0xff]
      %v838 = vld [vmem:[%s717 + $0x30] sm:$0xff]
      %v839 = vld [vmem:[%s717 + $0x38] sm:$0xff]
      %v840 = vld [vmem:[%s717 + $0x40] sm:$0xff]
      %v841 = vld [vmem:[%s717 + $0x48] sm:$0xff]
      %v842 = vld [vmem:[%s717 + $0x50] sm:$0xff]
      %v843 = vld [vmem:[%s717 + $0x58] sm:$0xff]
      %v844 = vld [vmem:[%s717 + $0x60] sm:$0xff]
      %v845 = vld [vmem:[%s717 + $0x68] sm:$0xff]
      %v846 = vld [vmem:[%s717 + $0x70] sm:$0xff]
      %v847 = vld [vmem:[%s717 + $0x78] sm:$0xff]
      %v848 = vld [vmem:[%s717 + $0x80] sm:$0xff]
      %v849 = vld [vmem:[%s717 + $0x88] sm:$0xff]
      %v850 = vld [vmem:[%s717 + $0x90] sm:$0xff]
      %v851 = vld [vmem:[%s717 + $0x98] sm:$0xff]
      %v852 = vld [vmem:[%s717 + $0xa0] sm:$0xff]
      %v853 = vld [vmem:[%s717 + $0xa8] sm:$0xff]
      %v854 = vld [vmem:[%s717 + $0xb0] sm:$0xff]
      %v855 = vld [vmem:[%s717 + $0xb8] sm:$0xff]
      %v856 = vld [vmem:[%s717 + $0xc0] sm:$0xff]
      %v857 = vld [vmem:[%s717 + $0xc8] sm:$0xff]
      %v858 = vld [vmem:[%s717 + $0xd0] sm:$0xff]
      %v859 = vld [vmem:[%s717 + $0xd8] sm:$0xff]
      %v860 = vld [vmem:[%s717 + $0xe0] sm:$0xff]
      %v861 = vld [vmem:[%s717 + $0xe8] sm:$0xff]
      %v862 = vld [vmem:[%s717 + $0xf0] sm:$0xff]
      %v863 = vld [vmem:[%s717 + $0xf8] sm:$0xff]
      %v864 = vld [vmem:[%s717 + $0x100] sm:$0xff]
      %v865 = vld [vmem:[%s717 + $0x108] sm:$0xff]
      %v866 = vld [vmem:[%s717 + $0x110] sm:$0xff]
      %v867 = vld [vmem:[%s717 + $0x118] sm:$0xff]
      %v868 = vld [vmem:[%s717 + $0x120] sm:$0xff]
      %v869 = vld [vmem:[%s717 + $0x128] sm:$0xff]
      %v870 = vld [vmem:[%s717 + $0x130] sm:$0xff]
      %v871 = vld [vmem:[%s717 + $0x138] sm:$0xff]
      %v872 = vld [vmem:[%s717 + $0x140] sm:$0xff]
      %v873 = vld [vmem:[%s717 + $0x148] sm:$0xff]
      %v874 = vld [vmem:[%s717 + $0x150] sm:$0xff]
      %v875 = vld [vmem:[%s717 + $0x158] sm:$0xff]
      %v876 = vld [vmem:[%s717 + $0x160] sm:$0xff]
      %v877 = vld [vmem:[%s717 + $0x168] sm:$0xff]
      %v878 = vld [vmem:[%s717 + $0x170] sm:$0xff]
      %v879 = vld [vmem:[%s717 + $0x178] sm:$0xff]
      %v880 = vld [vmem:[%s717 + $0x180] sm:$0xff]
      %v881 = vld [vmem:[%s717 + $0x188] sm:$0xff]
      %v882 = vld [vmem:[%s717 + $0x190] sm:$0xff]
      %v883 = vld [vmem:[%s717 + $0x198] sm:$0xff]
      %v884 = vld [vmem:[%s717 + $0x1a0] sm:$0xff]
      %v885 = vld [vmem:[%s717 + $0x1a8] sm:$0xff]
      %v886 = vld [vmem:[%s717 + $0x1b0] sm:$0xff]
      %v887 = vld [vmem:[%s717 + $0x1b8] sm:$0xff]
      %v888 = vld [vmem:[%s717 + $0x1c0] sm:$0xff]
      %v889 = vld [vmem:[%s717 + $0x1c8] sm:$0xff]
      %v890 = vld [vmem:[%s717 + $0x1d0] sm:$0xff]
      %v891 = vld [vmem:[%s717 + $0x1d8] sm:$0xff]
      %v892 = vld [vmem:[%s717 + $0x1e0] sm:$0xff]
      %v893 = vld [vmem:[%s717 + $0x1e8] sm:$0xff]
      %v894 = vld [vmem:[%s717 + $0x1f0] sm:$0xff]
      %v895 = vld [vmem:[%s717 + $0x1f8] sm:$0xff]
      %v896 = vpack.c.bf16 %v833, %v832
      %v897 = vpack.c.bf16 %v835, %v834
      %v898 = vpack.c.bf16 %v837, %v836
      %v899 = vpack.c.bf16 %v839, %v838
      %v900 = vpack.c.bf16 %v841, %v840
      %v901 = vpack.c.bf16 %v843, %v842
      %v902 = vpack.c.bf16 %v845, %v844
      %v903 = vpack.c.bf16 %v847, %v846
      %v904 = vpack.c.bf16 %v849, %v848
      %v905 = vpack.c.bf16 %v851, %v850
      %v906 = vpack.c.bf16 %v853, %v852
      %v907 = vpack.c.bf16 %v855, %v854
      %v908 = vpack.c.bf16 %v857, %v856
      %v909 = vpack.c.bf16 %v859, %v858
      %v910 = vpack.c.bf16 %v861, %v860
      %v911 = vpack.c.bf16 %v863, %v862
      %v912 = vpack.c.bf16 %v865, %v864
      %v913 = vpack.c.bf16 %v867, %v866
      %v914 = vpack.c.bf16 %v869, %v868
      %v915 = vpack.c.bf16 %v871, %v870
      %v916 = vpack.c.bf16 %v873, %v872
      %v917 = vpack.c.bf16 %v875, %v874
      %v918 = vpack.c.bf16 %v877, %v876
      %v919 = vpack.c.bf16 %v879, %v878
      %v920 = vpack.c.bf16 %v881, %v880
      %v921 = vpack.c.bf16 %v883, %v882
      %v922 = vpack.c.bf16 %v885, %v884
      %v923 = vpack.c.bf16 %v887, %v886
      %v924 = vpack.c.bf16 %v889, %v888
      %v925 = vpack.c.bf16 %v891, %v890
      %v926 = vpack.c.bf16 %v893, %v892
      %v927 = vpack.c.bf16 %v895, %v894
      %v928 = vld [vmem:[%s4] sm:$0xf]
      %v929 = vld [vmem:[%s4 + $0x4] sm:$0xf]
      %v930 = vld [vmem:[%s4 + $0x8] sm:$0xf]
      %v931 = vld [vmem:[%s4 + $0xc] sm:$0xf]
      %v932 = vld [vmem:[%s4 + $0x10] sm:$0xf]
      %v933 = vld [vmem:[%s4 + $0x14] sm:$0xf]
      %v934 = vld [vmem:[%s4 + $0x18] sm:$0xf]
      %v935 = vld [vmem:[%s4 + $0x1c] sm:$0xf]
      %v936 = vld [vmem:[%s4 + $0x20] sm:$0xf]
      %v937 = vld [vmem:[%s4 + $0x24] sm:$0xf]
      %v938 = vld [vmem:[%s4 + $0x28] sm:$0xf]
      %v939 = vld [vmem:[%s4 + $0x2c] sm:$0xf]
      %v940 = vld [vmem:[%s4 + $0x30] sm:$0x7]
      %v954 = vunpack.c.l.b16 %v928
      %v955 = vunpack.c.l.b16 %v929
      %v956 = vunpack.c.l.b16 %v930
      %v957 = vunpack.c.l.b16 %v931
      %v958 = vunpack.c.l.b16 %v932
      %v959 = vunpack.c.l.b16 %v933
      %v960 = vunpack.c.l.b16 %v934
      %v961 = vunpack.c.l.b16 %v935
      %v962 = vunpack.c.l.b16 %v936
      %v963 = vunpack.c.l.b16 %v937
      %v964 = vunpack.c.l.b16 %v938
      %v965 = vunpack.c.l.b16 %v939
      %v966 = vunpack.c.l.b16 %v940
      %v967 = vpack.c.b16 %v955, %v954
      %v968 = vpack.c.b16 %v957, %v956
      %v969 = vpack.c.b16 %v959, %v958
      %v970 = vpack.c.b16 %v961, %v960
      %v971 = vpack.c.b16 %v963, %v962
      %v972 = vpack.c.b16 %v965, %v964
      %v973 = vpack.c.b16 %v966, %v966
      %vm980 = vcmask 826368
      %v982 = vsel %vm980, %v896, 0
      %v985 = vsel %vm980, %v897, 0
      %v988 = vsel %vm980, %v898, 0
      %v991 = vsel %vm980, %v899, 0
      %v994 = vsel %vm980, %v900, 0
      %v997 = vsel %vm980, %v901, 0
      %v1000 = vsel %vm980, %v902, 0
      %v1003 = vsel %vm980, %v903, 0
      %v1006 = vsel %vm980, %v904, 0
      %v1009 = vsel %vm980, %v905, 0
      %v1012 = vsel %vm980, %v906, 0
      %v1015 = vsel %vm980, %v907, 0
      %v1018 = vsel %vm980, %v908, 0
      %v1021 = vsel %vm980, %v909, 0
      %v1024 = vsel %vm980, %v910, 0
      %v1027 = vsel %vm980, %v911, 0
      %v1030 = vsel %vm980, %v912, 0
      %v1033 = vsel %vm980, %v913, 0
      %v1036 = vsel %vm980, %v914, 0
      %v1039 = vsel %vm980, %v915, 0
      %v1042 = vsel %vm980, %v916, 0
      %v1045 = vsel %vm980, %v917, 0
      %v1048 = vsel %vm980, %v918, 0
      %v1051 = vsel %vm980, %v919, 0
      %v1054 = vsel %vm980, %v920, 0
      %v1057 = vsel %vm980, %v921, 0
      %v1060 = vsel %vm980, %v922, 0
      %v1063 = vsel %vm980, %v923, 0
      %v1066 = vsel %vm980, %v924, 0
      %v1069 = vsel %vm980, %v925, 0
      %v1072 = vsel %vm980, %v926, 0
      %v1075 = vsel %vm980, %v927, 0
      %vm1077 = vcmask 1041408
      %vm1078 = vcmask 1042432
      %v1079 = vsel %vm1077, 4294967295, 65535
      %v1080 = vsel %vm1078, %v1079, 0
      %v1082 = vand.u32 %v973, %v1080
      %1084 = vmatpush.bf16.msra.mxu0 0
      %1085 = vmatpush.bf16.msra.mxu0 %v1082
      %1086 = vmatpush.bf16.msra.mxu0 %v972
      %1087 = vmatpush.bf16.msra.mxu0 %v971
      %1088 = vmatpush.bf16.msra.mxu0 %v970
      %1089 = vmatpush.bf16.msra.mxu0 %v969
      %1090 = vmatpush.bf16.msra.mxu0 %v968
      %1091 = vmatpush.bf16.msra.mxu0 %v967
      %1092 = vmatmul.bf16.gmra.mxu0 %v982
      %v1093 = vpop.f32.mrf.mxu0
      %v1094 = vadd.f32 0.0, %v1093
      %v1095 = vpop.f32.mrf.mxu0
      %v1096 = vadd.f32 0.0, %v1095
      %1097 = vmatmul.bf16.gmra.mxu0 %v985
      %v1098 = vpop.f32.mrf.mxu0
      %v1099 = vadd.f32 0.0, %v1098
      %v1100 = vpop.f32.mrf.mxu0
      %v1101 = vadd.f32 0.0, %v1100
      %1102 = vmatmul.bf16.gmra.mxu0 %v988
      %v1103 = vpop.f32.mrf.mxu0
      %v1104 = vadd.f32 0.0, %v1103
      %v1105 = vpop.f32.mrf.mxu0
      %v1106 = vadd.f32 0.0, %v1105
      %1107 = vmatmul.bf16.gmra.mxu0 %v991
      %v1108 = vpop.f32.mrf.mxu0
      %v1109 = vadd.f32 0.0, %v1108
      %v1110 = vpop.f32.mrf.mxu0
      %v1111 = vadd.f32 0.0, %v1110
      %1112 = vmatmul.bf16.gmra.mxu0 %v994
      %v1113 = vpop.f32.mrf.mxu0
      %v1114 = vadd.f32 0.0, %v1113
      %v1115 = vpop.f32.mrf.mxu0
      %v1116 = vadd.f32 0.0, %v1115
      %1117 = vmatmul.bf16.gmra.mxu0 %v997
      %v1118 = vpop.f32.mrf.mxu0
      %v1119 = vadd.f32 0.0, %v1118
      %v1120 = vpop.f32.mrf.mxu0
      %v1121 = vadd.f32 0.0, %v1120
      %1122 = vmatmul.bf16.gmra.mxu0 %v1000
      %v1123 = vpop.f32.mrf.mxu0
      %v1124 = vadd.f32 0.0, %v1123
      %v1125 = vpop.f32.mrf.mxu0
      %v1126 = vadd.f32 0.0, %v1125
      %1127 = vmatmul.bf16.gmra.mxu0 %v1003
      %v1128 = vpop.f32.mrf.mxu0
      %v1129 = vadd.f32 0.0, %v1128
      %v1130 = vpop.f32.mrf.mxu0
      %v1131 = vadd.f32 0.0, %v1130
      %1132 = vmatmul.bf16.gmra.mxu0 %v1006
      %v1133 = vpop.f32.mrf.mxu0
      %v1134 = vadd.f32 0.0, %v1133
      %v1135 = vpop.f32.mrf.mxu0
      %v1136 = vadd.f32 0.0, %v1135
      %1137 = vmatmul.bf16.gmra.mxu0 %v1009
      %v1138 = vpop.f32.mrf.mxu0
      %v1139 = vadd.f32 0.0, %v1138
      %v1140 = vpop.f32.mrf.mxu0
      %v1141 = vadd.f32 0.0, %v1140
      %1142 = vmatmul.bf16.gmra.mxu0 %v1012
      %v1143 = vpop.f32.mrf.mxu0
      %v1144 = vadd.f32 0.0, %v1143
      %v1145 = vpop.f32.mrf.mxu0
      %v1146 = vadd.f32 0.0, %v1145
      %1147 = vmatmul.bf16.gmra.mxu0 %v1015
      %v1148 = vpop.f32.mrf.mxu0
      %v1149 = vadd.f32 0.0, %v1148
      %v1150 = vpop.f32.mrf.mxu0
      %v1151 = vadd.f32 0.0, %v1150
      %1152 = vmatmul.bf16.gmra.mxu0 %v1018
      %v1153 = vpop.f32.mrf.mxu0
      %v1154 = vadd.f32 0.0, %v1153
      %v1155 = vpop.f32.mrf.mxu0
      %v1156 = vadd.f32 0.0, %v1155
      %1157 = vmatmul.bf16.gmra.mxu0 %v1021
      %v1158 = vpop.f32.mrf.mxu0
      %v1159 = vadd.f32 0.0, %v1158
      %v1160 = vpop.f32.mrf.mxu0
      %v1161 = vadd.f32 0.0, %v1160
      %1162 = vmatmul.bf16.gmra.mxu0 %v1024
      %v1163 = vpop.f32.mrf.mxu0
      %v1164 = vadd.f32 0.0, %v1163
      %v1165 = vpop.f32.mrf.mxu0
      %v1166 = vadd.f32 0.0, %v1165
      %1167 = vmatmul.bf16.gmra.mxu0 %v1027
      %v1168 = vpop.f32.mrf.mxu0
      %v1169 = vadd.f32 0.0, %v1168
      %v1170 = vpop.f32.mrf.mxu0
      %v1171 = vadd.f32 0.0, %v1170
      %1172 = vmatmul.bf16.gmra.mxu0 %v1030
      %v1173 = vpop.f32.mrf.mxu0
      %v1174 = vadd.f32 0.0, %v1173
      %v1175 = vpop.f32.mrf.mxu0
      %v1176 = vadd.f32 0.0, %v1175
      %1177 = vmatmul.bf16.gmra.mxu0 %v1033
      %v1178 = vpop.f32.mrf.mxu0
      %v1179 = vadd.f32 0.0, %v1178
      %v1180 = vpop.f32.mrf.mxu0
      %v1181 = vadd.f32 0.0, %v1180
      %1182 = vmatmul.bf16.gmra.mxu0 %v1036
      %v1183 = vpop.f32.mrf.mxu0
      %v1184 = vadd.f32 0.0, %v1183
      %v1185 = vpop.f32.mrf.mxu0
      %v1186 = vadd.f32 0.0, %v1185
      %1187 = vmatmul.bf16.gmra.mxu0 %v1039
      %v1188 = vpop.f32.mrf.mxu0
      %v1189 = vadd.f32 0.0, %v1188
      %v1190 = vpop.f32.mrf.mxu0
      %v1191 = vadd.f32 0.0, %v1190
      %1192 = vmatmul.bf16.gmra.mxu0 %v1042
      %v1193 = vpop.f32.mrf.mxu0
      %v1194 = vadd.f32 0.0, %v1193
      %v1195 = vpop.f32.mrf.mxu0
      %v1196 = vadd.f32 0.0, %v1195
      %1197 = vmatmul.bf16.gmra.mxu0 %v1045
      %v1198 = vpop.f32.mrf.mxu0
      %v1199 = vadd.f32 0.0, %v1198
      %v1200 = vpop.f32.mrf.mxu0
      %v1201 = vadd.f32 0.0, %v1200
      %1202 = vmatmul.bf16.gmra.mxu0 %v1048
      %v1203 = vpop.f32.mrf.mxu0
      %v1204 = vadd.f32 0.0, %v1203
      %v1205 = vpop.f32.mrf.mxu0
      %v1206 = vadd.f32 0.0, %v1205
      %1207 = vmatmul.bf16.gmra.mxu0 %v1051
      %v1208 = vpop.f32.mrf.mxu0
      %v1209 = vadd.f32 0.0, %v1208
      %v1210 = vpop.f32.mrf.mxu0
      %v1211 = vadd.f32 0.0, %v1210
      %1212 = vmatmul.bf16.gmra.mxu0 %v1054
      %v1213 = vpop.f32.mrf.mxu0
      %v1214 = vadd.f32 0.0, %v1213
      %v1215 = vpop.f32.mrf.mxu0
      %v1216 = vadd.f32 0.0, %v1215
      %1217 = vmatmul.bf16.gmra.mxu0 %v1057
      %v1218 = vpop.f32.mrf.mxu0
      %v1219 = vadd.f32 0.0, %v1218
      %v1220 = vpop.f32.mrf.mxu0
      %v1221 = vadd.f32 0.0, %v1220
      %1222 = vmatmul.bf16.gmra.mxu0 %v1060
      %v1223 = vpop.f32.mrf.mxu0
      %v1224 = vadd.f32 0.0, %v1223
      %v1225 = vpop.f32.mrf.mxu0
      %v1226 = vadd.f32 0.0, %v1225
      %1227 = vmatmul.bf16.gmra.mxu0 %v1063
      %v1228 = vpop.f32.mrf.mxu0
      %v1229 = vadd.f32 0.0, %v1228
      %v1230 = vpop.f32.mrf.mxu0
      %v1231 = vadd.f32 0.0, %v1230
      %1232 = vmatmul.bf16.gmra.mxu0 %v1066
      %v1233 = vpop.f32.mrf.mxu0
      %v1234 = vadd.f32 0.0, %v1233
      %v1235 = vpop.f32.mrf.mxu0
      %v1236 = vadd.f32 0.0, %v1235
      %1237 = vmatmul.bf16.gmra.mxu0 %v1069
      %v1238 = vpop.f32.mrf.mxu0
      %v1239 = vadd.f32 0.0, %v1238
      %v1240 = vpop.f32.mrf.mxu0
      %v1241 = vadd.f32 0.0, %v1240
      %1242 = vmatmul.bf16.gmra.mxu0 %v1072
      %v1243 = vpop.f32.mrf.mxu0
      %v1244 = vadd.f32 0.0, %v1243
      %v1245 = vpop.f32.mrf.mxu0
      %v1246 = vadd.f32 0.0, %v1245
      %1247 = vmatmul.bf16.gmra.mxu0 %v1075
      %v1248 = vpop.f32.mrf.mxu0
      %v1249 = vadd.f32 0.0, %v1248
      %v1250 = vpop.f32.mrf.mxu0
      %v1251 = vadd.f32 0.0, %v1250
      %1252 = vdwg.mxu0
      %v1257 = vunpack.c.l.b16 %v828
      %v1258 = vunpack.c.l.b16 %v829
      %v1259 = vunpack.c.l.b16 %v830
      %v1260 = vunpack.c.l.b16 %v831
      %v1261 = vpack.c.b16 %v1258, %v1257
      %v1262 = vpack.c.b16 %v1260, %v1259
      %vm1264 = vcmask 220160
      %v1266 = vsel %vm1264, %v796, 0
      %v1269 = vsel %vm1264, %v797, 0
      %v1272 = vsel %vm1264, %v798, 0
      %v1275 = vsel %vm1264, %v799, 0
      %v1278 = vsel %vm1264, %v800, 0
      %v1281 = vsel %vm1264, %v801, 0
      %v1284 = vsel %vm1264, %v802, 0
      %v1287 = vsel %vm1264, %v803, 0
      %v1290 = vsel %vm1264, %v804, 0
      %v1293 = vsel %vm1264, %v805, 0
      %v1296 = vsel %vm1264, %v806, 0
      %v1299 = vsel %vm1264, %v807, 0
      %v1302 = vsel %vm1264, %v808, 0
      %v1305 = vsel %vm1264, %v809, 0
      %v1308 = vsel %vm1264, %v810, 0
      %v1311 = vsel %vm1264, %v811, 0
      %v1314 = vsel %vm1264, %v812, 0
      %v1317 = vsel %vm1264, %v813, 0
      %v1320 = vsel %vm1264, %v814, 0
      %v1323 = vsel %vm1264, %v815, 0
      %v1326 = vsel %vm1264, %v816, 0
      %v1329 = vsel %vm1264, %v817, 0
      %v1332 = vsel %vm1264, %v818, 0
      %v1335 = vsel %vm1264, %v819, 0
      %v1338 = vsel %vm1264, %v820, 0
      %v1341 = vsel %vm1264, %v821, 0
      %v1344 = vsel %vm1264, %v822, 0
      %v1347 = vsel %vm1264, %v823, 0
      %v1350 = vsel %vm1264, %v824, 0
      %v1353 = vsel %vm1264, %v825, 0
      %v1356 = vsel %vm1264, %v826, 0
      %v1359 = vsel %vm1264, %v827, 0
      %vm1361 = vcmask 1044480
      %vm1362 = vcmask 1045504
      %v1363 = vsel %vm1361, 4294967295, 65535
      %v1364 = vsel %vm1362, %v1363, 0
      %v1366 = vand.u32 %v1262, %v1364
      %1368 = vmatpush.bf16.msra.mxu0 0
      %1369 = vmatpush.bf16.msra.mxu0 0
      %1370 = vmatpush.bf16.msra.mxu0 0
      %1371 = vmatpush.bf16.msra.mxu0 0
      %1372 = vmatpush.bf16.msra.mxu0 0
      %1373 = vmatpush.bf16.msra.mxu0 0
      %1374 = vmatpush.bf16.msra.mxu0 %v1366
      %1375 = vmatpush.bf16.msra.mxu0 %v1261
      %1376 = vmatmul.bf16.gmra.mxu0 %v1266
      %v1377 = vpop.f32.mrf.mxu0
      %v1378 = vadd.f32 %v1094, %v1377
      %v1379 = vpop.f32.mrf.mxu0
      %v1380 = vadd.f32 %v1096, %v1379
      %1381 = vmatmul.bf16.gmra.mxu0 %v1269
      %v1382 = vpop.f32.mrf.mxu0
      %v1383 = vadd.f32 %v1099, %v1382
      %v1384 = vpop.f32.mrf.mxu0
      %v1385 = vadd.f32 %v1101, %v1384
      %1386 = vmatmul.bf16.gmra.mxu0 %v1272
      %v1387 = vpop.f32.mrf.mxu0
      %v1388 = vadd.f32 %v1104, %v1387
      %v1389 = vpop.f32.mrf.mxu0
      %v1390 = vadd.f32 %v1106, %v1389
      %1391 = vmatmul.bf16.gmra.mxu0 %v1275
      %v1392 = vpop.f32.mrf.mxu0
      %v1393 = vadd.f32 %v1109, %v1392
      %v1394 = vpop.f32.mrf.mxu0
      %v1395 = vadd.f32 %v1111, %v1394
      %1396 = vmatmul.bf16.gmra.mxu0 %v1278
      %v1397 = vpop.f32.mrf.mxu0
      %v1398 = vadd.f32 %v1114, %v1397
      %v1399 = vpop.f32.mrf.mxu0
      %v1400 = vadd.f32 %v1116, %v1399
      %1401 = vmatmul.bf16.gmra.mxu0 %v1281
      %v1402 = vpop.f32.mrf.mxu0
      %v1403 = vadd.f32 %v1119, %v1402
      %v1404 = vpop.f32.mrf.mxu0
      %v1405 = vadd.f32 %v1121, %v1404
      %1406 = vmatmul.bf16.gmra.mxu0 %v1284
      %v1407 = vpop.f32.mrf.mxu0
      %v1408 = vadd.f32 %v1124, %v1407
      %v1409 = vpop.f32.mrf.mxu0
      %v1410 = vadd.f32 %v1126, %v1409
      %1411 = vmatmul.bf16.gmra.mxu0 %v1287
      %v1412 = vpop.f32.mrf.mxu0
      %v1413 = vadd.f32 %v1129, %v1412
      %v1414 = vpop.f32.mrf.mxu0
      %v1415 = vadd.f32 %v1131, %v1414
      %1416 = vmatmul.bf16.gmra.mxu0 %v1290
      %v1417 = vpop.f32.mrf.mxu0
      %v1418 = vadd.f32 %v1134, %v1417
      %v1419 = vpop.f32.mrf.mxu0
      %v1420 = vadd.f32 %v1136, %v1419
      %1421 = vmatmul.bf16.gmra.mxu0 %v1293
      %v1422 = vpop.f32.mrf.mxu0
      %v1423 = vadd.f32 %v1139, %v1422
      %v1424 = vpop.f32.mrf.mxu0
      %v1425 = vadd.f32 %v1141, %v1424
      %1426 = vmatmul.bf16.gmra.mxu0 %v1296
      %v1427 = vpop.f32.mrf.mxu0
      %v1428 = vadd.f32 %v1144, %v1427
      %v1429 = vpop.f32.mrf.mxu0
      %v1430 = vadd.f32 %v1146, %v1429
      %1431 = vmatmul.bf16.gmra.mxu0 %v1299
      %v1432 = vpop.f32.mrf.mxu0
      %v1433 = vadd.f32 %v1149, %v1432
      %v1434 = vpop.f32.mrf.mxu0
      %v1435 = vadd.f32 %v1151, %v1434
      %1436 = vmatmul.bf16.gmra.mxu0 %v1302
      %v1437 = vpop.f32.mrf.mxu0
      %v1438 = vadd.f32 %v1154, %v1437
      %v1439 = vpop.f32.mrf.mxu0
      %v1440 = vadd.f32 %v1156, %v1439
      %1441 = vmatmul.bf16.gmra.mxu0 %v1305
      %v1442 = vpop.f32.mrf.mxu0
      %v1443 = vadd.f32 %v1159, %v1442
      %v1444 = vpop.f32.mrf.mxu0
      %v1445 = vadd.f32 %v1161, %v1444
      %1446 = vmatmul.bf16.gmra.mxu0 %v1308
      %v1447 = vpop.f32.mrf.mxu0
      %v1448 = vadd.f32 %v1164, %v1447
      %v1449 = vpop.f32.mrf.mxu0
      %v1450 = vadd.f32 %v1166, %v1449
      %1451 = vmatmul.bf16.gmra.mxu0 %v1311
      %v1452 = vpop.f32.mrf.mxu0
      %v1453 = vadd.f32 %v1169, %v1452
      %v1454 = vpop.f32.mrf.mxu0
      %v1455 = vadd.f32 %v1171, %v1454
      %1456 = vmatmul.bf16.gmra.mxu0 %v1314
      %v1457 = vpop.f32.mrf.mxu0
      %v1458 = vadd.f32 %v1174, %v1457
      %v1459 = vpop.f32.mrf.mxu0
      %v1460 = vadd.f32 %v1176, %v1459
      %1461 = vmatmul.bf16.gmra.mxu0 %v1317
      %v1462 = vpop.f32.mrf.mxu0
      %v1463 = vadd.f32 %v1179, %v1462
      %v1464 = vpop.f32.mrf.mxu0
      %v1465 = vadd.f32 %v1181, %v1464
      %1466 = vmatmul.bf16.gmra.mxu0 %v1320
      %v1467 = vpop.f32.mrf.mxu0
      %v1468 = vadd.f32 %v1184, %v1467
      %v1469 = vpop.f32.mrf.mxu0
      %v1470 = vadd.f32 %v1186, %v1469
      %1471 = vmatmul.bf16.gmra.mxu0 %v1323
      %v1472 = vpop.f32.mrf.mxu0
      %v1473 = vadd.f32 %v1189, %v1472
      %v1474 = vpop.f32.mrf.mxu0
      %v1475 = vadd.f32 %v1191, %v1474
      %1476 = vmatmul.bf16.gmra.mxu0 %v1326
      %v1477 = vpop.f32.mrf.mxu0
      %v1478 = vadd.f32 %v1194, %v1477
      %v1479 = vpop.f32.mrf.mxu0
      %v1480 = vadd.f32 %v1196, %v1479
      %1481 = vmatmul.bf16.gmra.mxu0 %v1329
      %v1482 = vpop.f32.mrf.mxu0
      %v1483 = vadd.f32 %v1199, %v1482
      %v1484 = vpop.f32.mrf.mxu0
      %v1485 = vadd.f32 %v1201, %v1484
      %1486 = vmatmul.bf16.gmra.mxu0 %v1332
      %v1487 = vpop.f32.mrf.mxu0
      %v1488 = vadd.f32 %v1204, %v1487
      %v1489 = vpop.f32.mrf.mxu0
      %v1490 = vadd.f32 %v1206, %v1489
      %1491 = vmatmul.bf16.gmra.mxu0 %v1335
      %v1492 = vpop.f32.mrf.mxu0
      %v1493 = vadd.f32 %v1209, %v1492
      %v1494 = vpop.f32.mrf.mxu0
      %v1495 = vadd.f32 %v1211, %v1494
      %1496 = vmatmul.bf16.gmra.mxu0 %v1338
      %v1497 = vpop.f32.mrf.mxu0
      %v1498 = vadd.f32 %v1214, %v1497
      %v1499 = vpop.f32.mrf.mxu0
      %v1500 = vadd.f32 %v1216, %v1499
      %1501 = vmatmul.bf16.gmra.mxu0 %v1341
      %v1502 = vpop.f32.mrf.mxu0
      %v1503 = vadd.f32 %v1219, %v1502
      %v1504 = vpop.f32.mrf.mxu0
      %v1505 = vadd.f32 %v1221, %v1504
      %1506 = vmatmul.bf16.gmra.mxu0 %v1344
      %v1507 = vpop.f32.mrf.mxu0
      %v1508 = vadd.f32 %v1224, %v1507
      %v1509 = vpop.f32.mrf.mxu0
      %v1510 = vadd.f32 %v1226, %v1509
      %1511 = vmatmul.bf16.gmra.mxu0 %v1347
      %v1512 = vpop.f32.mrf.mxu0
      %v1513 = vadd.f32 %v1229, %v1512
      %v1514 = vpop.f32.mrf.mxu0
      %v1515 = vadd.f32 %v1231, %v1514
      %1516 = vmatmul.bf16.gmra.mxu0 %v1350
      %v1517 = vpop.f32.mrf.mxu0
      %v1518 = vadd.f32 %v1234, %v1517
      %v1519 = vpop.f32.mrf.mxu0
      %v1520 = vadd.f32 %v1236, %v1519
      %1521 = vmatmul.bf16.gmra.mxu0 %v1353
      %v1522 = vpop.f32.mrf.mxu0
      %v1523 = vadd.f32 %v1239, %v1522
      %v1524 = vpop.f32.mrf.mxu0
      %v1525 = vadd.f32 %v1241, %v1524
      %1526 = vmatmul.bf16.gmra.mxu0 %v1356
      %v1527 = vpop.f32.mrf.mxu0
      %v1528 = vadd.f32 %v1244, %v1527
      %v1529 = vpop.f32.mrf.mxu0
      %v1530 = vadd.f32 %v1246, %v1529
      %1531 = vmatmul.bf16.gmra.mxu0 %v1359
      %v1532 = vpop.f32.mrf.mxu0
      %v1533 = vadd.f32 %v1249, %v1532
      %v1534 = vpop.f32.mrf.mxu0
      %v1535 = vadd.f32 %v1251, %v1534
      %1536 = vdwg.mxu0
      %v1537 = vld [vmem:[%s5] sm:$0x1]
      %v1539 = vperm.slane %v1537, 0
      %v1541 = vadd.f32 %v1378, %v1539
      %v1542 = vadd.f32 %v1380, %v1539
      %v1543 = vadd.f32 %v1383, %v1539
      %v1544 = vadd.f32 %v1385, %v1539
      %v1545 = vadd.f32 %v1388, %v1539
      %v1546 = vadd.f32 %v1390, %v1539
      %v1547 = vadd.f32 %v1393, %v1539
      %v1548 = vadd.f32 %v1395, %v1539
      %v1549 = vadd.f32 %v1398, %v1539
      %v1550 = vadd.f32 %v1400, %v1539
      %v1551 = vadd.f32 %v1403, %v1539
      %v1552 = vadd.f32 %v1405, %v1539
      %v1553 = vadd.f32 %v1408, %v1539
      %v1554 = vadd.f32 %v1410, %v1539
      %v1555 = vadd.f32 %v1413, %v1539
      %v1556 = vadd.f32 %v1415, %v1539
      %v1557 = vadd.f32 %v1418, %v1539
      %v1558 = vadd.f32 %v1420, %v1539
      %v1559 = vadd.f32 %v1423, %v1539
      %v1560 = vadd.f32 %v1425, %v1539
      %v1561 = vadd.f32 %v1428, %v1539
      %v1562 = vadd.f32 %v1430, %v1539
      %v1563 = vadd.f32 %v1433, %v1539
      %v1564 = vadd.f32 %v1435, %v1539
      %v1565 = vadd.f32 %v1438, %v1539
      %v1566 = vadd.f32 %v1440, %v1539
      %v1567 = vadd.f32 %v1443, %v1539
      %v1568 = vadd.f32 %v1445, %v1539
      %v1569 = vadd.f32 %v1448, %v1539
      %v1570 = vadd.f32 %v1450, %v1539
      %v1571 = vadd.f32 %v1453, %v1539
      %v1572 = vadd.f32 %v1455, %v1539
      %v1573 = vadd.f32 %v1458, %v1539
      %v1574 = vadd.f32 %v1460, %v1539
      %v1575 = vadd.f32 %v1463, %v1539
      %v1576 = vadd.f32 %v1465, %v1539
      %v1577 = vadd.f32 %v1468, %v1539
      %v1578 = vadd.f32 %v1470, %v1539
      %v1579 = vadd.f32 %v1473, %v1539
      %v1580 = vadd.f32 %v1475, %v1539
      %v1581 = vadd.f32 %v1478, %v1539
      %v1582 = vadd.f32 %v1480, %v1539
      %v1583 = vadd.f32 %v1483, %v1539
      %v1584 = vadd.f32 %v1485, %v1539
      %v1585 = vadd.f32 %v1488, %v1539
      %v1586 = vadd.f32 %v1490, %v1539
      %v1587 = vadd.f32 %v1493, %v1539
      %v1588 = vadd.f32 %v1495, %v1539
      %v1589 = vadd.f32 %v1498, %v1539
      %v1590 = vadd.f32 %v1500, %v1539
      %v1591 = vadd.f32 %v1503, %v1539
      %v1592 = vadd.f32 %v1505, %v1539
      %v1593 = vadd.f32 %v1508, %v1539
      %v1594 = vadd.f32 %v1510, %v1539
      %v1595 = vadd.f32 %v1513, %v1539
      %v1596 = vadd.f32 %v1515, %v1539
      %v1597 = vadd.f32 %v1518, %v1539
      %v1598 = vadd.f32 %v1520, %v1539
      %v1599 = vadd.f32 %v1523, %v1539
      %v1600 = vadd.f32 %v1525, %v1539
      %v1601 = vadd.f32 %v1528, %v1539
      %v1602 = vadd.f32 %v1530, %v1539
      %v1603 = vadd.f32 %v1533, %v1539
      %v1604 = vadd.f32 %v1535, %v1539
      %v1605 = vmax.f32 %v1541, 0.0
      %v1606 = vmax.f32 %v1542, 0.0
      %v1607 = vmax.f32 %v1543, 0.0
      %v1608 = vmax.f32 %v1544, 0.0
      %v1609 = vmax.f32 %v1545, 0.0
      %v1610 = vmax.f32 %v1546, 0.0
      %v1611 = vmax.f32 %v1547, 0.0
      %v1612 = vmax.f32 %v1548, 0.0
      %v1613 = vmax.f32 %v1549, 0.0
      %v1614 = vmax.f32 %v1550, 0.0
      %v1615 = vmax.f32 %v1551, 0.0
      %v1616 = vmax.f32 %v1552, 0.0
      %v1617 = vmax.f32 %v1553, 0.0
      %v1618 = vmax.f32 %v1554, 0.0
      %v1619 = vmax.f32 %v1555, 0.0
      %v1620 = vmax.f32 %v1556, 0.0
      %v1621 = vmax.f32 %v1557, 0.0
      %v1622 = vmax.f32 %v1558, 0.0
      %v1623 = vmax.f32 %v1559, 0.0
      %v1624 = vmax.f32 %v1560, 0.0
      %v1625 = vmax.f32 %v1561, 0.0
      %v1626 = vmax.f32 %v1562, 0.0
      %v1627 = vmax.f32 %v1563, 0.0
      %v1628 = vmax.f32 %v1564, 0.0
      %v1629 = vmax.f32 %v1565, 0.0
      %v1630 = vmax.f32 %v1566, 0.0
      %v1631 = vmax.f32 %v1567, 0.0
      %v1632 = vmax.f32 %v1568, 0.0
      %v1633 = vmax.f32 %v1569, 0.0
      %v1634 = vmax.f32 %v1570, 0.0
      %v1635 = vmax.f32 %v1571, 0.0
      %v1636 = vmax.f32 %v1572, 0.0
      %v1637 = vmax.f32 %v1573, 0.0
      %v1638 = vmax.f32 %v1574, 0.0
      %v1639 = vmax.f32 %v1575, 0.0
      %v1640 = vmax.f32 %v1576, 0.0
      %v1641 = vmax.f32 %v1577, 0.0
      %v1642 = vmax.f32 %v1578, 0.0
      %v1643 = vmax.f32 %v1579, 0.0
      %v1644 = vmax.f32 %v1580, 0.0
      %v1645 = vmax.f32 %v1581, 0.0
      %v1646 = vmax.f32 %v1582, 0.0
      %v1647 = vmax.f32 %v1583, 0.0
      %v1648 = vmax.f32 %v1584, 0.0
      %v1649 = vmax.f32 %v1585, 0.0
      %v1650 = vmax.f32 %v1586, 0.0
      %v1651 = vmax.f32 %v1587, 0.0
      %v1652 = vmax.f32 %v1588, 0.0
      %v1653 = vmax.f32 %v1589, 0.0
      %v1654 = vmax.f32 %v1590, 0.0
      %v1655 = vmax.f32 %v1591, 0.0
      %v1656 = vmax.f32 %v1592, 0.0
      %v1657 = vmax.f32 %v1593, 0.0
      %v1658 = vmax.f32 %v1594, 0.0
      %v1659 = vmax.f32 %v1595, 0.0
      %v1660 = vmax.f32 %v1596, 0.0
      %v1661 = vmax.f32 %v1597, 0.0
      %v1662 = vmax.f32 %v1598, 0.0
      %v1663 = vmax.f32 %v1599, 0.0
      %v1664 = vmax.f32 %v1600, 0.0
      %v1665 = vmax.f32 %v1601, 0.0
      %v1666 = vmax.f32 %v1602, 0.0
      %v1667 = vmax.f32 %v1603, 0.0
      %v1668 = vmax.f32 %v1604, 0.0
      %v1669 = vpack.c.bf16 %v1606, %v1605
      %v1670 = vpack.c.bf16 %v1608, %v1607
      %v1671 = vpack.c.bf16 %v1610, %v1609
      %v1672 = vpack.c.bf16 %v1612, %v1611
      %v1673 = vpack.c.bf16 %v1614, %v1613
      %v1674 = vpack.c.bf16 %v1616, %v1615
      %v1675 = vpack.c.bf16 %v1618, %v1617
      %v1676 = vpack.c.bf16 %v1620, %v1619
      %v1677 = vpack.c.bf16 %v1622, %v1621
      %v1678 = vpack.c.bf16 %v1624, %v1623
      %v1679 = vpack.c.bf16 %v1626, %v1625
      %v1680 = vpack.c.bf16 %v1628, %v1627
      %v1681 = vpack.c.bf16 %v1630, %v1629
      %v1682 = vpack.c.bf16 %v1632, %v1631
      %v1683 = vpack.c.bf16 %v1634, %v1633
      %v1684 = vpack.c.bf16 %v1636, %v1635
      %v1685 = vpack.c.bf16 %v1638, %v1637
      %v1686 = vpack.c.bf16 %v1640, %v1639
      %v1687 = vpack.c.bf16 %v1642, %v1641
      %v1688 = vpack.c.bf16 %v1644, %v1643
      %v1689 = vpack.c.bf16 %v1646, %v1645
      %v1690 = vpack.c.bf16 %v1648, %v1647
      %v1691 = vpack.c.bf16 %v1650, %v1649
      %v1692 = vpack.c.bf16 %v1652, %v1651
      %v1693 = vpack.c.bf16 %v1654, %v1653
      %v1694 = vpack.c.bf16 %v1656, %v1655
      %v1695 = vpack.c.bf16 %v1658, %v1657
      %v1696 = vpack.c.bf16 %v1660, %v1659
      %v1697 = vpack.c.bf16 %v1662, %v1661
      %v1698 = vpack.c.bf16 %v1664, %v1663
      %v1699 = vpack.c.bf16 %v1666, %v1665
      %v1700 = vpack.c.bf16 %v1668, %v1667
      %v1701 = vld [vmem:[%s6] sm:$0xf]
      %v1702 = vld [vmem:[%s6 + $0x4] sm:$0xf]
      %v1703 = vld [vmem:[%s6 + $0x8] sm:$0xf]
      %v1704 = vld [vmem:[%s6 + $0xc] sm:$0xf]
      %v1705 = vld [vmem:[%s6 + $0x10] sm:$0xf]
      %v1706 = vld [vmem:[%s6 + $0x14] sm:$0xf]
      %v1707 = vld [vmem:[%s6 + $0x18] sm:$0xf]
      %v1708 = vld [vmem:[%s6 + $0x1c] sm:$0xf]
      %v1709 = vld [vmem:[%s6 + $0x20] sm:$0xf]
      %v1710 = vld [vmem:[%s6 + $0x24] sm:$0xf]
      %v1711 = vld [vmem:[%s6 + $0x28] sm:$0xf]
      %v1712 = vld [vmem:[%s6 + $0x2c] sm:$0xf]
      %v1713 = vld [vmem:[%s6 + $0x30] sm:$0xf]
      %v1714 = vld [vmem:[%s6 + $0x34] sm:$0xf]
      %v1715 = vld [vmem:[%s6 + $0x38] sm:$0xf]
      %v1716 = vld [vmem:[%s6 + $0x3c] sm:$0xf]
      %v1717 = vld [vmem:[%s7] sm:$0x1]
      %v1719 = vperm.slane %v1717, 0
      %v1737 = vunpack.c.l.b16 %v1701
      %v1738 = vunpack.c.l.b16 %v1702
      %v1739 = vunpack.c.l.b16 %v1703
      %v1740 = vunpack.c.l.b16 %v1704
      %v1741 = vunpack.c.l.b16 %v1705
      %v1742 = vunpack.c.l.b16 %v1706
      %v1743 = vunpack.c.l.b16 %v1707
      %v1744 = vunpack.c.l.b16 %v1708
      %v1745 = vunpack.c.l.b16 %v1709
      %v1746 = vunpack.c.l.b16 %v1710
      %v1747 = vunpack.c.l.b16 %v1711
      %v1748 = vunpack.c.l.b16 %v1712
      %v1749 = vunpack.c.l.b16 %v1713
      %v1750 = vunpack.c.l.b16 %v1714
      %v1751 = vunpack.c.l.b16 %v1715
      %v1752 = vunpack.c.l.b16 %v1716
      %v1753 = vpack.c.b16 %v1738, %v1737
      %v1754 = vpack.c.b16 %v1740, %v1739
      %v1755 = vpack.c.b16 %v1742, %v1741
      %v1756 = vpack.c.b16 %v1744, %v1743
      %v1757 = vpack.c.b16 %v1746, %v1745
      %v1758 = vpack.c.b16 %v1748, %v1747
      %v1759 = vpack.c.b16 %v1750, %v1749
      %v1760 = vpack.c.b16 %v1752, %v1751
      %1769 = vmatpush.bf16.msra.mxu0 %v1760
      %1770 = vmatpush.bf16.msra.mxu0 %v1759
      %1771 = vmatpush.bf16.msra.mxu0 %v1758
      %1772 = vmatpush.bf16.msra.mxu0 %v1757
      %1773 = vmatpush.bf16.msra.mxu0 %v1756
      %1774 = vmatpush.bf16.msra.mxu0 %v1755
      %1775 = vmatpush.bf16.msra.mxu0 %v1754
      %1776 = vmatpush.bf16.msra.mxu0 %v1753
      %1777 = vmatmul.bf16.gmra.mxu0 %v1669
      %v1778 = vpop.f32.mrf.mxu0
      %v1779 = vadd.f32 %v1719, %v1778
      %v1780 = vpop.f32.mrf.mxu0
      %v1781 = vadd.f32 %v1719, %v1780
      %1782 = vmatmul.bf16.gmra.mxu0 %v1670
      %v1783 = vpop.f32.mrf.mxu0
      %v1784 = vadd.f32 %v1719, %v1783
      %v1785 = vpop.f32.mrf.mxu0
      %v1786 = vadd.f32 %v1719, %v1785
      %1787 = vmatmul.bf16.gmra.mxu0 %v1671
      %v1788 = vpop.f32.mrf.mxu0
      %v1789 = vadd.f32 %v1719, %v1788
      %v1790 = vpop.f32.mrf.mxu0
      %v1791 = vadd.f32 %v1719, %v1790
      %1792 = vmatmul.bf16.gmra.mxu0 %v1672
      %v1793 = vpop.f32.mrf.mxu0
      %v1794 = vadd.f32 %v1719, %v1793
      %v1795 = vpop.f32.mrf.mxu0
      %v1796 = vadd.f32 %v1719, %v1795
      %1797 = vmatmul.bf16.gmra.mxu0 %v1673
      %v1798 = vpop.f32.mrf.mxu0
      %v1799 = vadd.f32 %v1719, %v1798
      %v1800 = vpop.f32.mrf.mxu0
      %v1801 = vadd.f32 %v1719, %v1800
      %1802 = vmatmul.bf16.gmra.mxu0 %v1674
      %v1803 = vpop.f32.mrf.mxu0
      %v1804 = vadd.f32 %v1719, %v1803
      %v1805 = vpop.f32.mrf.mxu0
      %v1806 = vadd.f32 %v1719, %v1805
      %1807 = vmatmul.bf16.gmra.mxu0 %v1675
      %v1808 = vpop.f32.mrf.mxu0
      %v1809 = vadd.f32 %v1719, %v1808
      %v1810 = vpop.f32.mrf.mxu0
      %v1811 = vadd.f32 %v1719, %v1810
      %1812 = vmatmul.bf16.gmra.mxu0 %v1676
      %v1813 = vpop.f32.mrf.mxu0
      %v1814 = vadd.f32 %v1719, %v1813
      %v1815 = vpop.f32.mrf.mxu0
      %v1816 = vadd.f32 %v1719, %v1815
      %1817 = vmatmul.bf16.gmra.mxu0 %v1677
      %v1818 = vpop.f32.mrf.mxu0
      %v1819 = vadd.f32 %v1719, %v1818
      %v1820 = vpop.f32.mrf.mxu0
      %v1821 = vadd.f32 %v1719, %v1820
      %1822 = vmatmul.bf16.gmra.mxu0 %v1678
      %v1823 = vpop.f32.mrf.mxu0
      %v1824 = vadd.f32 %v1719, %v1823
      %v1825 = vpop.f32.mrf.mxu0
      %v1826 = vadd.f32 %v1719, %v1825
      %1827 = vmatmul.bf16.gmra.mxu0 %v1679
      %v1828 = vpop.f32.mrf.mxu0
      %v1829 = vadd.f32 %v1719, %v1828
      %v1830 = vpop.f32.mrf.mxu0
      %v1831 = vadd.f32 %v1719, %v1830
      %1832 = vmatmul.bf16.gmra.mxu0 %v1680
      %v1833 = vpop.f32.mrf.mxu0
      %v1834 = vadd.f32 %v1719, %v1833
      %v1835 = vpop.f32.mrf.mxu0
      %v1836 = vadd.f32 %v1719, %v1835
      %1837 = vmatmul.bf16.gmra.mxu0 %v1681
      %v1838 = vpop.f32.mrf.mxu0
      %v1839 = vadd.f32 %v1719, %v1838
      %v1840 = vpop.f32.mrf.mxu0
      %v1841 = vadd.f32 %v1719, %v1840
      %1842 = vmatmul.bf16.gmra.mxu0 %v1682
      %v1843 = vpop.f32.mrf.mxu0
      %v1844 = vadd.f32 %v1719, %v1843
      %v1845 = vpop.f32.mrf.mxu0
      %v1846 = vadd.f32 %v1719, %v1845
      %1847 = vmatmul.bf16.gmra.mxu0 %v1683
      %v1848 = vpop.f32.mrf.mxu0
      %v1849 = vadd.f32 %v1719, %v1848
      %v1850 = vpop.f32.mrf.mxu0
      %v1851 = vadd.f32 %v1719, %v1850
      %1852 = vmatmul.bf16.gmra.mxu0 %v1684
      %v1853 = vpop.f32.mrf.mxu0
      %v1854 = vadd.f32 %v1719, %v1853
      %v1855 = vpop.f32.mrf.mxu0
      %v1856 = vadd.f32 %v1719, %v1855
      %1857 = vmatmul.bf16.gmra.mxu0 %v1685
      %v1858 = vpop.f32.mrf.mxu0
      %v1859 = vadd.f32 %v1719, %v1858
      %v1860 = vpop.f32.mrf.mxu0
      %v1861 = vadd.f32 %v1719, %v1860
      %1862 = vmatmul.bf16.gmra.mxu0 %v1686
      %v1863 = vpop.f32.mrf.mxu0
      %v1864 = vadd.f32 %v1719, %v1863
      %v1865 = vpop.f32.mrf.mxu0
      %v1866 = vadd.f32 %v1719, %v1865
      %1867 = vmatmul.bf16.gmra.mxu0 %v1687
      %v1868 = vpop.f32.mrf.mxu0
      %v1869 = vadd.f32 %v1719, %v1868
      %v1870 = vpop.f32.mrf.mxu0
      %v1871 = vadd.f32 %v1719, %v1870
      %1872 = vmatmul.bf16.gmra.mxu0 %v1688
      %v1873 = vpop.f32.mrf.mxu0
      %v1874 = vadd.f32 %v1719, %v1873
      %v1875 = vpop.f32.mrf.mxu0
      %v1876 = vadd.f32 %v1719, %v1875
      %1877 = vmatmul.bf16.gmra.mxu0 %v1689
      %v1878 = vpop.f32.mrf.mxu0
      %v1879 = vadd.f32 %v1719, %v1878
      %v1880 = vpop.f32.mrf.mxu0
      %v1881 = vadd.f32 %v1719, %v1880
      %1882 = vmatmul.bf16.gmra.mxu0 %v1690
      %v1883 = vpop.f32.mrf.mxu0
      %v1884 = vadd.f32 %v1719, %v1883
      %v1885 = vpop.f32.mrf.mxu0
      %v1886 = vadd.f32 %v1719, %v1885
      %1887 = vmatmul.bf16.gmra.mxu0 %v1691
      %v1888 = vpop.f32.mrf.mxu0
      %v1889 = vadd.f32 %v1719, %v1888
      %v1890 = vpop.f32.mrf.mxu0
      %v1891 = vadd.f32 %v1719, %v1890
      %1892 = vmatmul.bf16.gmra.mxu0 %v1692
      %v1893 = vpop.f32.mrf.mxu0
      %v1894 = vadd.f32 %v1719, %v1893
      %v1895 = vpop.f32.mrf.mxu0
      %v1896 = vadd.f32 %v1719, %v1895
      %1897 = vmatmul.bf16.gmra.mxu0 %v1693
      %v1898 = vpop.f32.mrf.mxu0
      %v1899 = vadd.f32 %v1719, %v1898
      %v1900 = vpop.f32.mrf.mxu0
      %v1901 = vadd.f32 %v1719, %v1900
      %1902 = vmatmul.bf16.gmra.mxu0 %v1694
      %v1903 = vpop.f32.mrf.mxu0
      %v1904 = vadd.f32 %v1719, %v1903
      %v1905 = vpop.f32.mrf.mxu0
      %v1906 = vadd.f32 %v1719, %v1905
      %1907 = vmatmul.bf16.gmra.mxu0 %v1695
      %v1908 = vpop.f32.mrf.mxu0
      %v1909 = vadd.f32 %v1719, %v1908
      %v1910 = vpop.f32.mrf.mxu0
      %v1911 = vadd.f32 %v1719, %v1910
      %1912 = vmatmul.bf16.gmra.mxu0 %v1696
      %v1913 = vpop.f32.mrf.mxu0
      %v1914 = vadd.f32 %v1719, %v1913
      %v1915 = vpop.f32.mrf.mxu0
      %v1916 = vadd.f32 %v1719, %v1915
      %1917 = vmatmul.bf16.gmra.mxu0 %v1697
      %v1918 = vpop.f32.mrf.mxu0
      %v1919 = vadd.f32 %v1719, %v1918
      %v1920 = vpop.f32.mrf.mxu0
      %v1921 = vadd.f32 %v1719, %v1920
      %1922 = vmatmul.bf16.gmra.mxu0 %v1698
      %v1923 = vpop.f32.mrf.mxu0
      %v1924 = vadd.f32 %v1719, %v1923
      %v1925 = vpop.f32.mrf.mxu0
      %v1926 = vadd.f32 %v1719, %v1925
      %1927 = vmatmul.bf16.gmra.mxu0 %v1699
      %v1928 = vpop.f32.mrf.mxu0
      %v1929 = vadd.f32 %v1719, %v1928
      %v1930 = vpop.f32.mrf.mxu0
      %v1931 = vadd.f32 %v1719, %v1930
      %1932 = vmatmul.bf16.gmra.mxu0 %v1700
      %v1933 = vpop.f32.mrf.mxu0
      %v1934 = vadd.f32 %v1719, %v1933
      %v1935 = vpop.f32.mrf.mxu0
      %v1936 = vadd.f32 %v1719, %v1935
      %1937 = vdwg.mxu0
      %v1938 = vmax.f32 %v1779, 0.0
      %v1939 = vmax.f32 %v1781, 0.0
      %v1940 = vmax.f32 %v1784, 0.0
      %v1941 = vmax.f32 %v1786, 0.0
      %v1942 = vmax.f32 %v1789, 0.0
      %v1943 = vmax.f32 %v1791, 0.0
      %v1944 = vmax.f32 %v1794, 0.0
      %v1945 = vmax.f32 %v1796, 0.0
      %v1946 = vmax.f32 %v1799, 0.0
      %v1947 = vmax.f32 %v1801, 0.0
      %v1948 = vmax.f32 %v1804, 0.0
      %v1949 = vmax.f32 %v1806, 0.0
      %v1950 = vmax.f32 %v1809, 0.0
      %v1951 = vmax.f32 %v1811, 0.0
      %v1952 = vmax.f32 %v1814, 0.0
      %v1953 = vmax.f32 %v1816, 0.0
      %v1954 = vmax.f32 %v1819, 0.0
      %v1955 = vmax.f32 %v1821, 0.0
      %v1956 = vmax.f32 %v1824, 0.0
      %v1957 = vmax.f32 %v1826, 0.0
      %v1958 = vmax.f32 %v1829, 0.0
      %v1959 = vmax.f32 %v1831, 0.0
      %v1960 = vmax.f32 %v1834, 0.0
      %v1961 = vmax.f32 %v1836, 0.0
      %v1962 = vmax.f32 %v1839, 0.0
      %v1963 = vmax.f32 %v1841, 0.0
      %v1964 = vmax.f32 %v1844, 0.0
      %v1965 = vmax.f32 %v1846, 0.0
      %v1966 = vmax.f32 %v1849, 0.0
      %v1967 = vmax.f32 %v1851, 0.0
      %v1968 = vmax.f32 %v1854, 0.0
      %v1969 = vmax.f32 %v1856, 0.0
      %v1970 = vmax.f32 %v1859, 0.0
      %v1971 = vmax.f32 %v1861, 0.0
      %v1972 = vmax.f32 %v1864, 0.0
      %v1973 = vmax.f32 %v1866, 0.0
      %v1974 = vmax.f32 %v1869, 0.0
      %v1975 = vmax.f32 %v1871, 0.0
      %v1976 = vmax.f32 %v1874, 0.0
      %v1977 = vmax.f32 %v1876, 0.0
      %v1978 = vmax.f32 %v1879, 0.0
      %v1979 = vmax.f32 %v1881, 0.0
      %v1980 = vmax.f32 %v1884, 0.0
      %v1981 = vmax.f32 %v1886, 0.0
      %v1982 = vmax.f32 %v1889, 0.0
      %v1983 = vmax.f32 %v1891, 0.0
      %v1984 = vmax.f32 %v1894, 0.0
      %v1985 = vmax.f32 %v1896, 0.0
      %v1986 = vmax.f32 %v1899, 0.0
      %v1987 = vmax.f32 %v1901, 0.0
      %v1988 = vmax.f32 %v1904, 0.0
      %v1989 = vmax.f32 %v1906, 0.0
      %v1990 = vmax.f32 %v1909, 0.0
      %v1991 = vmax.f32 %v1911, 0.0
      %v1992 = vmax.f32 %v1914, 0.0
      %v1993 = vmax.f32 %v1916, 0.0
      %v1994 = vmax.f32 %v1919, 0.0
      %v1995 = vmax.f32 %v1921, 0.0
      %v1996 = vmax.f32 %v1924, 0.0
      %v1997 = vmax.f32 %v1926, 0.0
      %v1998 = vmax.f32 %v1929, 0.0
      %v1999 = vmax.f32 %v1931, 0.0
      %v2000 = vmax.f32 %v1934, 0.0
      %v2001 = vmax.f32 %v1936, 0.0
      %v2002 = vpack.c.bf16 %v1939, %v1938
      %v2003 = vpack.c.bf16 %v1941, %v1940
      %v2004 = vpack.c.bf16 %v1943, %v1942
      %v2005 = vpack.c.bf16 %v1945, %v1944
      %v2006 = vpack.c.bf16 %v1947, %v1946
      %v2007 = vpack.c.bf16 %v1949, %v1948
      %v2008 = vpack.c.bf16 %v1951, %v1950
      %v2009 = vpack.c.bf16 %v1953, %v1952
      %v2010 = vpack.c.bf16 %v1955, %v1954
      %v2011 = vpack.c.bf16 %v1957, %v1956
      %v2012 = vpack.c.bf16 %v1959, %v1958
      %v2013 = vpack.c.bf16 %v1961, %v1960
      %v2014 = vpack.c.bf16 %v1963, %v1962
      %v2015 = vpack.c.bf16 %v1965, %v1964
      %v2016 = vpack.c.bf16 %v1967, %v1966
      %v2017 = vpack.c.bf16 %v1969, %v1968
      %v2018 = vpack.c.bf16 %v1971, %v1970
      %v2019 = vpack.c.bf16 %v1973, %v1972
      %v2020 = vpack.c.bf16 %v1975, %v1974
      %v2021 = vpack.c.bf16 %v1977, %v1976
      %v2022 = vpack.c.bf16 %v1979, %v1978
      %v2023 = vpack.c.bf16 %v1981, %v1980
      %v2024 = vpack.c.bf16 %v1983, %v1982
      %v2025 = vpack.c.bf16 %v1985, %v1984
      %v2026 = vpack.c.bf16 %v1987, %v1986
      %v2027 = vpack.c.bf16 %v1989, %v1988
      %v2028 = vpack.c.bf16 %v1991, %v1990
      %v2029 = vpack.c.bf16 %v1993, %v1992
      %v2030 = vpack.c.bf16 %v1995, %v1994
      %v2031 = vpack.c.bf16 %v1997, %v1996
      %v2032 = vpack.c.bf16 %v1999, %v1998
      %v2033 = vpack.c.bf16 %v2001, %v2000
      %v2034 = vld [vmem:[%s8] sm:$0xf]
      %v2035 = vld [vmem:[%s8 + $0x4] sm:$0xf]
      %v2036 = vld [vmem:[%s8 + $0x8] sm:$0xf]
      %v2037 = vld [vmem:[%s8 + $0xc] sm:$0xf]
      %v2038 = vld [vmem:[%s8 + $0x10] sm:$0xf]
      %v2039 = vld [vmem:[%s8 + $0x14] sm:$0xf]
      %v2040 = vld [vmem:[%s8 + $0x18] sm:$0xf]
      %v2041 = vld [vmem:[%s8 + $0x1c] sm:$0xf]
      %v2042 = vld [vmem:[%s8 + $0x20] sm:$0xf]
      %v2043 = vld [vmem:[%s8 + $0x24] sm:$0xf]
      %v2044 = vld [vmem:[%s8 + $0x28] sm:$0xf]
      %v2045 = vld [vmem:[%s8 + $0x2c] sm:$0xf]
      %v2046 = vld [vmem:[%s8 + $0x30] sm:$0xf]
      %v2047 = vld [vmem:[%s8 + $0x34] sm:$0xf]
      %v2048 = vld [vmem:[%s8 + $0x38] sm:$0xf]
      %v2049 = vld [vmem:[%s8 + $0x3c] sm:$0xf]
      %v2050 = vld [vmem:[%s9] sm:$0x1]
      %v2052 = vperm.slane %v2050, 0
      %v2070 = vunpack.c.l.b16 %v2034
      %v2071 = vunpack.c.l.b16 %v2035
      %v2072 = vunpack.c.l.b16 %v2036
      %v2073 = vunpack.c.l.b16 %v2037
      %v2074 = vunpack.c.l.b16 %v2038
      %v2075 = vunpack.c.l.b16 %v2039
      %v2076 = vunpack.c.l.b16 %v2040
      %v2077 = vunpack.c.l.b16 %v2041
      %v2078 = vunpack.c.l.b16 %v2042
      %v2079 = vunpack.c.l.b16 %v2043
      %v2080 = vunpack.c.l.b16 %v2044
      %v2081 = vunpack.c.l.b16 %v2045
      %v2082 = vunpack.c.l.b16 %v2046
      %v2083 = vunpack.c.l.b16 %v2047
      %v2084 = vunpack.c.l.b16 %v2048
      %v2085 = vunpack.c.l.b16 %v2049
      %v2086 = vpack.c.b16 %v2071, %v2070
      %v2087 = vpack.c.b16 %v2073, %v2072
      %v2088 = vpack.c.b16 %v2075, %v2074
      %v2089 = vpack.c.b16 %v2077, %v2076
      %v2090 = vpack.c.b16 %v2079, %v2078
      %v2091 = vpack.c.b16 %v2081, %v2080
      %v2092 = vpack.c.b16 %v2083, %v2082
      %v2093 = vpack.c.b16 %v2085, %v2084
      %2102 = vmatpush.bf16.msra.mxu0 %v2093
      %2103 = vmatpush.bf16.msra.mxu0 %v2092
      %2104 = vmatpush.bf16.msra.mxu0 %v2091
      %2105 = vmatpush.bf16.msra.mxu0 %v2090
      %2106 = vmatpush.bf16.msra.mxu0 %v2089
      %2107 = vmatpush.bf16.msra.mxu0 %v2088
      %2108 = vmatpush.bf16.msra.mxu0 %v2087
      %2109 = vmatpush.bf16.msra.mxu0 %v2086
      %2110 = vmatmul.bf16.gmra.mxu0 %v2002
      %v2111 = vpop.f32.mrf.mxu0
      %v2112 = vadd.f32 %v2052, %v2111
      %v2113 = vpop.f32.mrf.mxu0
      %v2114 = vadd.f32 %v2052, %v2113
      %2115 = vmatmul.bf16.gmra.mxu0 %v2003
      %v2116 = vpop.f32.mrf.mxu0
      %v2117 = vadd.f32 %v2052, %v2116
      %v2118 = vpop.f32.mrf.mxu0
      %v2119 = vadd.f32 %v2052, %v2118
      %2120 = vmatmul.bf16.gmra.mxu0 %v2004
      %v2121 = vpop.f32.mrf.mxu0
      %v2122 = vadd.f32 %v2052, %v2121
      %v2123 = vpop.f32.mrf.mxu0
      %v2124 = vadd.f32 %v2052, %v2123
      %2125 = vmatmul.bf16.gmra.mxu0 %v2005
      %v2126 = vpop.f32.mrf.mxu0
      %v2127 = vadd.f32 %v2052, %v2126
      %v2128 = vpop.f32.mrf.mxu0
      %v2129 = vadd.f32 %v2052, %v2128
      %2130 = vmatmul.bf16.gmra.mxu0 %v2006
      %v2131 = vpop.f32.mrf.mxu0
      %v2132 = vadd.f32 %v2052, %v2131
      %v2133 = vpop.f32.mrf.mxu0
      %v2134 = vadd.f32 %v2052, %v2133
      %2135 = vmatmul.bf16.gmra.mxu0 %v2007
      %v2136 = vpop.f32.mrf.mxu0
      %v2137 = vadd.f32 %v2052, %v2136
      %v2138 = vpop.f32.mrf.mxu0
      %v2139 = vadd.f32 %v2052, %v2138
      %2140 = vmatmul.bf16.gmra.mxu0 %v2008
      %v2141 = vpop.f32.mrf.mxu0
      %v2142 = vadd.f32 %v2052, %v2141
      %v2143 = vpop.f32.mrf.mxu0
      %v2144 = vadd.f32 %v2052, %v2143
      %2145 = vmatmul.bf16.gmra.mxu0 %v2009
      %v2146 = vpop.f32.mrf.mxu0
      %v2147 = vadd.f32 %v2052, %v2146
      %v2148 = vpop.f32.mrf.mxu0
      %v2149 = vadd.f32 %v2052, %v2148
      %2150 = vmatmul.bf16.gmra.mxu0 %v2010
      %v2151 = vpop.f32.mrf.mxu0
      %v2152 = vadd.f32 %v2052, %v2151
      %v2153 = vpop.f32.mrf.mxu0
      %v2154 = vadd.f32 %v2052, %v2153
      %2155 = vmatmul.bf16.gmra.mxu0 %v2011
      %v2156 = vpop.f32.mrf.mxu0
      %v2157 = vadd.f32 %v2052, %v2156
      %v2158 = vpop.f32.mrf.mxu0
      %v2159 = vadd.f32 %v2052, %v2158
      %2160 = vmatmul.bf16.gmra.mxu0 %v2012
      %v2161 = vpop.f32.mrf.mxu0
      %v2162 = vadd.f32 %v2052, %v2161
      %v2163 = vpop.f32.mrf.mxu0
      %v2164 = vadd.f32 %v2052, %v2163
      %2165 = vmatmul.bf16.gmra.mxu0 %v2013
      %v2166 = vpop.f32.mrf.mxu0
      %v2167 = vadd.f32 %v2052, %v2166
      %v2168 = vpop.f32.mrf.mxu0
      %v2169 = vadd.f32 %v2052, %v2168
      %2170 = vmatmul.bf16.gmra.mxu0 %v2014
      %v2171 = vpop.f32.mrf.mxu0
      %v2172 = vadd.f32 %v2052, %v2171
      %v2173 = vpop.f32.mrf.mxu0
      %v2174 = vadd.f32 %v2052, %v2173
      %2175 = vmatmul.bf16.gmra.mxu0 %v2015
      %v2176 = vpop.f32.mrf.mxu0
      %v2177 = vadd.f32 %v2052, %v2176
      %v2178 = vpop.f32.mrf.mxu0
      %v2179 = vadd.f32 %v2052, %v2178
      %2180 = vmatmul.bf16.gmra.mxu0 %v2016
      %v2181 = vpop.f32.mrf.mxu0
      %v2182 = vadd.f32 %v2052, %v2181
      %v2183 = vpop.f32.mrf.mxu0
      %v2184 = vadd.f32 %v2052, %v2183
      %2185 = vmatmul.bf16.gmra.mxu0 %v2017
      %v2186 = vpop.f32.mrf.mxu0
      %v2187 = vadd.f32 %v2052, %v2186
      %v2188 = vpop.f32.mrf.mxu0
      %v2189 = vadd.f32 %v2052, %v2188
      %2190 = vmatmul.bf16.gmra.mxu0 %v2018
      %v2191 = vpop.f32.mrf.mxu0
      %v2192 = vadd.f32 %v2052, %v2191
      %v2193 = vpop.f32.mrf.mxu0
      %v2194 = vadd.f32 %v2052, %v2193
      %2195 = vmatmul.bf16.gmra.mxu0 %v2019
      %v2196 = vpop.f32.mrf.mxu0
      %v2197 = vadd.f32 %v2052, %v2196
      %v2198 = vpop.f32.mrf.mxu0
      %v2199 = vadd.f32 %v2052, %v2198
      %2200 = vmatmul.bf16.gmra.mxu0 %v2020
      %v2201 = vpop.f32.mrf.mxu0
      %v2202 = vadd.f32 %v2052, %v2201
      %v2203 = vpop.f32.mrf.mxu0
      %v2204 = vadd.f32 %v2052, %v2203
      %2205 = vmatmul.bf16.gmra.mxu0 %v2021
      %v2206 = vpop.f32.mrf.mxu0
      %v2207 = vadd.f32 %v2052, %v2206
      %v2208 = vpop.f32.mrf.mxu0
      %v2209 = vadd.f32 %v2052, %v2208
      %2210 = vmatmul.bf16.gmra.mxu0 %v2022
      %v2211 = vpop.f32.mrf.mxu0
      %v2212 = vadd.f32 %v2052, %v2211
      %v2213 = vpop.f32.mrf.mxu0
      %v2214 = vadd.f32 %v2052, %v2213
      %2215 = vmatmul.bf16.gmra.mxu0 %v2023
      %v2216 = vpop.f32.mrf.mxu0
      %v2217 = vadd.f32 %v2052, %v2216
      %v2218 = vpop.f32.mrf.mxu0
      %v2219 = vadd.f32 %v2052, %v2218
      %2220 = vmatmul.bf16.gmra.mxu0 %v2024
      %v2221 = vpop.f32.mrf.mxu0
      %v2222 = vadd.f32 %v2052, %v2221
      %v2223 = vpop.f32.mrf.mxu0
      %v2224 = vadd.f32 %v2052, %v2223
      %2225 = vmatmul.bf16.gmra.mxu0 %v2025
      %v2226 = vpop.f32.mrf.mxu0
      %v2227 = vadd.f32 %v2052, %v2226
      %v2228 = vpop.f32.mrf.mxu0
      %v2229 = vadd.f32 %v2052, %v2228
      %2230 = vmatmul.bf16.gmra.mxu0 %v2026
      %v2231 = vpop.f32.mrf.mxu0
      %v2232 = vadd.f32 %v2052, %v2231
      %v2233 = vpop.f32.mrf.mxu0
      %v2234 = vadd.f32 %v2052, %v2233
      %2235 = vmatmul.bf16.gmra.mxu0 %v2027
      %v2236 = vpop.f32.mrf.mxu0
      %v2237 = vadd.f32 %v2052, %v2236
      %v2238 = vpop.f32.mrf.mxu0
      %v2239 = vadd.f32 %v2052, %v2238
      %2240 = vmatmul.bf16.gmra.mxu0 %v2028
      %v2241 = vpop.f32.mrf.mxu0
      %v2242 = vadd.f32 %v2052, %v2241
      %v2243 = vpop.f32.mrf.mxu0
      %v2244 = vadd.f32 %v2052, %v2243
      %2245 = vmatmul.bf16.gmra.mxu0 %v2029
      %v2246 = vpop.f32.mrf.mxu0
      %v2247 = vadd.f32 %v2052, %v2246
      %v2248 = vpop.f32.mrf.mxu0
      %v2249 = vadd.f32 %v2052, %v2248
      %2250 = vmatmul.bf16.gmra.mxu0 %v2030
      %v2251 = vpop.f32.mrf.mxu0
      %v2252 = vadd.f32 %v2052, %v2251
      %v2253 = vpop.f32.mrf.mxu0
      %v2254 = vadd.f32 %v2052, %v2253
      %2255 = vmatmul.bf16.gmra.mxu0 %v2031
      %v2256 = vpop.f32.mrf.mxu0
      %v2257 = vadd.f32 %v2052, %v2256
      %v2258 = vpop.f32.mrf.mxu0
      %v2259 = vadd.f32 %v2052, %v2258
      %2260 = vmatmul.bf16.gmra.mxu0 %v2032
      %v2261 = vpop.f32.mrf.mxu0
      %v2262 = vadd.f32 %v2052, %v2261
      %v2263 = vpop.f32.mrf.mxu0
      %v2264 = vadd.f32 %v2052, %v2263
      %2265 = vmatmul.bf16.gmra.mxu0 %v2033
      %v2266 = vpop.f32.mrf.mxu0
      %v2267 = vadd.f32 %v2052, %v2266
      %v2268 = vpop.f32.mrf.mxu0
      %v2269 = vadd.f32 %v2052, %v2268
      %2270 = vdwg.mxu0
      %v2271 = vmax.f32 %v2112, 0.0
      %v2272 = vmax.f32 %v2114, 0.0
      %v2273 = vmax.f32 %v2117, 0.0
      %v2274 = vmax.f32 %v2119, 0.0
      %v2275 = vmax.f32 %v2122, 0.0
      %v2276 = vmax.f32 %v2124, 0.0
      %v2277 = vmax.f32 %v2127, 0.0
      %v2278 = vmax.f32 %v2129, 0.0
      %v2279 = vmax.f32 %v2132, 0.0
      %v2280 = vmax.f32 %v2134, 0.0
      %v2281 = vmax.f32 %v2137, 0.0
      %v2282 = vmax.f32 %v2139, 0.0
      %v2283 = vmax.f32 %v2142, 0.0
      %v2284 = vmax.f32 %v2144, 0.0
      %v2285 = vmax.f32 %v2147, 0.0
      %v2286 = vmax.f32 %v2149, 0.0
      %v2287 = vmax.f32 %v2152, 0.0
      %v2288 = vmax.f32 %v2154, 0.0
      %v2289 = vmax.f32 %v2157, 0.0
      %v2290 = vmax.f32 %v2159, 0.0
      %v2291 = vmax.f32 %v2162, 0.0
      %v2292 = vmax.f32 %v2164, 0.0
      %v2293 = vmax.f32 %v2167, 0.0
      %v2294 = vmax.f32 %v2169, 0.0
      %v2295 = vmax.f32 %v2172, 0.0
      %v2296 = vmax.f32 %v2174, 0.0
      %v2297 = vmax.f32 %v2177, 0.0
      %v2298 = vmax.f32 %v2179, 0.0
      %v2299 = vmax.f32 %v2182, 0.0
      %v2300 = vmax.f32 %v2184, 0.0
      %v2301 = vmax.f32 %v2187, 0.0
      %v2302 = vmax.f32 %v2189, 0.0
      %v2303 = vmax.f32 %v2192, 0.0
      %v2304 = vmax.f32 %v2194, 0.0
      %v2305 = vmax.f32 %v2197, 0.0
      %v2306 = vmax.f32 %v2199, 0.0
      %v2307 = vmax.f32 %v2202, 0.0
      %v2308 = vmax.f32 %v2204, 0.0
      %v2309 = vmax.f32 %v2207, 0.0
      %v2310 = vmax.f32 %v2209, 0.0
      %v2311 = vmax.f32 %v2212, 0.0
      %v2312 = vmax.f32 %v2214, 0.0
      %v2313 = vmax.f32 %v2217, 0.0
      %v2314 = vmax.f32 %v2219, 0.0
      %v2315 = vmax.f32 %v2222, 0.0
      %v2316 = vmax.f32 %v2224, 0.0
      %v2317 = vmax.f32 %v2227, 0.0
      %v2318 = vmax.f32 %v2229, 0.0
      %v2319 = vmax.f32 %v2232, 0.0
      %v2320 = vmax.f32 %v2234, 0.0
      %v2321 = vmax.f32 %v2237, 0.0
      %v2322 = vmax.f32 %v2239, 0.0
      %v2323 = vmax.f32 %v2242, 0.0
      %v2324 = vmax.f32 %v2244, 0.0
      %v2325 = vmax.f32 %v2247, 0.0
      %v2326 = vmax.f32 %v2249, 0.0
      %v2327 = vmax.f32 %v2252, 0.0
      %v2328 = vmax.f32 %v2254, 0.0
      %v2329 = vmax.f32 %v2257, 0.0
      %v2330 = vmax.f32 %v2259, 0.0
      %v2331 = vmax.f32 %v2262, 0.0
      %v2332 = vmax.f32 %v2264, 0.0
      %v2333 = vmax.f32 %v2267, 0.0
      %v2334 = vmax.f32 %v2269, 0.0
      %v2335 = vpack.c.bf16 %v2272, %v2271
      %v2336 = vpack.c.bf16 %v2274, %v2273
      %v2337 = vpack.c.bf16 %v2276, %v2275
      %v2338 = vpack.c.bf16 %v2278, %v2277
      %v2339 = vpack.c.bf16 %v2280, %v2279
      %v2340 = vpack.c.bf16 %v2282, %v2281
      %v2341 = vpack.c.bf16 %v2284, %v2283
      %v2342 = vpack.c.bf16 %v2286, %v2285
      %v2343 = vpack.c.bf16 %v2288, %v2287
      %v2344 = vpack.c.bf16 %v2290, %v2289
      %v2345 = vpack.c.bf16 %v2292, %v2291
      %v2346 = vpack.c.bf16 %v2294, %v2293
      %v2347 = vpack.c.bf16 %v2296, %v2295
      %v2348 = vpack.c.bf16 %v2298, %v2297
      %v2349 = vpack.c.bf16 %v2300, %v2299
      %v2350 = vpack.c.bf16 %v2302, %v2301
      %v2351 = vpack.c.bf16 %v2304, %v2303
      %v2352 = vpack.c.bf16 %v2306, %v2305
      %v2353 = vpack.c.bf16 %v2308, %v2307
      %v2354 = vpack.c.bf16 %v2310, %v2309
      %v2355 = vpack.c.bf16 %v2312, %v2311
      %v2356 = vpack.c.bf16 %v2314, %v2313
      %v2357 = vpack.c.bf16 %v2316, %v2315
      %v2358 = vpack.c.bf16 %v2318, %v2317
      %v2359 = vpack.c.bf16 %v2320, %v2319
      %v2360 = vpack.c.bf16 %v2322, %v2321
      %v2361 = vpack.c.bf16 %v2324, %v2323
      %v2362 = vpack.c.bf16 %v2326, %v2325
      %v2363 = vpack.c.bf16 %v2328, %v2327
      %v2364 = vpack.c.bf16 %v2330, %v2329
      %v2365 = vpack.c.bf16 %v2332, %v2331
      %v2366 = vpack.c.bf16 %v2334, %v2333
      %v2367 = vld [vmem:[%s10] sm:$0xf]
      %v2368 = vld [vmem:[%s10 + $0x4] sm:$0xf]
      %v2369 = vld [vmem:[%s10 + $0x8] sm:$0xf]
      %v2370 = vld [vmem:[%s10 + $0xc] sm:$0xf]
      %v2371 = vld [vmem:[%s10 + $0x10] sm:$0xf]
      %v2372 = vld [vmem:[%s10 + $0x14] sm:$0xf]
      %v2373 = vld [vmem:[%s10 + $0x18] sm:$0xf]
      %v2374 = vld [vmem:[%s10 + $0x1c] sm:$0xf]
      %v2375 = vld [vmem:[%s10 + $0x20] sm:$0xf]
      %v2376 = vld [vmem:[%s10 + $0x24] sm:$0xf]
      %v2377 = vld [vmem:[%s10 + $0x28] sm:$0xf]
      %v2378 = vld [vmem:[%s10 + $0x2c] sm:$0xf]
      %v2379 = vld [vmem:[%s10 + $0x30] sm:$0xf]
      %v2380 = vld [vmem:[%s10 + $0x34] sm:$0xf]
      %v2381 = vld [vmem:[%s10 + $0x38] sm:$0xf]
      %v2382 = vld [vmem:[%s10 + $0x3c] sm:$0xf]
      %v2383 = vld [vmem:[%s11] sm:$0x1]
      %v2385 = vperm.slane %v2383, 0
      %v2403 = vunpack.c.l.b16 %v2367
      %v2404 = vunpack.c.l.b16 %v2368
      %v2405 = vunpack.c.l.b16 %v2369
      %v2406 = vunpack.c.l.b16 %v2370
      %v2407 = vunpack.c.l.b16 %v2371
      %v2408 = vunpack.c.l.b16 %v2372
      %v2409 = vunpack.c.l.b16 %v2373
      %v2410 = vunpack.c.l.b16 %v2374
      %v2411 = vunpack.c.l.b16 %v2375
      %v2412 = vunpack.c.l.b16 %v2376
      %v2413 = vunpack.c.l.b16 %v2377
      %v2414 = vunpack.c.l.b16 %v2378
      %v2415 = vunpack.c.l.b16 %v2379
      %v2416 = vunpack.c.l.b16 %v2380
      %v2417 = vunpack.c.l.b16 %v2381
      %v2418 = vunpack.c.l.b16 %v2382
      %v2419 = vpack.c.b16 %v2404, %v2403
      %v2420 = vpack.c.b16 %v2406, %v2405
      %v2421 = vpack.c.b16 %v2408, %v2407
      %v2422 = vpack.c.b16 %v2410, %v2409
      %v2423 = vpack.c.b16 %v2412, %v2411
      %v2424 = vpack.c.b16 %v2414, %v2413
      %v2425 = vpack.c.b16 %v2416, %v2415
      %v2426 = vpack.c.b16 %v2418, %v2417
      %2435 = vmatpush.bf16.msra.mxu0 %v2426
      %2436 = vmatpush.bf16.msra.mxu0 %v2425
      %2437 = vmatpush.bf16.msra.mxu0 %v2424
      %2438 = vmatpush.bf16.msra.mxu0 %v2423
      %2439 = vmatpush.bf16.msra.mxu0 %v2422
      %2440 = vmatpush.bf16.msra.mxu0 %v2421
      %2441 = vmatpush.bf16.msra.mxu0 %v2420
      %2442 = vmatpush.bf16.msra.mxu0 %v2419
      %2443 = vmatmul.bf16.gmra.mxu0 %v2335
      %v2444 = vpop.f32.mrf.mxu0
      %v2445 = vadd.f32 %v2385, %v2444
      %v2446 = vpop.f32.mrf.mxu0
      %v2447 = vadd.f32 %v2385, %v2446
      %2448 = vmatmul.bf16.gmra.mxu0 %v2336
      %v2449 = vpop.f32.mrf.mxu0
      %v2450 = vadd.f32 %v2385, %v2449
      %v2451 = vpop.f32.mrf.mxu0
      %v2452 = vadd.f32 %v2385, %v2451
      %2453 = vmatmul.bf16.gmra.mxu0 %v2337
      %v2454 = vpop.f32.mrf.mxu0
      %v2455 = vadd.f32 %v2385, %v2454
      %v2456 = vpop.f32.mrf.mxu0
      %v2457 = vadd.f32 %v2385, %v2456
      %2458 = vmatmul.bf16.gmra.mxu0 %v2338
      %v2459 = vpop.f32.mrf.mxu0
      %v2460 = vadd.f32 %v2385, %v2459
      %v2461 = vpop.f32.mrf.mxu0
      %v2462 = vadd.f32 %v2385, %v2461
      %2463 = vmatmul.bf16.gmra.mxu0 %v2339
      %v2464 = vpop.f32.mrf.mxu0
      %v2465 = vadd.f32 %v2385, %v2464
      %v2466 = vpop.f32.mrf.mxu0
      %v2467 = vadd.f32 %v2385, %v2466
      %2468 = vmatmul.bf16.gmra.mxu0 %v2340
      %v2469 = vpop.f32.mrf.mxu0
      %v2470 = vadd.f32 %v2385, %v2469
      %v2471 = vpop.f32.mrf.mxu0
      %v2472 = vadd.f32 %v2385, %v2471
      %2473 = vmatmul.bf16.gmra.mxu0 %v2341
      %v2474 = vpop.f32.mrf.mxu0
      %v2475 = vadd.f32 %v2385, %v2474
      %v2476 = vpop.f32.mrf.mxu0
      %v2477 = vadd.f32 %v2385, %v2476
      %2478 = vmatmul.bf16.gmra.mxu0 %v2342
      %v2479 = vpop.f32.mrf.mxu0
      %v2480 = vadd.f32 %v2385, %v2479
      %v2481 = vpop.f32.mrf.mxu0
      %v2482 = vadd.f32 %v2385, %v2481
      %2483 = vmatmul.bf16.gmra.mxu0 %v2343
      %v2484 = vpop.f32.mrf.mxu0
      %v2485 = vadd.f32 %v2385, %v2484
      %v2486 = vpop.f32.mrf.mxu0
      %v2487 = vadd.f32 %v2385, %v2486
      %2488 = vmatmul.bf16.gmra.mxu0 %v2344
      %v2489 = vpop.f32.mrf.mxu0
      %v2490 = vadd.f32 %v2385, %v2489
      %v2491 = vpop.f32.mrf.mxu0
      %v2492 = vadd.f32 %v2385, %v2491
      %2493 = vmatmul.bf16.gmra.mxu0 %v2345
      %v2494 = vpop.f32.mrf.mxu0
      %v2495 = vadd.f32 %v2385, %v2494
      %v2496 = vpop.f32.mrf.mxu0
      %v2497 = vadd.f32 %v2385, %v2496
      %2498 = vmatmul.bf16.gmra.mxu0 %v2346
      %v2499 = vpop.f32.mrf.mxu0
      %v2500 = vadd.f32 %v2385, %v2499
      %v2501 = vpop.f32.mrf.mxu0
      %v2502 = vadd.f32 %v2385, %v2501
      %2503 = vmatmul.bf16.gmra.mxu0 %v2347
      %v2504 = vpop.f32.mrf.mxu0
      %v2505 = vadd.f32 %v2385, %v2504
      %v2506 = vpop.f32.mrf.mxu0
      %v2507 = vadd.f32 %v2385, %v2506
      %2508 = vmatmul.bf16.gmra.mxu0 %v2348
      %v2509 = vpop.f32.mrf.mxu0
      %v2510 = vadd.f32 %v2385, %v2509
      %v2511 = vpop.f32.mrf.mxu0
      %v2512 = vadd.f32 %v2385, %v2511
      %2513 = vmatmul.bf16.gmra.mxu0 %v2349
      %v2514 = vpop.f32.mrf.mxu0
      %v2515 = vadd.f32 %v2385, %v2514
      %v2516 = vpop.f32.mrf.mxu0
      %v2517 = vadd.f32 %v2385, %v2516
      %2518 = vmatmul.bf16.gmra.mxu0 %v2350
      %v2519 = vpop.f32.mrf.mxu0
      %v2520 = vadd.f32 %v2385, %v2519
      %v2521 = vpop.f32.mrf.mxu0
      %v2522 = vadd.f32 %v2385, %v2521
      %2523 = vmatmul.bf16.gmra.mxu0 %v2351
      %v2524 = vpop.f32.mrf.mxu0
      %v2525 = vadd.f32 %v2385, %v2524
      %v2526 = vpop.f32.mrf.mxu0
      %v2527 = vadd.f32 %v2385, %v2526
      %2528 = vmatmul.bf16.gmra.mxu0 %v2352
      %v2529 = vpop.f32.mrf.mxu0
      %v2530 = vadd.f32 %v2385, %v2529
      %v2531 = vpop.f32.mrf.mxu0
      %v2532 = vadd.f32 %v2385, %v2531
      %2533 = vmatmul.bf16.gmra.mxu0 %v2353
      %v2534 = vpop.f32.mrf.mxu0
      %v2535 = vadd.f32 %v2385, %v2534
      %v2536 = vpop.f32.mrf.mxu0
      %v2537 = vadd.f32 %v2385, %v2536
      %2538 = vmatmul.bf16.gmra.mxu0 %v2354
      %v2539 = vpop.f32.mrf.mxu0
      %v2540 = vadd.f32 %v2385, %v2539
      %v2541 = vpop.f32.mrf.mxu0
      %v2542 = vadd.f32 %v2385, %v2541
      %2543 = vmatmul.bf16.gmra.mxu0 %v2355
      %v2544 = vpop.f32.mrf.mxu0
      %v2545 = vadd.f32 %v2385, %v2544
      %v2546 = vpop.f32.mrf.mxu0
      %v2547 = vadd.f32 %v2385, %v2546
      %2548 = vmatmul.bf16.gmra.mxu0 %v2356
      %v2549 = vpop.f32.mrf.mxu0
      %v2550 = vadd.f32 %v2385, %v2549
      %v2551 = vpop.f32.mrf.mxu0
      %v2552 = vadd.f32 %v2385, %v2551
      %2553 = vmatmul.bf16.gmra.mxu0 %v2357
      %v2554 = vpop.f32.mrf.mxu0
      %v2555 = vadd.f32 %v2385, %v2554
      %v2556 = vpop.f32.mrf.mxu0
      %v2557 = vadd.f32 %v2385, %v2556
      %2558 = vmatmul.bf16.gmra.mxu0 %v2358
      %v2559 = vpop.f32.mrf.mxu0
      %v2560 = vadd.f32 %v2385, %v2559
      %v2561 = vpop.f32.mrf.mxu0
      %v2562 = vadd.f32 %v2385, %v2561
      %2563 = vmatmul.bf16.gmra.mxu0 %v2359
      %v2564 = vpop.f32.mrf.mxu0
      %v2565 = vadd.f32 %v2385, %v2564
      %v2566 = vpop.f32.mrf.mxu0
      %v2567 = vadd.f32 %v2385, %v2566
      %2568 = vmatmul.bf16.gmra.mxu0 %v2360
      %v2569 = vpop.f32.mrf.mxu0
      %v2570 = vadd.f32 %v2385, %v2569
      %v2571 = vpop.f32.mrf.mxu0
      %v2572 = vadd.f32 %v2385, %v2571
      %2573 = vmatmul.bf16.gmra.mxu0 %v2361
      %v2574 = vpop.f32.mrf.mxu0
      %v2575 = vadd.f32 %v2385, %v2574
      %v2576 = vpop.f32.mrf.mxu0
      %v2577 = vadd.f32 %v2385, %v2576
      %2578 = vmatmul.bf16.gmra.mxu0 %v2362
      %v2579 = vpop.f32.mrf.mxu0
      %v2580 = vadd.f32 %v2385, %v2579
      %v2581 = vpop.f32.mrf.mxu0
      %v2582 = vadd.f32 %v2385, %v2581
      %2583 = vmatmul.bf16.gmra.mxu0 %v2363
      %v2584 = vpop.f32.mrf.mxu0
      %v2585 = vadd.f32 %v2385, %v2584
      %v2586 = vpop.f32.mrf.mxu0
      %v2587 = vadd.f32 %v2385, %v2586
      %2588 = vmatmul.bf16.gmra.mxu0 %v2364
      %v2589 = vpop.f32.mrf.mxu0
      %v2590 = vadd.f32 %v2385, %v2589
      %v2591 = vpop.f32.mrf.mxu0
      %v2592 = vadd.f32 %v2385, %v2591
      %2593 = vmatmul.bf16.gmra.mxu0 %v2365
      %v2594 = vpop.f32.mrf.mxu0
      %v2595 = vadd.f32 %v2385, %v2594
      %v2596 = vpop.f32.mrf.mxu0
      %v2597 = vadd.f32 %v2385, %v2596
      %2598 = vmatmul.bf16.gmra.mxu0 %v2366
      %v2599 = vpop.f32.mrf.mxu0
      %v2600 = vadd.f32 %v2385, %v2599
      %v2601 = vpop.f32.mrf.mxu0
      %v2602 = vadd.f32 %v2385, %v2601
      %2603 = vdwg.mxu0
      %v2604 = vmax.f32 %v2445, 0.0
      %v2605 = vmax.f32 %v2447, 0.0
      %v2606 = vmax.f32 %v2450, 0.0
      %v2607 = vmax.f32 %v2452, 0.0
      %v2608 = vmax.f32 %v2455, 0.0
      %v2609 = vmax.f32 %v2457, 0.0
      %v2610 = vmax.f32 %v2460, 0.0
      %v2611 = vmax.f32 %v2462, 0.0
      %v2612 = vmax.f32 %v2465, 0.0
      %v2613 = vmax.f32 %v2467, 0.0
      %v2614 = vmax.f32 %v2470, 0.0
      %v2615 = vmax.f32 %v2472, 0.0
      %v2616 = vmax.f32 %v2475, 0.0
      %v2617 = vmax.f32 %v2477, 0.0
      %v2618 = vmax.f32 %v2480, 0.0
      %v2619 = vmax.f32 %v2482, 0.0
      %v2620 = vmax.f32 %v2485, 0.0
      %v2621 = vmax.f32 %v2487, 0.0
      %v2622 = vmax.f32 %v2490, 0.0
      %v2623 = vmax.f32 %v2492, 0.0
      %v2624 = vmax.f32 %v2495, 0.0
      %v2625 = vmax.f32 %v2497, 0.0
      %v2626 = vmax.f32 %v2500, 0.0
      %v2627 = vmax.f32 %v2502, 0.0
      %v2628 = vmax.f32 %v2505, 0.0
      %v2629 = vmax.f32 %v2507, 0.0
      %v2630 = vmax.f32 %v2510, 0.0
      %v2631 = vmax.f32 %v2512, 0.0
      %v2632 = vmax.f32 %v2515, 0.0
      %v2633 = vmax.f32 %v2517, 0.0
      %v2634 = vmax.f32 %v2520, 0.0
      %v2635 = vmax.f32 %v2522, 0.0
      %v2636 = vmax.f32 %v2525, 0.0
      %v2637 = vmax.f32 %v2527, 0.0
      %v2638 = vmax.f32 %v2530, 0.0
      %v2639 = vmax.f32 %v2532, 0.0
      %v2640 = vmax.f32 %v2535, 0.0
      %v2641 = vmax.f32 %v2537, 0.0
      %v2642 = vmax.f32 %v2540, 0.0
      %v2643 = vmax.f32 %v2542, 0.0
      %v2644 = vmax.f32 %v2545, 0.0
      %v2645 = vmax.f32 %v2547, 0.0
      %v2646 = vmax.f32 %v2550, 0.0
      %v2647 = vmax.f32 %v2552, 0.0
      %v2648 = vmax.f32 %v2555, 0.0
      %v2649 = vmax.f32 %v2557, 0.0
      %v2650 = vmax.f32 %v2560, 0.0
      %v2651 = vmax.f32 %v2562, 0.0
      %v2652 = vmax.f32 %v2565, 0.0
      %v2653 = vmax.f32 %v2567, 0.0
      %v2654 = vmax.f32 %v2570, 0.0
      %v2655 = vmax.f32 %v2572, 0.0
      %v2656 = vmax.f32 %v2575, 0.0
      %v2657 = vmax.f32 %v2577, 0.0
      %v2658 = vmax.f32 %v2580, 0.0
      %v2659 = vmax.f32 %v2582, 0.0
      %v2660 = vmax.f32 %v2585, 0.0
      %v2661 = vmax.f32 %v2587, 0.0
      %v2662 = vmax.f32 %v2590, 0.0
      %v2663 = vmax.f32 %v2592, 0.0
      %v2664 = vmax.f32 %v2595, 0.0
      %v2665 = vmax.f32 %v2597, 0.0
      %v2666 = vmax.f32 %v2600, 0.0
      %v2667 = vmax.f32 %v2602, 0.0
      %v2668 = vpack.c.bf16 %v2605, %v2604
      %v2669 = vpack.c.bf16 %v2607, %v2606
      %v2670 = vpack.c.bf16 %v2609, %v2608
      %v2671 = vpack.c.bf16 %v2611, %v2610
      %v2672 = vpack.c.bf16 %v2613, %v2612
      %v2673 = vpack.c.bf16 %v2615, %v2614
      %v2674 = vpack.c.bf16 %v2617, %v2616
      %v2675 = vpack.c.bf16 %v2619, %v2618
      %v2676 = vpack.c.bf16 %v2621, %v2620
      %v2677 = vpack.c.bf16 %v2623, %v2622
      %v2678 = vpack.c.bf16 %v2625, %v2624
      %v2679 = vpack.c.bf16 %v2627, %v2626
      %v2680 = vpack.c.bf16 %v2629, %v2628
      %v2681 = vpack.c.bf16 %v2631, %v2630
      %v2682 = vpack.c.bf16 %v2633, %v2632
      %v2683 = vpack.c.bf16 %v2635, %v2634
      %v2684 = vpack.c.bf16 %v2637, %v2636
      %v2685 = vpack.c.bf16 %v2639, %v2638
      %v2686 = vpack.c.bf16 %v2641, %v2640
      %v2687 = vpack.c.bf16 %v2643, %v2642
      %v2688 = vpack.c.bf16 %v2645, %v2644
      %v2689 = vpack.c.bf16 %v2647, %v2646
      %v2690 = vpack.c.bf16 %v2649, %v2648
      %v2691 = vpack.c.bf16 %v2651, %v2650
      %v2692 = vpack.c.bf16 %v2653, %v2652
      %v2693 = vpack.c.bf16 %v2655, %v2654
      %v2694 = vpack.c.bf16 %v2657, %v2656
      %v2695 = vpack.c.bf16 %v2659, %v2658
      %v2696 = vpack.c.bf16 %v2661, %v2660
      %v2697 = vpack.c.bf16 %v2663, %v2662
      %v2698 = vpack.c.bf16 %v2665, %v2664
      %v2699 = vpack.c.bf16 %v2667, %v2666
      %v2700 = vld [vmem:[%s12] sm:$0xf]
      %v2701 = vld [vmem:[%s12 + $0x4] sm:$0xf]
      %v2702 = vld [vmem:[%s12 + $0x8] sm:$0xf]
      %v2703 = vld [vmem:[%s12 + $0xc] sm:$0xf]
      %v2704 = vld [vmem:[%s12 + $0x10] sm:$0xf]
      %v2705 = vld [vmem:[%s12 + $0x14] sm:$0xf]
      %v2706 = vld [vmem:[%s12 + $0x18] sm:$0xf]
      %v2707 = vld [vmem:[%s12 + $0x1c] sm:$0xf]
      %v2708 = vld [vmem:[%s12 + $0x20] sm:$0xf]
      %v2709 = vld [vmem:[%s12 + $0x24] sm:$0xf]
      %v2710 = vld [vmem:[%s12 + $0x28] sm:$0xf]
      %v2711 = vld [vmem:[%s12 + $0x2c] sm:$0xf]
      %v2712 = vld [vmem:[%s12 + $0x30] sm:$0xf]
      %v2713 = vld [vmem:[%s12 + $0x34] sm:$0xf]
      %v2714 = vld [vmem:[%s12 + $0x38] sm:$0xf]
      %v2715 = vld [vmem:[%s12 + $0x3c] sm:$0xf]
      %v2716 = vld [vmem:[%s13] sm:$0x1]
      %v2718 = vperm.slane %v2716, 0
      %v2736 = vunpack.c.l.b16 %v2700
      %v2737 = vunpack.c.l.b16 %v2701
      %v2738 = vunpack.c.l.b16 %v2702
      %v2739 = vunpack.c.l.b16 %v2703
      %v2740 = vunpack.c.l.b16 %v2704
      %v2741 = vunpack.c.l.b16 %v2705
      %v2742 = vunpack.c.l.b16 %v2706
      %v2743 = vunpack.c.l.b16 %v2707
      %v2744 = vunpack.c.l.b16 %v2708
      %v2745 = vunpack.c.l.b16 %v2709
      %v2746 = vunpack.c.l.b16 %v2710
      %v2747 = vunpack.c.l.b16 %v2711
      %v2748 = vunpack.c.l.b16 %v2712
      %v2749 = vunpack.c.l.b16 %v2713
      %v2750 = vunpack.c.l.b16 %v2714
      %v2751 = vunpack.c.l.b16 %v2715
      %v2752 = vpack.c.b16 %v2737, %v2736
      %v2753 = vpack.c.b16 %v2739, %v2738
      %v2754 = vpack.c.b16 %v2741, %v2740
      %v2755 = vpack.c.b16 %v2743, %v2742
      %v2756 = vpack.c.b16 %v2745, %v2744
      %v2757 = vpack.c.b16 %v2747, %v2746
      %v2758 = vpack.c.b16 %v2749, %v2748
      %v2759 = vpack.c.b16 %v2751, %v2750
      %2768 = vmatpush.bf16.msra.mxu0 %v2759
      %2769 = vmatpush.bf16.msra.mxu0 %v2758
      %2770 = vmatpush.bf16.msra.mxu0 %v2757
      %2771 = vmatpush.bf16.msra.mxu0 %v2756
      %2772 = vmatpush.bf16.msra.mxu0 %v2755
      %2773 = vmatpush.bf16.msra.mxu0 %v2754
      %2774 = vmatpush.bf16.msra.mxu0 %v2753
      %2775 = vmatpush.bf16.msra.mxu0 %v2752
      %2776 = vmatmul.bf16.gmra.mxu0 %v2668
      %v2777 = vpop.f32.mrf.mxu0
      %v2778 = vadd.f32 %v2718, %v2777
      %v2779 = vpop.f32.mrf.mxu0
      %v2780 = vadd.f32 %v2718, %v2779
      %2781 = vmatmul.bf16.gmra.mxu0 %v2669
      %v2782 = vpop.f32.mrf.mxu0
      %v2783 = vadd.f32 %v2718, %v2782
      %v2784 = vpop.f32.mrf.mxu0
      %v2785 = vadd.f32 %v2718, %v2784
      %2786 = vmatmul.bf16.gmra.mxu0 %v2670
      %v2787 = vpop.f32.mrf.mxu0
      %v2788 = vadd.f32 %v2718, %v2787
      %v2789 = vpop.f32.mrf.mxu0
      %v2790 = vadd.f32 %v2718, %v2789
      %2791 = vmatmul.bf16.gmra.mxu0 %v2671
      %v2792 = vpop.f32.mrf.mxu0
      %v2793 = vadd.f32 %v2718, %v2792
      %v2794 = vpop.f32.mrf.mxu0
      %v2795 = vadd.f32 %v2718, %v2794
      %2796 = vmatmul.bf16.gmra.mxu0 %v2672
      %v2797 = vpop.f32.mrf.mxu0
      %v2798 = vadd.f32 %v2718, %v2797
      %v2799 = vpop.f32.mrf.mxu0
      %v2800 = vadd.f32 %v2718, %v2799
      %2801 = vmatmul.bf16.gmra.mxu0 %v2673
      %v2802 = vpop.f32.mrf.mxu0
      %v2803 = vadd.f32 %v2718, %v2802
      %v2804 = vpop.f32.mrf.mxu0
      %v2805 = vadd.f32 %v2718, %v2804
      %2806 = vmatmul.bf16.gmra.mxu0 %v2674
      %v2807 = vpop.f32.mrf.mxu0
      %v2808 = vadd.f32 %v2718, %v2807
      %v2809 = vpop.f32.mrf.mxu0
      %v2810 = vadd.f32 %v2718, %v2809
      %2811 = vmatmul.bf16.gmra.mxu0 %v2675
      %v2812 = vpop.f32.mrf.mxu0
      %v2813 = vadd.f32 %v2718, %v2812
      %v2814 = vpop.f32.mrf.mxu0
      %v2815 = vadd.f32 %v2718, %v2814
      %2816 = vmatmul.bf16.gmra.mxu0 %v2676
      %v2817 = vpop.f32.mrf.mxu0
      %v2818 = vadd.f32 %v2718, %v2817
      %v2819 = vpop.f32.mrf.mxu0
      %v2820 = vadd.f32 %v2718, %v2819
      %2821 = vmatmul.bf16.gmra.mxu0 %v2677
      %v2822 = vpop.f32.mrf.mxu0
      %v2823 = vadd.f32 %v2718, %v2822
      %v2824 = vpop.f32.mrf.mxu0
      %v2825 = vadd.f32 %v2718, %v2824
      %2826 = vmatmul.bf16.gmra.mxu0 %v2678
      %v2827 = vpop.f32.mrf.mxu0
      %v2828 = vadd.f32 %v2718, %v2827
      %v2829 = vpop.f32.mrf.mxu0
      %v2830 = vadd.f32 %v2718, %v2829
      %2831 = vmatmul.bf16.gmra.mxu0 %v2679
      %v2832 = vpop.f32.mrf.mxu0
      %v2833 = vadd.f32 %v2718, %v2832
      %v2834 = vpop.f32.mrf.mxu0
      %v2835 = vadd.f32 %v2718, %v2834
      %2836 = vmatmul.bf16.gmra.mxu0 %v2680
      %v2837 = vpop.f32.mrf.mxu0
      %v2838 = vadd.f32 %v2718, %v2837
      %v2839 = vpop.f32.mrf.mxu0
      %v2840 = vadd.f32 %v2718, %v2839
      %2841 = vmatmul.bf16.gmra.mxu0 %v2681
      %v2842 = vpop.f32.mrf.mxu0
      %v2843 = vadd.f32 %v2718, %v2842
      %v2844 = vpop.f32.mrf.mxu0
      %v2845 = vadd.f32 %v2718, %v2844
      %2846 = vmatmul.bf16.gmra.mxu0 %v2682
      %v2847 = vpop.f32.mrf.mxu0
      %v2848 = vadd.f32 %v2718, %v2847
      %v2849 = vpop.f32.mrf.mxu0
      %v2850 = vadd.f32 %v2718, %v2849
      %2851 = vmatmul.bf16.gmra.mxu0 %v2683
      %v2852 = vpop.f32.mrf.mxu0
      %v2853 = vadd.f32 %v2718, %v2852
      %v2854 = vpop.f32.mrf.mxu0
      %v2855 = vadd.f32 %v2718, %v2854
      %2856 = vmatmul.bf16.gmra.mxu0 %v2684
      %v2857 = vpop.f32.mrf.mxu0
      %v2858 = vadd.f32 %v2718, %v2857
      %v2859 = vpop.f32.mrf.mxu0
      %v2860 = vadd.f32 %v2718, %v2859
      %2861 = vmatmul.bf16.gmra.mxu0 %v2685
      %v2862 = vpop.f32.mrf.mxu0
      %v2863 = vadd.f32 %v2718, %v2862
      %v2864 = vpop.f32.mrf.mxu0
      %v2865 = vadd.f32 %v2718, %v2864
      %2866 = vmatmul.bf16.gmra.mxu0 %v2686
      %v2867 = vpop.f32.mrf.mxu0
      %v2868 = vadd.f32 %v2718, %v2867
      %v2869 = vpop.f32.mrf.mxu0
      %v2870 = vadd.f32 %v2718, %v2869
      %2871 = vmatmul.bf16.gmra.mxu0 %v2687
      %v2872 = vpop.f32.mrf.mxu0
      %v2873 = vadd.f32 %v2718, %v2872
      %v2874 = vpop.f32.mrf.mxu0
      %v2875 = vadd.f32 %v2718, %v2874
      %2876 = vmatmul.bf16.gmra.mxu0 %v2688
      %v2877 = vpop.f32.mrf.mxu0
      %v2878 = vadd.f32 %v2718, %v2877
      %v2879 = vpop.f32.mrf.mxu0
      %v2880 = vadd.f32 %v2718, %v2879
      %2881 = vmatmul.bf16.gmra.mxu0 %v2689
      %v2882 = vpop.f32.mrf.mxu0
      %v2883 = vadd.f32 %v2718, %v2882
      %v2884 = vpop.f32.mrf.mxu0
      %v2885 = vadd.f32 %v2718, %v2884
      %2886 = vmatmul.bf16.gmra.mxu0 %v2690
      %v2887 = vpop.f32.mrf.mxu0
      %v2888 = vadd.f32 %v2718, %v2887
      %v2889 = vpop.f32.mrf.mxu0
      %v2890 = vadd.f32 %v2718, %v2889
      %2891 = vmatmul.bf16.gmra.mxu0 %v2691
      %v2892 = vpop.f32.mrf.mxu0
      %v2893 = vadd.f32 %v2718, %v2892
      %v2894 = vpop.f32.mrf.mxu0
      %v2895 = vadd.f32 %v2718, %v2894
      %2896 = vmatmul.bf16.gmra.mxu0 %v2692
      %v2897 = vpop.f32.mrf.mxu0
      %v2898 = vadd.f32 %v2718, %v2897
      %v2899 = vpop.f32.mrf.mxu0
      %v2900 = vadd.f32 %v2718, %v2899
      %2901 = vmatmul.bf16.gmra.mxu0 %v2693
      %v2902 = vpop.f32.mrf.mxu0
      %v2903 = vadd.f32 %v2718, %v2902
      %v2904 = vpop.f32.mrf.mxu0
      %v2905 = vadd.f32 %v2718, %v2904
      %2906 = vmatmul.bf16.gmra.mxu0 %v2694
      %v2907 = vpop.f32.mrf.mxu0
      %v2908 = vadd.f32 %v2718, %v2907
      %v2909 = vpop.f32.mrf.mxu0
      %v2910 = vadd.f32 %v2718, %v2909
      %2911 = vmatmul.bf16.gmra.mxu0 %v2695
      %v2912 = vpop.f32.mrf.mxu0
      %v2913 = vadd.f32 %v2718, %v2912
      %v2914 = vpop.f32.mrf.mxu0
      %v2915 = vadd.f32 %v2718, %v2914
      %2916 = vmatmul.bf16.gmra.mxu0 %v2696
      %v2917 = vpop.f32.mrf.mxu0
      %v2918 = vadd.f32 %v2718, %v2917
      %v2919 = vpop.f32.mrf.mxu0
      %v2920 = vadd.f32 %v2718, %v2919
      %2921 = vmatmul.bf16.gmra.mxu0 %v2697
      %v2922 = vpop.f32.mrf.mxu0
      %v2923 = vadd.f32 %v2718, %v2922
      %v2924 = vpop.f32.mrf.mxu0
      %v2925 = vadd.f32 %v2718, %v2924
      %2926 = vmatmul.bf16.gmra.mxu0 %v2698
      %v2927 = vpop.f32.mrf.mxu0
      %v2928 = vadd.f32 %v2718, %v2927
      %v2929 = vpop.f32.mrf.mxu0
      %v2930 = vadd.f32 %v2718, %v2929
      %2931 = vmatmul.bf16.gmra.mxu0 %v2699
      %v2932 = vpop.f32.mrf.mxu0
      %v2933 = vadd.f32 %v2718, %v2932
      %v2934 = vpop.f32.mrf.mxu0
      %v2935 = vadd.f32 %v2718, %v2934
      %2936 = vdwg.mxu0
      %v2937 = vadd.f32 %v2604, %v2605
      %v2938 = vadd.f32 %v2606, %v2607
      %v2939 = vadd.f32 %v2608, %v2609
      %v2940 = vadd.f32 %v2610, %v2611
      %v2941 = vadd.f32 %v2612, %v2613
      %v2942 = vadd.f32 %v2614, %v2615
      %v2943 = vadd.f32 %v2616, %v2617
      %v2944 = vadd.f32 %v2618, %v2619
      %v2945 = vadd.f32 %v2620, %v2621
      %v2946 = vadd.f32 %v2622, %v2623
      %v2947 = vadd.f32 %v2624, %v2625
      %v2948 = vadd.f32 %v2626, %v2627
      %v2949 = vadd.f32 %v2628, %v2629
      %v2950 = vadd.f32 %v2630, %v2631
      %v2951 = vadd.f32 %v2632, %v2633
      %v2952 = vadd.f32 %v2634, %v2635
      %v2953 = vadd.f32 %v2636, %v2637
      %v2954 = vadd.f32 %v2638, %v2639
      %v2955 = vadd.f32 %v2640, %v2641
      %v2956 = vadd.f32 %v2642, %v2643
      %v2957 = vadd.f32 %v2644, %v2645
      %v2958 = vadd.f32 %v2646, %v2647
      %v2959 = vadd.f32 %v2648, %v2649
      %v2960 = vadd.f32 %v2650, %v2651
      %v2961 = vadd.f32 %v2652, %v2653
      %v2962 = vadd.f32 %v2654, %v2655
      %v2963 = vadd.f32 %v2656, %v2657
      %v2964 = vadd.f32 %v2658, %v2659
      %v2965 = vadd.f32 %v2660, %v2661
      %v2966 = vadd.f32 %v2662, %v2663
      %v2967 = vadd.f32 %v2664, %v2665
      %v2968 = vadd.f32 %v2666, %v2667
      %v2969 = vmul.f32 %v2937, 0.5
      %v2970 = vmul.f32 %v2938, 0.5
      %v2971 = vmul.f32 %v2939, 0.5
      %v2972 = vmul.f32 %v2940, 0.5
      %v2973 = vmul.f32 %v2941, 0.5
      %v2974 = vmul.f32 %v2942, 0.5
      %v2975 = vmul.f32 %v2943, 0.5
      %v2976 = vmul.f32 %v2944, 0.5
      %v2977 = vmul.f32 %v2945, 0.5
      %v2978 = vmul.f32 %v2946, 0.5
      %v2979 = vmul.f32 %v2947, 0.5
      %v2980 = vmul.f32 %v2948, 0.5
      %v2981 = vmul.f32 %v2949, 0.5
      %v2982 = vmul.f32 %v2950, 0.5
      %v2983 = vmul.f32 %v2951, 0.5
      %v2984 = vmul.f32 %v2952, 0.5
      %v2985 = vmul.f32 %v2953, 0.5
      %v2986 = vmul.f32 %v2954, 0.5
      %v2987 = vmul.f32 %v2955, 0.5
      %v2988 = vmul.f32 %v2956, 0.5
      %v2989 = vmul.f32 %v2957, 0.5
      %v2990 = vmul.f32 %v2958, 0.5
      %v2991 = vmul.f32 %v2959, 0.5
      %v2992 = vmul.f32 %v2960, 0.5
      %v2993 = vmul.f32 %v2961, 0.5
      %v2994 = vmul.f32 %v2962, 0.5
      %v2995 = vmul.f32 %v2963, 0.5
      %v2996 = vmul.f32 %v2964, 0.5
      %v2997 = vmul.f32 %v2965, 0.5
      %v2998 = vmul.f32 %v2966, 0.5
      %v2999 = vmul.f32 %v2967, 0.5
      %v3000 = vmul.f32 %v2968, 0.5
      %v3001 = vpack.c.bf16 %v2780, %v2778
      %v3002 = vpack.c.bf16 %v2785, %v2783
      %v3003 = vpack.c.bf16 %v2790, %v2788
      %v3004 = vpack.c.bf16 %v2795, %v2793
      %v3005 = vpack.c.bf16 %v2800, %v2798
      %v3006 = vpack.c.bf16 %v2805, %v2803
      %v3007 = vpack.c.bf16 %v2810, %v2808
      %v3008 = vpack.c.bf16 %v2815, %v2813
      %v3009 = vpack.c.bf16 %v2820, %v2818
      %v3010 = vpack.c.bf16 %v2825, %v2823
      %v3011 = vpack.c.bf16 %v2830, %v2828
      %v3012 = vpack.c.bf16 %v2835, %v2833
      %v3013 = vpack.c.bf16 %v2840, %v2838
      %v3014 = vpack.c.bf16 %v2845, %v2843
      %v3015 = vpack.c.bf16 %v2850, %v2848
      %v3016 = vpack.c.bf16 %v2855, %v2853
      %v3017 = vpack.c.bf16 %v2860, %v2858
      %v3018 = vpack.c.bf16 %v2865, %v2863
      %v3019 = vpack.c.bf16 %v2870, %v2868
      %v3020 = vpack.c.bf16 %v2875, %v2873
      %v3021 = vpack.c.bf16 %v2880, %v2878
      %v3022 = vpack.c.bf16 %v2885, %v2883
      %v3023 = vpack.c.bf16 %v2890, %v2888
      %v3024 = vpack.c.bf16 %v2895, %v2893
      %v3025 = vpack.c.bf16 %v2900, %v2898
      %v3026 = vpack.c.bf16 %v2905, %v2903
      %v3027 = vpack.c.bf16 %v2910, %v2908
      %v3028 = vpack.c.bf16 %v2915, %v2913
      %v3029 = vpack.c.bf16 %v2920, %v2918
      %v3030 = vpack.c.bf16 %v2925, %v2923
      %v3031 = vpack.c.bf16 %v2930, %v2928
      %v3032 = vpack.c.bf16 %v2935, %v2933
      %v3033 = vld [vmem:[%s14] sm:$0xf]
      %v3034 = vld [vmem:[%s14 + $0x4] sm:$0xf]
      %v3035 = vld [vmem:[%s14 + $0x8] sm:$0xf]
      %v3036 = vld [vmem:[%s14 + $0xc] sm:$0xf]
      %v3037 = vld [vmem:[%s14 + $0x10] sm:$0xf]
      %v3038 = vld [vmem:[%s14 + $0x14] sm:$0xf]
      %v3039 = vld [vmem:[%s14 + $0x18] sm:$0xf]
      %v3040 = vld [vmem:[%s14 + $0x1c] sm:$0xf]
      %v3041 = vld [vmem:[%s14 + $0x20] sm:$0xf]
      %v3042 = vld [vmem:[%s14 + $0x24] sm:$0xf]
      %v3043 = vld [vmem:[%s14 + $0x28] sm:$0xf]
      %v3044 = vld [vmem:[%s14 + $0x2c] sm:$0xf]
      %v3045 = vld [vmem:[%s14 + $0x30] sm:$0xf]
      %v3046 = vld [vmem:[%s14 + $0x34] sm:$0xf]
      %v3047 = vld [vmem:[%s14 + $0x38] sm:$0xf]
      %v3048 = vld [vmem:[%s14 + $0x3c] sm:$0xf]
      %v3049 = vld [vmem:[%s723] sm:$0xff]
      %v3050 = vld [vmem:[%s723 + $0x8] sm:$0xff]
      %v3051 = vld [vmem:[%s723 + $0x10] sm:$0xff]
      %v3052 = vld [vmem:[%s723 + $0x18] sm:$0xff]
      %v3053 = vld [vmem:[%s723 + $0x20] sm:$0xff]
      %v3054 = vld [vmem:[%s723 + $0x28] sm:$0xff]
      %v3055 = vld [vmem:[%s723 + $0x30] sm:$0xff]
      %v3056 = vld [vmem:[%s723 + $0x38] sm:$0xff]
      %v3057 = vld [vmem:[%s723 + $0x40] sm:$0xff]
      %v3058 = vld [vmem:[%s723 + $0x48] sm:$0xff]
      %v3059 = vld [vmem:[%s723 + $0x50] sm:$0xff]
      %v3060 = vld [vmem:[%s723 + $0x58] sm:$0xff]
      %v3061 = vld [vmem:[%s723 + $0x60] sm:$0xff]
      %v3062 = vld [vmem:[%s723 + $0x68] sm:$0xff]
      %v3063 = vld [vmem:[%s723 + $0x70] sm:$0xff]
      %v3064 = vld [vmem:[%s723 + $0x78] sm:$0xff]
      %v3065 = vld [vmem:[%s723 + $0x80] sm:$0xff]
      %v3066 = vld [vmem:[%s723 + $0x88] sm:$0xff]
      %v3067 = vld [vmem:[%s723 + $0x90] sm:$0xff]
      %v3068 = vld [vmem:[%s723 + $0x98] sm:$0xff]
      %v3069 = vld [vmem:[%s723 + $0xa0] sm:$0xff]
      %v3070 = vld [vmem:[%s723 + $0xa8] sm:$0xff]
      %v3071 = vld [vmem:[%s723 + $0xb0] sm:$0xff]
      %v3072 = vld [vmem:[%s723 + $0xb8] sm:$0xff]
      %v3073 = vld [vmem:[%s723 + $0xc0] sm:$0xff]
      %v3074 = vld [vmem:[%s723 + $0xc8] sm:$0xff]
      %v3075 = vld [vmem:[%s723 + $0xd0] sm:$0xff]
      %v3076 = vld [vmem:[%s723 + $0xd8] sm:$0xff]
      %v3077 = vld [vmem:[%s723 + $0xe0] sm:$0xff]
      %v3078 = vld [vmem:[%s723 + $0xe8] sm:$0xff]
      %v3079 = vld [vmem:[%s723 + $0xf0] sm:$0xff]
      %v3080 = vld [vmem:[%s723 + $0xf8] sm:$0xff]
      %v3081 = vld [vmem:[%s723 + $0x100] sm:$0xff]
      %v3082 = vld [vmem:[%s723 + $0x108] sm:$0xff]
      %v3083 = vld [vmem:[%s723 + $0x110] sm:$0xff]
      %v3084 = vld [vmem:[%s723 + $0x118] sm:$0xff]
      %v3085 = vld [vmem:[%s723 + $0x120] sm:$0xff]
      %v3086 = vld [vmem:[%s723 + $0x128] sm:$0xff]
      %v3087 = vld [vmem:[%s723 + $0x130] sm:$0xff]
      %v3088 = vld [vmem:[%s723 + $0x138] sm:$0xff]
      %v3089 = vld [vmem:[%s723 + $0x140] sm:$0xff]
      %v3090 = vld [vmem:[%s723 + $0x148] sm:$0xff]
      %v3091 = vld [vmem:[%s723 + $0x150] sm:$0xff]
      %v3092 = vld [vmem:[%s723 + $0x158] sm:$0xff]
      %v3093 = vld [vmem:[%s723 + $0x160] sm:$0xff]
      %v3094 = vld [vmem:[%s723 + $0x168] sm:$0xff]
      %v3095 = vld [vmem:[%s723 + $0x170] sm:$0xff]
      %v3096 = vld [vmem:[%s723 + $0x178] sm:$0xff]
      %v3097 = vld [vmem:[%s723 + $0x180] sm:$0xff]
      %v3098 = vld [vmem:[%s723 + $0x188] sm:$0xff]
      %v3099 = vld [vmem:[%s723 + $0x190] sm:$0xff]
      %v3100 = vld [vmem:[%s723 + $0x198] sm:$0xff]
      %v3101 = vld [vmem:[%s723 + $0x1a0] sm:$0xff]
      %v3102 = vld [vmem:[%s723 + $0x1a8] sm:$0xff]
      %v3103 = vld [vmem:[%s723 + $0x1b0] sm:$0xff]
      %v3104 = vld [vmem:[%s723 + $0x1b8] sm:$0xff]
      %v3105 = vld [vmem:[%s723 + $0x1c0] sm:$0xff]
      %v3106 = vld [vmem:[%s723 + $0x1c8] sm:$0xff]
      %v3107 = vld [vmem:[%s723 + $0x1d0] sm:$0xff]
      %v3108 = vld [vmem:[%s723 + $0x1d8] sm:$0xff]
      %v3109 = vld [vmem:[%s723 + $0x1e0] sm:$0xff]
      %v3110 = vld [vmem:[%s723 + $0x1e8] sm:$0xff]
      %v3111 = vld [vmem:[%s723 + $0x1f0] sm:$0xff]
      %v3112 = vld [vmem:[%s723 + $0x1f8] sm:$0xff]
      %v3113 = vpack.c.bf16 %v3050, %v3049
      %v3114 = vpack.c.bf16 %v3052, %v3051
      %v3115 = vpack.c.bf16 %v3054, %v3053
      %v3116 = vpack.c.bf16 %v3056, %v3055
      %v3117 = vpack.c.bf16 %v3058, %v3057
      %v3118 = vpack.c.bf16 %v3060, %v3059
      %v3119 = vpack.c.bf16 %v3062, %v3061
      %v3120 = vpack.c.bf16 %v3064, %v3063
      %v3121 = vpack.c.bf16 %v3066, %v3065
      %v3122 = vpack.c.bf16 %v3068, %v3067
      %v3123 = vpack.c.bf16 %v3070, %v3069
      %v3124 = vpack.c.bf16 %v3072, %v3071
      %v3125 = vpack.c.bf16 %v3074, %v3073
      %v3126 = vpack.c.bf16 %v3076, %v3075
      %v3127 = vpack.c.bf16 %v3078, %v3077
      %v3128 = vpack.c.bf16 %v3080, %v3079
      %v3129 = vpack.c.bf16 %v3082, %v3081
      %v3130 = vpack.c.bf16 %v3084, %v3083
      %v3131 = vpack.c.bf16 %v3086, %v3085
      %v3132 = vpack.c.bf16 %v3088, %v3087
      %v3133 = vpack.c.bf16 %v3090, %v3089
      %v3134 = vpack.c.bf16 %v3092, %v3091
      %v3135 = vpack.c.bf16 %v3094, %v3093
      %v3136 = vpack.c.bf16 %v3096, %v3095
      %v3137 = vpack.c.bf16 %v3098, %v3097
      %v3138 = vpack.c.bf16 %v3100, %v3099
      %v3139 = vpack.c.bf16 %v3102, %v3101
      %v3140 = vpack.c.bf16 %v3104, %v3103
      %v3141 = vpack.c.bf16 %v3106, %v3105
      %v3142 = vpack.c.bf16 %v3108, %v3107
      %v3143 = vpack.c.bf16 %v3110, %v3109
      %v3144 = vpack.c.bf16 %v3112, %v3111
      %v3145 = vld [vmem:[%s15] sm:$0xf]
      %v3146 = vld [vmem:[%s15 + $0x4] sm:$0xf]
      %v3149 = vunpack.c.l.b16 %v3145
      %v3150 = vunpack.c.l.b16 %v3146
      %v3151 = vpack.c.b16 %v3150, %v3149
      %vm3152 = vcmask 121856
      %v3154 = vsel %vm3152, %v3113, 0
      %v3157 = vsel %vm3152, %v3114, 0
      %v3160 = vsel %vm3152, %v3115, 0
      %v3163 = vsel %vm3152, %v3116, 0
      %v3166 = vsel %vm3152, %v3117, 0
      %v3169 = vsel %vm3152, %v3118, 0
      %v3172 = vsel %vm3152, %v3119, 0
      %v3175 = vsel %vm3152, %v3120, 0
      %v3178 = vsel %vm3152, %v3121, 0
      %v3181 = vsel %vm3152, %v3122, 0
      %v3184 = vsel %vm3152, %v3123, 0
      %v3187 = vsel %vm3152, %v3124, 0
      %v3190 = vsel %vm3152, %v3125, 0
      %v3193 = vsel %vm3152, %v3126, 0
      %v3196 = vsel %vm3152, %v3127, 0
      %v3199 = vsel %vm3152, %v3128, 0
      %v3202 = vsel %vm3152, %v3129, 0
      %v3205 = vsel %vm3152, %v3130, 0
      %v3208 = vsel %vm3152, %v3131, 0
      %v3211 = vsel %vm3152, %v3132, 0
      %v3214 = vsel %vm3152, %v3133, 0
      %v3217 = vsel %vm3152, %v3134, 0
      %v3220 = vsel %vm3152, %v3135, 0
      %v3223 = vsel %vm3152, %v3136, 0
      %v3226 = vsel %vm3152, %v3137, 0
      %v3229 = vsel %vm3152, %v3138, 0
      %v3232 = vsel %vm3152, %v3139, 0
      %v3235 = vsel %vm3152, %v3140, 0
      %v3238 = vsel %vm3152, %v3141, 0
      %v3241 = vsel %vm3152, %v3142, 0
      %v3244 = vsel %vm3152, %v3143, 0
      %v3247 = vsel %vm3152, %v3144, 0
      %vm3249 = vcmask 1046528
      %vm3250 = vcmask 1047552
      %v3251 = vsel %vm3249, 4294967295, 65535
      %v3252 = vsel %vm3250, %v3251, 0
      %v3254 = vand.u32 %v3151, %v3252
      %3256 = vmatpush.bf16.msra.mxu0 0
      %3257 = vmatpush.bf16.msra.mxu0 0
      %3258 = vmatpush.bf16.msra.mxu0 0
      %3259 = vmatpush.bf16.msra.mxu0 0
      %3260 = vmatpush.bf16.msra.mxu0 0
      %3261 = vmatpush.bf16.msra.mxu0 0
      %3262 = vmatpush.bf16.msra.mxu0 0
      %3263 = vmatpush.bf16.msra.mxu0 %v3254
      %3264 = vmatmul.bf16.gmra.mxu0 %v3154
      %v3265 = vpop.f32.mrf.mxu0
      %v3266 = vadd.f32 0.0, %v3265
      %v3267 = vpop.f32.mrf.mxu0
      %v3268 = vadd.f32 0.0, %v3267
      %3269 = vmatmul.bf16.gmra.mxu0 %v3157
      %v3270 = vpop.f32.mrf.mxu0
      %v3271 = vadd.f32 0.0, %v3270
      %v3272 = vpop.f32.mrf.mxu0
      %v3273 = vadd.f32 0.0, %v3272
      %3274 = vmatmul.bf16.gmra.mxu0 %v3160
      %v3275 = vpop.f32.mrf.mxu0
      %v3276 = vadd.f32 0.0, %v3275
      %v3277 = vpop.f32.mrf.mxu0
      %v3278 = vadd.f32 0.0, %v3277
      %3279 = vmatmul.bf16.gmra.mxu0 %v3163
      %v3280 = vpop.f32.mrf.mxu0
      %v3281 = vadd.f32 0.0, %v3280
      %v3282 = vpop.f32.mrf.mxu0
      %v3283 = vadd.f32 0.0, %v3282
      %3284 = vmatmul.bf16.gmra.mxu0 %v3166
      %v3285 = vpop.f32.mrf.mxu0
      %v3286 = vadd.f32 0.0, %v3285
      %v3287 = vpop.f32.mrf.mxu0
      %v3288 = vadd.f32 0.0, %v3287
      %3289 = vmatmul.bf16.gmra.mxu0 %v3169
      %v3290 = vpop.f32.mrf.mxu0
      %v3291 = vadd.f32 0.0, %v3290
      %v3292 = vpop.f32.mrf.mxu0
      %v3293 = vadd.f32 0.0, %v3292
      %3294 = vmatmul.bf16.gmra.mxu0 %v3172
      %v3295 = vpop.f32.mrf.mxu0
      %v3296 = vadd.f32 0.0, %v3295
      %v3297 = vpop.f32.mrf.mxu0
      %v3298 = vadd.f32 0.0, %v3297
      %3299 = vmatmul.bf16.gmra.mxu0 %v3175
      %v3300 = vpop.f32.mrf.mxu0
      %v3301 = vadd.f32 0.0, %v3300
      %v3302 = vpop.f32.mrf.mxu0
      %v3303 = vadd.f32 0.0, %v3302
      %3304 = vmatmul.bf16.gmra.mxu0 %v3178
      %v3305 = vpop.f32.mrf.mxu0
      %v3306 = vadd.f32 0.0, %v3305
      %v3307 = vpop.f32.mrf.mxu0
      %v3308 = vadd.f32 0.0, %v3307
      %3309 = vmatmul.bf16.gmra.mxu0 %v3181
      %v3310 = vpop.f32.mrf.mxu0
      %v3311 = vadd.f32 0.0, %v3310
      %v3312 = vpop.f32.mrf.mxu0
      %v3313 = vadd.f32 0.0, %v3312
      %3314 = vmatmul.bf16.gmra.mxu0 %v3184
      %v3315 = vpop.f32.mrf.mxu0
      %v3316 = vadd.f32 0.0, %v3315
      %v3317 = vpop.f32.mrf.mxu0
      %v3318 = vadd.f32 0.0, %v3317
      %3319 = vmatmul.bf16.gmra.mxu0 %v3187
      %v3320 = vpop.f32.mrf.mxu0
      %v3321 = vadd.f32 0.0, %v3320
      %v3322 = vpop.f32.mrf.mxu0
      %v3323 = vadd.f32 0.0, %v3322
      %3324 = vmatmul.bf16.gmra.mxu0 %v3190
      %v3325 = vpop.f32.mrf.mxu0
      %v3326 = vadd.f32 0.0, %v3325
      %v3327 = vpop.f32.mrf.mxu0
      %v3328 = vadd.f32 0.0, %v3327
      %3329 = vmatmul.bf16.gmra.mxu0 %v3193
      %v3330 = vpop.f32.mrf.mxu0
      %v3331 = vadd.f32 0.0, %v3330
      %v3332 = vpop.f32.mrf.mxu0
      %v3333 = vadd.f32 0.0, %v3332
      %3334 = vmatmul.bf16.gmra.mxu0 %v3196
      %v3335 = vpop.f32.mrf.mxu0
      %v3336 = vadd.f32 0.0, %v3335
      %v3337 = vpop.f32.mrf.mxu0
      %v3338 = vadd.f32 0.0, %v3337
      %3339 = vmatmul.bf16.gmra.mxu0 %v3199
      %v3340 = vpop.f32.mrf.mxu0
      %v3341 = vadd.f32 0.0, %v3340
      %v3342 = vpop.f32.mrf.mxu0
      %v3343 = vadd.f32 0.0, %v3342
      %3344 = vmatmul.bf16.gmra.mxu0 %v3202
      %v3345 = vpop.f32.mrf.mxu0
      %v3346 = vadd.f32 0.0, %v3345
      %v3347 = vpop.f32.mrf.mxu0
      %v3348 = vadd.f32 0.0, %v3347
      %3349 = vmatmul.bf16.gmra.mxu0 %v3205
      %v3350 = vpop.f32.mrf.mxu0
      %v3351 = vadd.f32 0.0, %v3350
      %v3352 = vpop.f32.mrf.mxu0
      %v3353 = vadd.f32 0.0, %v3352
      %3354 = vmatmul.bf16.gmra.mxu0 %v3208
      %v3355 = vpop.f32.mrf.mxu0
      %v3356 = vadd.f32 0.0, %v3355
      %v3357 = vpop.f32.mrf.mxu0
      %v3358 = vadd.f32 0.0, %v3357
      %3359 = vmatmul.bf16.gmra.mxu0 %v3211
      %v3360 = vpop.f32.mrf.mxu0
      %v3361 = vadd.f32 0.0, %v3360
      %v3362 = vpop.f32.mrf.mxu0
      %v3363 = vadd.f32 0.0, %v3362
      %3364 = vmatmul.bf16.gmra.mxu0 %v3214
      %v3365 = vpop.f32.mrf.mxu0
      %v3366 = vadd.f32 0.0, %v3365
      %v3367 = vpop.f32.mrf.mxu0
      %v3368 = vadd.f32 0.0, %v3367
      %3369 = vmatmul.bf16.gmra.mxu0 %v3217
      %v3370 = vpop.f32.mrf.mxu0
      %v3371 = vadd.f32 0.0, %v3370
      %v3372 = vpop.f32.mrf.mxu0
      %v3373 = vadd.f32 0.0, %v3372
      %3374 = vmatmul.bf16.gmra.mxu0 %v3220
      %v3375 = vpop.f32.mrf.mxu0
      %v3376 = vadd.f32 0.0, %v3375
      %v3377 = vpop.f32.mrf.mxu0
      %v3378 = vadd.f32 0.0, %v3377
      %3379 = vmatmul.bf16.gmra.mxu0 %v3223
      %v3380 = vpop.f32.mrf.mxu0
      %v3381 = vadd.f32 0.0, %v3380
      %v3382 = vpop.f32.mrf.mxu0
      %v3383 = vadd.f32 0.0, %v3382
      %3384 = vmatmul.bf16.gmra.mxu0 %v3226
      %v3385 = vpop.f32.mrf.mxu0
      %v3386 = vadd.f32 0.0, %v3385
      %v3387 = vpop.f32.mrf.mxu0
      %v3388 = vadd.f32 0.0, %v3387
      %3389 = vmatmul.bf16.gmra.mxu0 %v3229
      %v3390 = vpop.f32.mrf.mxu0
      %v3391 = vadd.f32 0.0, %v3390
      %v3392 = vpop.f32.mrf.mxu0
      %v3393 = vadd.f32 0.0, %v3392
      %3394 = vmatmul.bf16.gmra.mxu0 %v3232
      %v3395 = vpop.f32.mrf.mxu0
      %v3396 = vadd.f32 0.0, %v3395
      %v3397 = vpop.f32.mrf.mxu0
      %v3398 = vadd.f32 0.0, %v3397
      %3399 = vmatmul.bf16.gmra.mxu0 %v3235
      %v3400 = vpop.f32.mrf.mxu0
      %v3401 = vadd.f32 0.0, %v3400
      %v3402 = vpop.f32.mrf.mxu0
      %v3403 = vadd.f32 0.0, %v3402
      %3404 = vmatmul.bf16.gmra.mxu0 %v3238
      %v3405 = vpop.f32.mrf.mxu0
      %v3406 = vadd.f32 0.0, %v3405
      %v3407 = vpop.f32.mrf.mxu0
      %v3408 = vadd.f32 0.0, %v3407
      %3409 = vmatmul.bf16.gmra.mxu0 %v3241
      %v3410 = vpop.f32.mrf.mxu0
      %v3411 = vadd.f32 0.0, %v3410
      %v3412 = vpop.f32.mrf.mxu0
      %v3413 = vadd.f32 0.0, %v3412
      %3414 = vmatmul.bf16.gmra.mxu0 %v3244
      %v3415 = vpop.f32.mrf.mxu0
      %v3416 = vadd.f32 0.0, %v3415
      %v3417 = vpop.f32.mrf.mxu0
      %v3418 = vadd.f32 0.0, %v3417
      %3419 = vmatmul.bf16.gmra.mxu0 %v3247
      %v3420 = vpop.f32.mrf.mxu0
      %v3421 = vadd.f32 0.0, %v3420
      %v3422 = vpop.f32.mrf.mxu0
      %v3423 = vadd.f32 0.0, %v3422
      %3424 = vdwg.mxu0
      %v3441 = vunpack.c.l.b16 %v3033
      %v3442 = vunpack.c.l.b16 %v3034
      %v3443 = vunpack.c.l.b16 %v3035
      %v3444 = vunpack.c.l.b16 %v3036
      %v3445 = vunpack.c.l.b16 %v3037
      %v3446 = vunpack.c.l.b16 %v3038
      %v3447 = vunpack.c.l.b16 %v3039
      %v3448 = vunpack.c.l.b16 %v3040
      %v3449 = vunpack.c.l.b16 %v3041
      %v3450 = vunpack.c.l.b16 %v3042
      %v3451 = vunpack.c.l.b16 %v3043
      %v3452 = vunpack.c.l.b16 %v3044
      %v3453 = vunpack.c.l.b16 %v3045
      %v3454 = vunpack.c.l.b16 %v3046
      %v3455 = vunpack.c.l.b16 %v3047
      %v3456 = vunpack.c.l.b16 %v3048
      %v3457 = vpack.c.b16 %v3442, %v3441
      %v3458 = vpack.c.b16 %v3444, %v3443
      %v3459 = vpack.c.b16 %v3446, %v3445
      %v3460 = vpack.c.b16 %v3448, %v3447
      %v3461 = vpack.c.b16 %v3450, %v3449
      %v3462 = vpack.c.b16 %v3452, %v3451
      %v3463 = vpack.c.b16 %v3454, %v3453
      %v3464 = vpack.c.b16 %v3456, %v3455
      %3473 = vmatpush.bf16.msra.mxu0 %v3464
      %3474 = vmatpush.bf16.msra.mxu0 %v3463
      %3475 = vmatpush.bf16.msra.mxu0 %v3462
      %3476 = vmatpush.bf16.msra.mxu0 %v3461
      %3477 = vmatpush.bf16.msra.mxu0 %v3460
      %3478 = vmatpush.bf16.msra.mxu0 %v3459
      %3479 = vmatpush.bf16.msra.mxu0 %v3458
      %3480 = vmatpush.bf16.msra.mxu0 %v3457
      %3481 = vmatmul.bf16.gmra.mxu0 %v3001
      %v3482 = vpop.f32.mrf.mxu0
      %v3483 = vadd.f32 %v3266, %v3482
      %v3484 = vpop.f32.mrf.mxu0
      %v3485 = vadd.f32 %v3268, %v3484
      %3486 = vmatmul.bf16.gmra.mxu0 %v3002
      %v3487 = vpop.f32.mrf.mxu0
      %v3488 = vadd.f32 %v3271, %v3487
      %v3489 = vpop.f32.mrf.mxu0
      %v3490 = vadd.f32 %v3273, %v3489
      %3491 = vmatmul.bf16.gmra.mxu0 %v3003
      %v3492 = vpop.f32.mrf.mxu0
      %v3493 = vadd.f32 %v3276, %v3492
      %v3494 = vpop.f32.mrf.mxu0
      %v3495 = vadd.f32 %v3278, %v3494
      %3496 = vmatmul.bf16.gmra.mxu0 %v3004
      %v3497 = vpop.f32.mrf.mxu0
      %v3498 = vadd.f32 %v3281, %v3497
      %v3499 = vpop.f32.mrf.mxu0
      %v3500 = vadd.f32 %v3283, %v3499
      %3501 = vmatmul.bf16.gmra.mxu0 %v3005
      %v3502 = vpop.f32.mrf.mxu0
      %v3503 = vadd.f32 %v3286, %v3502
      %v3504 = vpop.f32.mrf.mxu0
      %v3505 = vadd.f32 %v3288, %v3504
      %3506 = vmatmul.bf16.gmra.mxu0 %v3006
      %v3507 = vpop.f32.mrf.mxu0
      %v3508 = vadd.f32 %v3291, %v3507
      %v3509 = vpop.f32.mrf.mxu0
      %v3510 = vadd.f32 %v3293, %v3509
      %3511 = vmatmul.bf16.gmra.mxu0 %v3007
      %v3512 = vpop.f32.mrf.mxu0
      %v3513 = vadd.f32 %v3296, %v3512
      %v3514 = vpop.f32.mrf.mxu0
      %v3515 = vadd.f32 %v3298, %v3514
      %3516 = vmatmul.bf16.gmra.mxu0 %v3008
      %v3517 = vpop.f32.mrf.mxu0
      %v3518 = vadd.f32 %v3301, %v3517
      %v3519 = vpop.f32.mrf.mxu0
      %v3520 = vadd.f32 %v3303, %v3519
      %3521 = vmatmul.bf16.gmra.mxu0 %v3009
      %v3522 = vpop.f32.mrf.mxu0
      %v3523 = vadd.f32 %v3306, %v3522
      %v3524 = vpop.f32.mrf.mxu0
      %v3525 = vadd.f32 %v3308, %v3524
      %3526 = vmatmul.bf16.gmra.mxu0 %v3010
      %v3527 = vpop.f32.mrf.mxu0
      %v3528 = vadd.f32 %v3311, %v3527
      %v3529 = vpop.f32.mrf.mxu0
      %v3530 = vadd.f32 %v3313, %v3529
      %3531 = vmatmul.bf16.gmra.mxu0 %v3011
      %v3532 = vpop.f32.mrf.mxu0
      %v3533 = vadd.f32 %v3316, %v3532
      %v3534 = vpop.f32.mrf.mxu0
      %v3535 = vadd.f32 %v3318, %v3534
      %3536 = vmatmul.bf16.gmra.mxu0 %v3012
      %v3537 = vpop.f32.mrf.mxu0
      %v3538 = vadd.f32 %v3321, %v3537
      %v3539 = vpop.f32.mrf.mxu0
      %v3540 = vadd.f32 %v3323, %v3539
      %3541 = vmatmul.bf16.gmra.mxu0 %v3013
      %v3542 = vpop.f32.mrf.mxu0
      %v3543 = vadd.f32 %v3326, %v3542
      %v3544 = vpop.f32.mrf.mxu0
      %v3545 = vadd.f32 %v3328, %v3544
      %3546 = vmatmul.bf16.gmra.mxu0 %v3014
      %v3547 = vpop.f32.mrf.mxu0
      %v3548 = vadd.f32 %v3331, %v3547
      %v3549 = vpop.f32.mrf.mxu0
      %v3550 = vadd.f32 %v3333, %v3549
      %3551 = vmatmul.bf16.gmra.mxu0 %v3015
      %v3552 = vpop.f32.mrf.mxu0
      %v3553 = vadd.f32 %v3336, %v3552
      %v3554 = vpop.f32.mrf.mxu0
      %v3555 = vadd.f32 %v3338, %v3554
      %3556 = vmatmul.bf16.gmra.mxu0 %v3016
      %v3557 = vpop.f32.mrf.mxu0
      %v3558 = vadd.f32 %v3341, %v3557
      %v3559 = vpop.f32.mrf.mxu0
      %v3560 = vadd.f32 %v3343, %v3559
      %3561 = vmatmul.bf16.gmra.mxu0 %v3017
      %v3562 = vpop.f32.mrf.mxu0
      %v3563 = vadd.f32 %v3346, %v3562
      %v3564 = vpop.f32.mrf.mxu0
      %v3565 = vadd.f32 %v3348, %v3564
      %3566 = vmatmul.bf16.gmra.mxu0 %v3018
      %v3567 = vpop.f32.mrf.mxu0
      %v3568 = vadd.f32 %v3351, %v3567
      %v3569 = vpop.f32.mrf.mxu0
      %v3570 = vadd.f32 %v3353, %v3569
      %3571 = vmatmul.bf16.gmra.mxu0 %v3019
      %v3572 = vpop.f32.mrf.mxu0
      %v3573 = vadd.f32 %v3356, %v3572
      %v3574 = vpop.f32.mrf.mxu0
      %v3575 = vadd.f32 %v3358, %v3574
      %3576 = vmatmul.bf16.gmra.mxu0 %v3020
      %v3577 = vpop.f32.mrf.mxu0
      %v3578 = vadd.f32 %v3361, %v3577
      %v3579 = vpop.f32.mrf.mxu0
      %v3580 = vadd.f32 %v3363, %v3579
      %3581 = vmatmul.bf16.gmra.mxu0 %v3021
      %v3582 = vpop.f32.mrf.mxu0
      %v3583 = vadd.f32 %v3366, %v3582
      %v3584 = vpop.f32.mrf.mxu0
      %v3585 = vadd.f32 %v3368, %v3584
      %3586 = vmatmul.bf16.gmra.mxu0 %v3022
      %v3587 = vpop.f32.mrf.mxu0
      %v3588 = vadd.f32 %v3371, %v3587
      %v3589 = vpop.f32.mrf.mxu0
      %v3590 = vadd.f32 %v3373, %v3589
      %3591 = vmatmul.bf16.gmra.mxu0 %v3023
      %v3592 = vpop.f32.mrf.mxu0
      %v3593 = vadd.f32 %v3376, %v3592
      %v3594 = vpop.f32.mrf.mxu0
      %v3595 = vadd.f32 %v3378, %v3594
      %3596 = vmatmul.bf16.gmra.mxu0 %v3024
      %v3597 = vpop.f32.mrf.mxu0
      %v3598 = vadd.f32 %v3381, %v3597
      %v3599 = vpop.f32.mrf.mxu0
      %v3600 = vadd.f32 %v3383, %v3599
      %3601 = vmatmul.bf16.gmra.mxu0 %v3025
      %v3602 = vpop.f32.mrf.mxu0
      %v3603 = vadd.f32 %v3386, %v3602
      %v3604 = vpop.f32.mrf.mxu0
      %v3605 = vadd.f32 %v3388, %v3604
      %3606 = vmatmul.bf16.gmra.mxu0 %v3026
      %v3607 = vpop.f32.mrf.mxu0
      %v3608 = vadd.f32 %v3391, %v3607
      %v3609 = vpop.f32.mrf.mxu0
      %v3610 = vadd.f32 %v3393, %v3609
      %3611 = vmatmul.bf16.gmra.mxu0 %v3027
      %v3612 = vpop.f32.mrf.mxu0
      %v3613 = vadd.f32 %v3396, %v3612
      %v3614 = vpop.f32.mrf.mxu0
      %v3615 = vadd.f32 %v3398, %v3614
      %3616 = vmatmul.bf16.gmra.mxu0 %v3028
      %v3617 = vpop.f32.mrf.mxu0
      %v3618 = vadd.f32 %v3401, %v3617
      %v3619 = vpop.f32.mrf.mxu0
      %v3620 = vadd.f32 %v3403, %v3619
      %3621 = vmatmul.bf16.gmra.mxu0 %v3029
      %v3622 = vpop.f32.mrf.mxu0
      %v3623 = vadd.f32 %v3406, %v3622
      %v3624 = vpop.f32.mrf.mxu0
      %v3625 = vadd.f32 %v3408, %v3624
      %3626 = vmatmul.bf16.gmra.mxu0 %v3030
      %v3627 = vpop.f32.mrf.mxu0
      %v3628 = vadd.f32 %v3411, %v3627
      %v3629 = vpop.f32.mrf.mxu0
      %v3630 = vadd.f32 %v3413, %v3629
      %3631 = vmatmul.bf16.gmra.mxu0 %v3031
      %v3632 = vpop.f32.mrf.mxu0
      %v3633 = vadd.f32 %v3416, %v3632
      %v3634 = vpop.f32.mrf.mxu0
      %v3635 = vadd.f32 %v3418, %v3634
      %3636 = vmatmul.bf16.gmra.mxu0 %v3032
      %v3637 = vpop.f32.mrf.mxu0
      %v3638 = vadd.f32 %v3421, %v3637
      %v3639 = vpop.f32.mrf.mxu0
      %v3640 = vadd.f32 %v3423, %v3639
      %3641 = vdwg.mxu0
      %v3642 = vld [vmem:[%s16] sm:$0x1]
      %v3644 = vperm.slane %v3642, 0
      %v3646 = vadd.f32 %v3483, %v3644
      %v3647 = vadd.f32 %v3485, %v3644
      %v3648 = vadd.f32 %v3488, %v3644
      %v3649 = vadd.f32 %v3490, %v3644
      %v3650 = vadd.f32 %v3493, %v3644
      %v3651 = vadd.f32 %v3495, %v3644
      %v3652 = vadd.f32 %v3498, %v3644
      %v3653 = vadd.f32 %v3500, %v3644
      %v3654 = vadd.f32 %v3503, %v3644
      %v3655 = vadd.f32 %v3505, %v3644
      %v3656 = vadd.f32 %v3508, %v3644
      %v3657 = vadd.f32 %v3510, %v3644
      %v3658 = vadd.f32 %v3513, %v3644
      %v3659 = vadd.f32 %v3515, %v3644
      %v3660 = vadd.f32 %v3518, %v3644
      %v3661 = vadd.f32 %v3520, %v3644
      %v3662 = vadd.f32 %v3523, %v3644
      %v3663 = vadd.f32 %v3525, %v3644
      %v3664 = vadd.f32 %v3528, %v3644
      %v3665 = vadd.f32 %v3530, %v3644
      %v3666 = vadd.f32 %v3533, %v3644
      %v3667 = vadd.f32 %v3535, %v3644
      %v3668 = vadd.f32 %v3538, %v3644
      %v3669 = vadd.f32 %v3540, %v3644
      %v3670 = vadd.f32 %v3543, %v3644
      %v3671 = vadd.f32 %v3545, %v3644
      %v3672 = vadd.f32 %v3548, %v3644
      %v3673 = vadd.f32 %v3550, %v3644
      %v3674 = vadd.f32 %v3553, %v3644
      %v3675 = vadd.f32 %v3555, %v3644
      %v3676 = vadd.f32 %v3558, %v3644
      %v3677 = vadd.f32 %v3560, %v3644
      %v3678 = vadd.f32 %v3563, %v3644
      %v3679 = vadd.f32 %v3565, %v3644
      %v3680 = vadd.f32 %v3568, %v3644
      %v3681 = vadd.f32 %v3570, %v3644
      %v3682 = vadd.f32 %v3573, %v3644
      %v3683 = vadd.f32 %v3575, %v3644
      %v3684 = vadd.f32 %v3578, %v3644
      %v3685 = vadd.f32 %v3580, %v3644
      %v3686 = vadd.f32 %v3583, %v3644
      %v3687 = vadd.f32 %v3585, %v3644
      %v3688 = vadd.f32 %v3588, %v3644
      %v3689 = vadd.f32 %v3590, %v3644
      %v3690 = vadd.f32 %v3593, %v3644
      %v3691 = vadd.f32 %v3595, %v3644
      %v3692 = vadd.f32 %v3598, %v3644
      %v3693 = vadd.f32 %v3600, %v3644
      %v3694 = vadd.f32 %v3603, %v3644
      %v3695 = vadd.f32 %v3605, %v3644
      %v3696 = vadd.f32 %v3608, %v3644
      %v3697 = vadd.f32 %v3610, %v3644
      %v3698 = vadd.f32 %v3613, %v3644
      %v3699 = vadd.f32 %v3615, %v3644
      %v3700 = vadd.f32 %v3618, %v3644
      %v3701 = vadd.f32 %v3620, %v3644
      %v3702 = vadd.f32 %v3623, %v3644
      %v3703 = vadd.f32 %v3625, %v3644
      %v3704 = vadd.f32 %v3628, %v3644
      %v3705 = vadd.f32 %v3630, %v3644
      %v3706 = vadd.f32 %v3633, %v3644
      %v3707 = vadd.f32 %v3635, %v3644
      %v3708 = vadd.f32 %v3638, %v3644
      %v3709 = vadd.f32 %v3640, %v3644
      %v3710 = vadd.f32 %v3646, %v3647
      %v3711 = vadd.f32 %v3648, %v3649
      %v3712 = vadd.f32 %v3650, %v3651
      %v3713 = vadd.f32 %v3652, %v3653
      %v3714 = vadd.f32 %v3654, %v3655
      %v3715 = vadd.f32 %v3656, %v3657
      %v3716 = vadd.f32 %v3658, %v3659
      %v3717 = vadd.f32 %v3660, %v3661
      %v3718 = vadd.f32 %v3662, %v3663
      %v3719 = vadd.f32 %v3664, %v3665
      %v3720 = vadd.f32 %v3666, %v3667
      %v3721 = vadd.f32 %v3668, %v3669
      %v3722 = vadd.f32 %v3670, %v3671
      %v3723 = vadd.f32 %v3672, %v3673
      %v3724 = vadd.f32 %v3674, %v3675
      %v3725 = vadd.f32 %v3676, %v3677
      %v3726 = vadd.f32 %v3678, %v3679
      %v3727 = vadd.f32 %v3680, %v3681
      %v3728 = vadd.f32 %v3682, %v3683
      %v3729 = vadd.f32 %v3684, %v3685
      %v3730 = vadd.f32 %v3686, %v3687
      %v3731 = vadd.f32 %v3688, %v3689
      %v3732 = vadd.f32 %v3690, %v3691
      %v3733 = vadd.f32 %v3692, %v3693
      %v3734 = vadd.f32 %v3694, %v3695
      %v3735 = vadd.f32 %v3696, %v3697
      %v3736 = vadd.f32 %v3698, %v3699
      %v3737 = vadd.f32 %v3700, %v3701
      %v3738 = vadd.f32 %v3702, %v3703
      %v3739 = vadd.f32 %v3704, %v3705
      %v3740 = vadd.f32 %v3706, %v3707
      %v3741 = vadd.f32 %v3708, %v3709
      %v3742 = vmul.f32 %v3710, 0.5
      %v3743 = vmul.f32 %v3711, 0.5
      %v3744 = vmul.f32 %v3712, 0.5
      %v3745 = vmul.f32 %v3713, 0.5
      %v3746 = vmul.f32 %v3714, 0.5
      %v3747 = vmul.f32 %v3715, 0.5
      %v3748 = vmul.f32 %v3716, 0.5
      %v3749 = vmul.f32 %v3717, 0.5
      %v3750 = vmul.f32 %v3718, 0.5
      %v3751 = vmul.f32 %v3719, 0.5
      %v3752 = vmul.f32 %v3720, 0.5
      %v3753 = vmul.f32 %v3721, 0.5
      %v3754 = vmul.f32 %v3722, 0.5
      %v3755 = vmul.f32 %v3723, 0.5
      %v3756 = vmul.f32 %v3724, 0.5
      %v3757 = vmul.f32 %v3725, 0.5
      %v3758 = vmul.f32 %v3726, 0.5
      %v3759 = vmul.f32 %v3727, 0.5
      %v3760 = vmul.f32 %v3728, 0.5
      %v3761 = vmul.f32 %v3729, 0.5
      %v3762 = vmul.f32 %v3730, 0.5
      %v3763 = vmul.f32 %v3731, 0.5
      %v3764 = vmul.f32 %v3732, 0.5
      %v3765 = vmul.f32 %v3733, 0.5
      %v3766 = vmul.f32 %v3734, 0.5
      %v3767 = vmul.f32 %v3735, 0.5
      %v3768 = vmul.f32 %v3736, 0.5
      %v3769 = vmul.f32 %v3737, 0.5
      %v3770 = vmul.f32 %v3738, 0.5
      %v3771 = vmul.f32 %v3739, 0.5
      %v3772 = vmul.f32 %v3740, 0.5
      %v3773 = vmul.f32 %v3741, 0.5
      %v3774 = vmax.f32 %v3742, 0.0
      %v3775 = vmax.f32 %v3743, 0.0
      %v3776 = vmax.f32 %v3744, 0.0
      %v3777 = vmax.f32 %v3745, 0.0
      %v3778 = vmax.f32 %v3746, 0.0
      %v3779 = vmax.f32 %v3747, 0.0
      %v3780 = vmax.f32 %v3748, 0.0
      %v3781 = vmax.f32 %v3749, 0.0
      %v3782 = vmax.f32 %v3750, 0.0
      %v3783 = vmax.f32 %v3751, 0.0
      %v3784 = vmax.f32 %v3752, 0.0
      %v3785 = vmax.f32 %v3753, 0.0
      %v3786 = vmax.f32 %v3754, 0.0
      %v3787 = vmax.f32 %v3755, 0.0
      %v3788 = vmax.f32 %v3756, 0.0
      %v3789 = vmax.f32 %v3757, 0.0
      %v3790 = vmax.f32 %v3758, 0.0
      %v3791 = vmax.f32 %v3759, 0.0
      %v3792 = vmax.f32 %v3760, 0.0
      %v3793 = vmax.f32 %v3761, 0.0
      %v3794 = vmax.f32 %v3762, 0.0
      %v3795 = vmax.f32 %v3763, 0.0
      %v3796 = vmax.f32 %v3764, 0.0
      %v3797 = vmax.f32 %v3765, 0.0
      %v3798 = vmax.f32 %v3766, 0.0
      %v3799 = vmax.f32 %v3767, 0.0
      %v3800 = vmax.f32 %v3768, 0.0
      %v3801 = vmax.f32 %v3769, 0.0
      %v3802 = vmax.f32 %v3770, 0.0
      %v3803 = vmax.f32 %v3771, 0.0
      %v3804 = vmax.f32 %v3772, 0.0
      %v3805 = vmax.f32 %v3773, 0.0
      %v3806 = vpack.c.bf16 %v3775, %v3774
      %v3807 = vpack.c.bf16 %v3777, %v3776
      %v3808 = vpack.c.bf16 %v3779, %v3778
      %v3809 = vpack.c.bf16 %v3781, %v3780
      %v3810 = vpack.c.bf16 %v3783, %v3782
      %v3811 = vpack.c.bf16 %v3785, %v3784
      %v3812 = vpack.c.bf16 %v3787, %v3786
      %v3813 = vpack.c.bf16 %v3789, %v3788
      %v3814 = vpack.c.bf16 %v3791, %v3790
      %v3815 = vpack.c.bf16 %v3793, %v3792
      %v3816 = vpack.c.bf16 %v3795, %v3794
      %v3817 = vpack.c.bf16 %v3797, %v3796
      %v3818 = vpack.c.bf16 %v3799, %v3798
      %v3819 = vpack.c.bf16 %v3801, %v3800
      %v3820 = vpack.c.bf16 %v3803, %v3802
      %v3821 = vpack.c.bf16 %v3805, %v3804
      %v3822 = vld [vmem:[%s17] sm:$0xf]
      %v3823 = vld [vmem:[%s17 + $0x4] sm:$0xf]
      %v3824 = vld [vmem:[%s17 + $0x8] sm:$0xf]
      %v3825 = vld [vmem:[%s17 + $0xc] sm:$0xf]
      %v3826 = vld [vmem:[%s17 + $0x10] sm:$0xf]
      %v3827 = vld [vmem:[%s17 + $0x14] sm:$0xf]
      %v3828 = vld [vmem:[%s17 + $0x18] sm:$0xf]
      %v3829 = vld [vmem:[%s17 + $0x1c] sm:$0xf]
      %v3830 = vld [vmem:[%s17 + $0x20] sm:$0xf]
      %v3831 = vld [vmem:[%s17 + $0x24] sm:$0xf]
      %v3832 = vld [vmem:[%s17 + $0x28] sm:$0xf]
      %v3833 = vld [vmem:[%s17 + $0x2c] sm:$0xf]
      %v3834 = vld [vmem:[%s17 + $0x30] sm:$0xf]
      %v3835 = vld [vmem:[%s17 + $0x34] sm:$0xf]
      %v3836 = vld [vmem:[%s17 + $0x38] sm:$0xf]
      %v3837 = vld [vmem:[%s17 + $0x3c] sm:$0xf]
      %v3838 = vld [vmem:[%s18] sm:$0x1]
      %v3840 = vperm.slane %v3838, 0
      %v3858 = vunpack.c.l.b16 %v3822
      %v3859 = vunpack.c.l.b16 %v3823
      %v3860 = vunpack.c.l.b16 %v3824
      %v3861 = vunpack.c.l.b16 %v3825
      %v3862 = vunpack.c.l.b16 %v3826
      %v3863 = vunpack.c.l.b16 %v3827
      %v3864 = vunpack.c.l.b16 %v3828
      %v3865 = vunpack.c.l.b16 %v3829
      %v3866 = vunpack.c.l.b16 %v3830
      %v3867 = vunpack.c.l.b16 %v3831
      %v3868 = vunpack.c.l.b16 %v3832
      %v3869 = vunpack.c.l.b16 %v3833
      %v3870 = vunpack.c.l.b16 %v3834
      %v3871 = vunpack.c.l.b16 %v3835
      %v3872 = vunpack.c.l.b16 %v3836
      %v3873 = vunpack.c.l.b16 %v3837
      %v3874 = vpack.c.b16 %v3859, %v3858
      %v3875 = vpack.c.b16 %v3861, %v3860
      %v3876 = vpack.c.b16 %v3863, %v3862
      %v3877 = vpack.c.b16 %v3865, %v3864
      %v3878 = vpack.c.b16 %v3867, %v3866
      %v3879 = vpack.c.b16 %v3869, %v3868
      %v3880 = vpack.c.b16 %v3871, %v3870
      %v3881 = vpack.c.b16 %v3873, %v3872
      %3890 = vmatpush.bf16.msra.mxu0 %v3881
      %3891 = vmatpush.bf16.msra.mxu0 %v3880
      %3892 = vmatpush.bf16.msra.mxu0 %v3879
      %3893 = vmatpush.bf16.msra.mxu0 %v3878
      %3894 = vmatpush.bf16.msra.mxu0 %v3877
      %3895 = vmatpush.bf16.msra.mxu0 %v3876
      %3896 = vmatpush.bf16.msra.mxu0 %v3875
      %3897 = vmatpush.bf16.msra.mxu0 %v3874
      %3898 = vmatmul.bf16.gmra.mxu0 %v3806
      %v3899 = vpop.f32.mrf.mxu0
      %v3900 = vadd.f32 %v3840, %v3899
      %v3901 = vpop.f32.mrf.mxu0
      %v3902 = vadd.f32 %v3840, %v3901
      %3903 = vmatmul.bf16.gmra.mxu0 %v3807
      %v3904 = vpop.f32.mrf.mxu0
      %v3905 = vadd.f32 %v3840, %v3904
      %v3906 = vpop.f32.mrf.mxu0
      %v3907 = vadd.f32 %v3840, %v3906
      %3908 = vmatmul.bf16.gmra.mxu0 %v3808
      %v3909 = vpop.f32.mrf.mxu0
      %v3910 = vadd.f32 %v3840, %v3909
      %v3911 = vpop.f32.mrf.mxu0
      %v3912 = vadd.f32 %v3840, %v3911
      %3913 = vmatmul.bf16.gmra.mxu0 %v3809
      %v3914 = vpop.f32.mrf.mxu0
      %v3915 = vadd.f32 %v3840, %v3914
      %v3916 = vpop.f32.mrf.mxu0
      %v3917 = vadd.f32 %v3840, %v3916
      %3918 = vmatmul.bf16.gmra.mxu0 %v3810
      %v3919 = vpop.f32.mrf.mxu0
      %v3920 = vadd.f32 %v3840, %v3919
      %v3921 = vpop.f32.mrf.mxu0
      %v3922 = vadd.f32 %v3840, %v3921
      %3923 = vmatmul.bf16.gmra.mxu0 %v3811
      %v3924 = vpop.f32.mrf.mxu0
      %v3925 = vadd.f32 %v3840, %v3924
      %v3926 = vpop.f32.mrf.mxu0
      %v3927 = vadd.f32 %v3840, %v3926
      %3928 = vmatmul.bf16.gmra.mxu0 %v3812
      %v3929 = vpop.f32.mrf.mxu0
      %v3930 = vadd.f32 %v3840, %v3929
      %v3931 = vpop.f32.mrf.mxu0
      %v3932 = vadd.f32 %v3840, %v3931
      %3933 = vmatmul.bf16.gmra.mxu0 %v3813
      %v3934 = vpop.f32.mrf.mxu0
      %v3935 = vadd.f32 %v3840, %v3934
      %v3936 = vpop.f32.mrf.mxu0
      %v3937 = vadd.f32 %v3840, %v3936
      %3938 = vmatmul.bf16.gmra.mxu0 %v3814
      %v3939 = vpop.f32.mrf.mxu0
      %v3940 = vadd.f32 %v3840, %v3939
      %v3941 = vpop.f32.mrf.mxu0
      %v3942 = vadd.f32 %v3840, %v3941
      %3943 = vmatmul.bf16.gmra.mxu0 %v3815
      %v3944 = vpop.f32.mrf.mxu0
      %v3945 = vadd.f32 %v3840, %v3944
      %v3946 = vpop.f32.mrf.mxu0
      %v3947 = vadd.f32 %v3840, %v3946
      %3948 = vmatmul.bf16.gmra.mxu0 %v3816
      %v3949 = vpop.f32.mrf.mxu0
      %v3950 = vadd.f32 %v3840, %v3949
      %v3951 = vpop.f32.mrf.mxu0
      %v3952 = vadd.f32 %v3840, %v3951
      %3953 = vmatmul.bf16.gmra.mxu0 %v3817
      %v3954 = vpop.f32.mrf.mxu0
      %v3955 = vadd.f32 %v3840, %v3954
      %v3956 = vpop.f32.mrf.mxu0
      %v3957 = vadd.f32 %v3840, %v3956
      %3958 = vmatmul.bf16.gmra.mxu0 %v3818
      %v3959 = vpop.f32.mrf.mxu0
      %v3960 = vadd.f32 %v3840, %v3959
      %v3961 = vpop.f32.mrf.mxu0
      %v3962 = vadd.f32 %v3840, %v3961
      %3963 = vmatmul.bf16.gmra.mxu0 %v3819
      %v3964 = vpop.f32.mrf.mxu0
      %v3965 = vadd.f32 %v3840, %v3964
      %v3966 = vpop.f32.mrf.mxu0
      %v3967 = vadd.f32 %v3840, %v3966
      %3968 = vmatmul.bf16.gmra.mxu0 %v3820
      %v3969 = vpop.f32.mrf.mxu0
      %v3970 = vadd.f32 %v3840, %v3969
      %v3971 = vpop.f32.mrf.mxu0
      %v3972 = vadd.f32 %v3840, %v3971
      %3973 = vmatmul.bf16.gmra.mxu0 %v3821
      %v3974 = vpop.f32.mrf.mxu0
      %v3975 = vadd.f32 %v3840, %v3974
      %v3976 = vpop.f32.mrf.mxu0
      %v3977 = vadd.f32 %v3840, %v3976
      %3978 = vdwg.mxu0
      %v3979 = vmax.f32 %v3900, 0.0
      %v3980 = vmax.f32 %v3902, 0.0
      %v3981 = vmax.f32 %v3905, 0.0
      %v3982 = vmax.f32 %v3907, 0.0
      %v3983 = vmax.f32 %v3910, 0.0
      %v3984 = vmax.f32 %v3912, 0.0
      %v3985 = vmax.f32 %v3915, 0.0
      %v3986 = vmax.f32 %v3917, 0.0
      %v3987 = vmax.f32 %v3920, 0.0
      %v3988 = vmax.f32 %v3922, 0.0
      %v3989 = vmax.f32 %v3925, 0.0
      %v3990 = vmax.f32 %v3927, 0.0
      %v3991 = vmax.f32 %v3930, 0.0
      %v3992 = vmax.f32 %v3932, 0.0
      %v3993 = vmax.f32 %v3935, 0.0
      %v3994 = vmax.f32 %v3937, 0.0
      %v3995 = vmax.f32 %v3940, 0.0
      %v3996 = vmax.f32 %v3942, 0.0
      %v3997 = vmax.f32 %v3945, 0.0
      %v3998 = vmax.f32 %v3947, 0.0
      %v3999 = vmax.f32 %v3950, 0.0
      %v4000 = vmax.f32 %v3952, 0.0
      %v4001 = vmax.f32 %v3955, 0.0
      %v4002 = vmax.f32 %v3957, 0.0
      %v4003 = vmax.f32 %v3960, 0.0
      %v4004 = vmax.f32 %v3962, 0.0
      %v4005 = vmax.f32 %v3965, 0.0
      %v4006 = vmax.f32 %v3967, 0.0
      %v4007 = vmax.f32 %v3970, 0.0
      %v4008 = vmax.f32 %v3972, 0.0
      %v4009 = vmax.f32 %v3975, 0.0
      %v4010 = vmax.f32 %v3977, 0.0
      %v4011 = vpack.c.bf16 %v3980, %v3979
      %v4012 = vpack.c.bf16 %v3982, %v3981
      %v4013 = vpack.c.bf16 %v3984, %v3983
      %v4014 = vpack.c.bf16 %v3986, %v3985
      %v4015 = vpack.c.bf16 %v3988, %v3987
      %v4016 = vpack.c.bf16 %v3990, %v3989
      %v4017 = vpack.c.bf16 %v3992, %v3991
      %v4018 = vpack.c.bf16 %v3994, %v3993
      %v4019 = vpack.c.bf16 %v3996, %v3995
      %v4020 = vpack.c.bf16 %v3998, %v3997
      %v4021 = vpack.c.bf16 %v4000, %v3999
      %v4022 = vpack.c.bf16 %v4002, %v4001
      %v4023 = vpack.c.bf16 %v4004, %v4003
      %v4024 = vpack.c.bf16 %v4006, %v4005
      %v4025 = vpack.c.bf16 %v4008, %v4007
      %v4026 = vpack.c.bf16 %v4010, %v4009
      %v4027 = vld [vmem:[%s19] sm:$0xf]
      %v4028 = vld [vmem:[%s19 + $0x4] sm:$0xf]
      %v4029 = vld [vmem:[%s19 + $0x8] sm:$0xf]
      %v4030 = vld [vmem:[%s19 + $0xc] sm:$0xf]
      %v4031 = vld [vmem:[%s19 + $0x10] sm:$0xf]
      %v4032 = vld [vmem:[%s19 + $0x14] sm:$0xf]
      %v4033 = vld [vmem:[%s19 + $0x18] sm:$0xf]
      %v4034 = vld [vmem:[%s19 + $0x1c] sm:$0xf]
      %v4035 = vld [vmem:[%s19 + $0x20] sm:$0xf]
      %v4036 = vld [vmem:[%s19 + $0x24] sm:$0xf]
      %v4037 = vld [vmem:[%s19 + $0x28] sm:$0xf]
      %v4038 = vld [vmem:[%s19 + $0x2c] sm:$0xf]
      %v4039 = vld [vmem:[%s19 + $0x30] sm:$0xf]
      %v4040 = vld [vmem:[%s19 + $0x34] sm:$0xf]
      %v4041 = vld [vmem:[%s19 + $0x38] sm:$0xf]
      %v4042 = vld [vmem:[%s19 + $0x3c] sm:$0xf]
      %v4043 = vpack.c.bf16 %v2970, %v2969
      %v4044 = vpack.c.bf16 %v2972, %v2971
      %v4045 = vpack.c.bf16 %v2974, %v2973
      %v4046 = vpack.c.bf16 %v2976, %v2975
      %v4047 = vpack.c.bf16 %v2978, %v2977
      %v4048 = vpack.c.bf16 %v2980, %v2979
      %v4049 = vpack.c.bf16 %v2982, %v2981
      %v4050 = vpack.c.bf16 %v2984, %v2983
      %v4051 = vpack.c.bf16 %v2986, %v2985
      %v4052 = vpack.c.bf16 %v2988, %v2987
      %v4053 = vpack.c.bf16 %v2990, %v2989
      %v4054 = vpack.c.bf16 %v2992, %v2991
      %v4055 = vpack.c.bf16 %v2994, %v2993
      %v4056 = vpack.c.bf16 %v2996, %v2995
      %v4057 = vpack.c.bf16 %v2998, %v2997
      %v4058 = vpack.c.bf16 %v3000, %v2999
      %v4059 = vld [vmem:[%s20] sm:$0xf]
      %v4060 = vld [vmem:[%s20 + $0x4] sm:$0xf]
      %v4061 = vld [vmem:[%s20 + $0x8] sm:$0xf]
      %v4062 = vld [vmem:[%s20 + $0xc] sm:$0xf]
      %v4063 = vld [vmem:[%s20 + $0x10] sm:$0xf]
      %v4064 = vld [vmem:[%s20 + $0x14] sm:$0xf]
      %v4065 = vld [vmem:[%s20 + $0x18] sm:$0xf]
      %v4066 = vld [vmem:[%s20 + $0x1c] sm:$0xf]
      %v4067 = vld [vmem:[%s20 + $0x20] sm:$0xf]
      %v4068 = vld [vmem:[%s20 + $0x24] sm:$0xf]
      %v4069 = vld [vmem:[%s20 + $0x28] sm:$0xf]
      %v4070 = vld [vmem:[%s20 + $0x2c] sm:$0xf]
      %v4071 = vld [vmem:[%s20 + $0x30] sm:$0xf]
      %v4072 = vld [vmem:[%s20 + $0x34] sm:$0xf]
      %v4073 = vld [vmem:[%s20 + $0x38] sm:$0xf]
      %v4074 = vld [vmem:[%s20 + $0x3c] sm:$0xf]
      %v4091 = vunpack.c.l.b16 %v4059
      %v4092 = vunpack.c.l.b16 %v4060
      %v4093 = vunpack.c.l.b16 %v4061
      %v4094 = vunpack.c.l.b16 %v4062
      %v4095 = vunpack.c.l.b16 %v4063
      %v4096 = vunpack.c.l.b16 %v4064
      %v4097 = vunpack.c.l.b16 %v4065
      %v4098 = vunpack.c.l.b16 %v4066
      %v4099 = vunpack.c.l.b16 %v4067
      %v4100 = vunpack.c.l.b16 %v4068
      %v4101 = vunpack.c.l.b16 %v4069
      %v4102 = vunpack.c.l.b16 %v4070
      %v4103 = vunpack.c.l.b16 %v4071
      %v4104 = vunpack.c.l.b16 %v4072
      %v4105 = vunpack.c.l.b16 %v4073
      %v4106 = vunpack.c.l.b16 %v4074
      %v4107 = vpack.c.b16 %v4092, %v4091
      %v4108 = vpack.c.b16 %v4094, %v4093
      %v4109 = vpack.c.b16 %v4096, %v4095
      %v4110 = vpack.c.b16 %v4098, %v4097
      %v4111 = vpack.c.b16 %v4100, %v4099
      %v4112 = vpack.c.b16 %v4102, %v4101
      %v4113 = vpack.c.b16 %v4104, %v4103
      %v4114 = vpack.c.b16 %v4106, %v4105
      %4123 = vmatpush.bf16.msra.mxu0 %v4114
      %4124 = vmatpush.bf16.msra.mxu0 %v4113
      %4125 = vmatpush.bf16.msra.mxu0 %v4112
      %4126 = vmatpush.bf16.msra.mxu0 %v4111
      %4127 = vmatpush.bf16.msra.mxu0 %v4110
      %4128 = vmatpush.bf16.msra.mxu0 %v4109
      %4129 = vmatpush.bf16.msra.mxu0 %v4108
      %4130 = vmatpush.bf16.msra.mxu0 %v4107
      %4131 = vmatmul.bf16.gmra.mxu0 %v4043
      %v4132 = vpop.f32.mrf.mxu0
      %v4133 = vadd.f32 0.0, %v4132
      %v4134 = vpop.f32.mrf.mxu0
      %v4135 = vadd.f32 0.0, %v4134
      %4136 = vmatmul.bf16.gmra.mxu0 %v4044
      %v4137 = vpop.f32.mrf.mxu0
      %v4138 = vadd.f32 0.0, %v4137
      %v4139 = vpop.f32.mrf.mxu0
      %v4140 = vadd.f32 0.0, %v4139
      %4141 = vmatmul.bf16.gmra.mxu0 %v4045
      %v4142 = vpop.f32.mrf.mxu0
      %v4143 = vadd.f32 0.0, %v4142
      %v4144 = vpop.f32.mrf.mxu0
      %v4145 = vadd.f32 0.0, %v4144
      %4146 = vmatmul.bf16.gmra.mxu0 %v4046
      %v4147 = vpop.f32.mrf.mxu0
      %v4148 = vadd.f32 0.0, %v4147
      %v4149 = vpop.f32.mrf.mxu0
      %v4150 = vadd.f32 0.0, %v4149
      %4151 = vmatmul.bf16.gmra.mxu0 %v4047
      %v4152 = vpop.f32.mrf.mxu0
      %v4153 = vadd.f32 0.0, %v4152
      %v4154 = vpop.f32.mrf.mxu0
      %v4155 = vadd.f32 0.0, %v4154
      %4156 = vmatmul.bf16.gmra.mxu0 %v4048
      %v4157 = vpop.f32.mrf.mxu0
      %v4158 = vadd.f32 0.0, %v4157
      %v4159 = vpop.f32.mrf.mxu0
      %v4160 = vadd.f32 0.0, %v4159
      %4161 = vmatmul.bf16.gmra.mxu0 %v4049
      %v4162 = vpop.f32.mrf.mxu0
      %v4163 = vadd.f32 0.0, %v4162
      %v4164 = vpop.f32.mrf.mxu0
      %v4165 = vadd.f32 0.0, %v4164
      %4166 = vmatmul.bf16.gmra.mxu0 %v4050
      %v4167 = vpop.f32.mrf.mxu0
      %v4168 = vadd.f32 0.0, %v4167
      %v4169 = vpop.f32.mrf.mxu0
      %v4170 = vadd.f32 0.0, %v4169
      %4171 = vmatmul.bf16.gmra.mxu0 %v4051
      %v4172 = vpop.f32.mrf.mxu0
      %v4173 = vadd.f32 0.0, %v4172
      %v4174 = vpop.f32.mrf.mxu0
      %v4175 = vadd.f32 0.0, %v4174
      %4176 = vmatmul.bf16.gmra.mxu0 %v4052
      %v4177 = vpop.f32.mrf.mxu0
      %v4178 = vadd.f32 0.0, %v4177
      %v4179 = vpop.f32.mrf.mxu0
      %v4180 = vadd.f32 0.0, %v4179
      %4181 = vmatmul.bf16.gmra.mxu0 %v4053
      %v4182 = vpop.f32.mrf.mxu0
      %v4183 = vadd.f32 0.0, %v4182
      %v4184 = vpop.f32.mrf.mxu0
      %v4185 = vadd.f32 0.0, %v4184
      %4186 = vmatmul.bf16.gmra.mxu0 %v4054
      %v4187 = vpop.f32.mrf.mxu0
      %v4188 = vadd.f32 0.0, %v4187
      %v4189 = vpop.f32.mrf.mxu0
      %v4190 = vadd.f32 0.0, %v4189
      %4191 = vmatmul.bf16.gmra.mxu0 %v4055
      %v4192 = vpop.f32.mrf.mxu0
      %v4193 = vadd.f32 0.0, %v4192
      %v4194 = vpop.f32.mrf.mxu0
      %v4195 = vadd.f32 0.0, %v4194
      %4196 = vmatmul.bf16.gmra.mxu0 %v4056
      %v4197 = vpop.f32.mrf.mxu0
      %v4198 = vadd.f32 0.0, %v4197
      %v4199 = vpop.f32.mrf.mxu0
      %v4200 = vadd.f32 0.0, %v4199
      %4201 = vmatmul.bf16.gmra.mxu0 %v4057
      %v4202 = vpop.f32.mrf.mxu0
      %v4203 = vadd.f32 0.0, %v4202
      %v4204 = vpop.f32.mrf.mxu0
      %v4205 = vadd.f32 0.0, %v4204
      %4206 = vmatmul.bf16.gmra.mxu0 %v4058
      %v4207 = vpop.f32.mrf.mxu0
      %v4208 = vadd.f32 0.0, %v4207
      %v4209 = vpop.f32.mrf.mxu0
      %v4210 = vadd.f32 0.0, %v4209
      %4211 = vdwg.mxu0
      %v4228 = vunpack.c.l.b16 %v4027
      %v4229 = vunpack.c.l.b16 %v4028
      %v4230 = vunpack.c.l.b16 %v4029
      %v4231 = vunpack.c.l.b16 %v4030
      %v4232 = vunpack.c.l.b16 %v4031
      %v4233 = vunpack.c.l.b16 %v4032
      %v4234 = vunpack.c.l.b16 %v4033
      %v4235 = vunpack.c.l.b16 %v4034
      %v4236 = vunpack.c.l.b16 %v4035
      %v4237 = vunpack.c.l.b16 %v4036
      %v4238 = vunpack.c.l.b16 %v4037
      %v4239 = vunpack.c.l.b16 %v4038
      %v4240 = vunpack.c.l.b16 %v4039
      %v4241 = vunpack.c.l.b16 %v4040
      %v4242 = vunpack.c.l.b16 %v4041
      %v4243 = vunpack.c.l.b16 %v4042
      %v4244 = vpack.c.b16 %v4229, %v4228
      %v4245 = vpack.c.b16 %v4231, %v4230
      %v4246 = vpack.c.b16 %v4233, %v4232
      %v4247 = vpack.c.b16 %v4235, %v4234
      %v4248 = vpack.c.b16 %v4237, %v4236
      %v4249 = vpack.c.b16 %v4239, %v4238
      %v4250 = vpack.c.b16 %v4241, %v4240
      %v4251 = vpack.c.b16 %v4243, %v4242
      %4260 = vmatpush.bf16.msra.mxu0 %v4251
      %4261 = vmatpush.bf16.msra.mxu0 %v4250
      %4262 = vmatpush.bf16.msra.mxu0 %v4249
      %4263 = vmatpush.bf16.msra.mxu0 %v4248
      %4264 = vmatpush.bf16.msra.mxu0 %v4247
      %4265 = vmatpush.bf16.msra.mxu0 %v4246
      %4266 = vmatpush.bf16.msra.mxu0 %v4245
      %4267 = vmatpush.bf16.msra.mxu0 %v4244
      %4268 = vmatmul.bf16.gmra.mxu0 %v4011
      %v4269 = vpop.f32.mrf.mxu0
      %v4270 = vadd.f32 %v4133, %v4269
      %v4271 = vpop.f32.mrf.mxu0
      %v4272 = vadd.f32 %v4135, %v4271
      %4273 = vmatmul.bf16.gmra.mxu0 %v4012
      %v4274 = vpop.f32.mrf.mxu0
      %v4275 = vadd.f32 %v4138, %v4274
      %v4276 = vpop.f32.mrf.mxu0
      %v4277 = vadd.f32 %v4140, %v4276
      %4278 = vmatmul.bf16.gmra.mxu0 %v4013
      %v4279 = vpop.f32.mrf.mxu0
      %v4280 = vadd.f32 %v4143, %v4279
      %v4281 = vpop.f32.mrf.mxu0
      %v4282 = vadd.f32 %v4145, %v4281
      %4283 = vmatmul.bf16.gmra.mxu0 %v4014
      %v4284 = vpop.f32.mrf.mxu0
      %v4285 = vadd.f32 %v4148, %v4284
      %v4286 = vpop.f32.mrf.mxu0
      %v4287 = vadd.f32 %v4150, %v4286
      %4288 = vmatmul.bf16.gmra.mxu0 %v4015
      %v4289 = vpop.f32.mrf.mxu0
      %v4290 = vadd.f32 %v4153, %v4289
      %v4291 = vpop.f32.mrf.mxu0
      %v4292 = vadd.f32 %v4155, %v4291
      %4293 = vmatmul.bf16.gmra.mxu0 %v4016
      %v4294 = vpop.f32.mrf.mxu0
      %v4295 = vadd.f32 %v4158, %v4294
      %v4296 = vpop.f32.mrf.mxu0
      %v4297 = vadd.f32 %v4160, %v4296
      %4298 = vmatmul.bf16.gmra.mxu0 %v4017
      %v4299 = vpop.f32.mrf.mxu0
      %v4300 = vadd.f32 %v4163, %v4299
      %v4301 = vpop.f32.mrf.mxu0
      %v4302 = vadd.f32 %v4165, %v4301
      %4303 = vmatmul.bf16.gmra.mxu0 %v4018
      %v4304 = vpop.f32.mrf.mxu0
      %v4305 = vadd.f32 %v4168, %v4304
      %v4306 = vpop.f32.mrf.mxu0
      %v4307 = vadd.f32 %v4170, %v4306
      %4308 = vmatmul.bf16.gmra.mxu0 %v4019
      %v4309 = vpop.f32.mrf.mxu0
      %v4310 = vadd.f32 %v4173, %v4309
      %v4311 = vpop.f32.mrf.mxu0
      %v4312 = vadd.f32 %v4175, %v4311
      %4313 = vmatmul.bf16.gmra.mxu0 %v4020
      %v4314 = vpop.f32.mrf.mxu0
      %v4315 = vadd.f32 %v4178, %v4314
      %v4316 = vpop.f32.mrf.mxu0
      %v4317 = vadd.f32 %v4180, %v4316
      %4318 = vmatmul.bf16.gmra.mxu0 %v4021
      %v4319 = vpop.f32.mrf.mxu0
      %v4320 = vadd.f32 %v4183, %v4319
      %v4321 = vpop.f32.mrf.mxu0
      %v4322 = vadd.f32 %v4185, %v4321
      %4323 = vmatmul.bf16.gmra.mxu0 %v4022
      %v4324 = vpop.f32.mrf.mxu0
      %v4325 = vadd.f32 %v4188, %v4324
      %v4326 = vpop.f32.mrf.mxu0
      %v4327 = vadd.f32 %v4190, %v4326
      %4328 = vmatmul.bf16.gmra.mxu0 %v4023
      %v4329 = vpop.f32.mrf.mxu0
      %v4330 = vadd.f32 %v4193, %v4329
      %v4331 = vpop.f32.mrf.mxu0
      %v4332 = vadd.f32 %v4195, %v4331
      %4333 = vmatmul.bf16.gmra.mxu0 %v4024
      %v4334 = vpop.f32.mrf.mxu0
      %v4335 = vadd.f32 %v4198, %v4334
      %v4336 = vpop.f32.mrf.mxu0
      %v4337 = vadd.f32 %v4200, %v4336
      %4338 = vmatmul.bf16.gmra.mxu0 %v4025
      %v4339 = vpop.f32.mrf.mxu0
      %v4340 = vadd.f32 %v4203, %v4339
      %v4341 = vpop.f32.mrf.mxu0
      %v4342 = vadd.f32 %v4205, %v4341
      %4343 = vmatmul.bf16.gmra.mxu0 %v4026
      %v4344 = vpop.f32.mrf.mxu0
      %v4345 = vadd.f32 %v4208, %v4344
      %v4346 = vpop.f32.mrf.mxu0
      %v4347 = vadd.f32 %v4210, %v4346
      %4348 = vdwg.mxu0
      %v4349 = vld [vmem:[%s21] sm:$0x1]
      %v4351 = vperm.slane %v4349, 0
      %v4353 = vadd.f32 %v4270, %v4351
      %v4354 = vadd.f32 %v4272, %v4351
      %v4355 = vadd.f32 %v4275, %v4351
      %v4356 = vadd.f32 %v4277, %v4351
      %v4357 = vadd.f32 %v4280, %v4351
      %v4358 = vadd.f32 %v4282, %v4351
      %v4359 = vadd.f32 %v4285, %v4351
      %v4360 = vadd.f32 %v4287, %v4351
      %v4361 = vadd.f32 %v4290, %v4351
      %v4362 = vadd.f32 %v4292, %v4351
      %v4363 = vadd.f32 %v4295, %v4351
      %v4364 = vadd.f32 %v4297, %v4351
      %v4365 = vadd.f32 %v4300, %v4351
      %v4366 = vadd.f32 %v4302, %v4351
      %v4367 = vadd.f32 %v4305, %v4351
      %v4368 = vadd.f32 %v4307, %v4351
      %v4369 = vadd.f32 %v4310, %v4351
      %v4370 = vadd.f32 %v4312, %v4351
      %v4371 = vadd.f32 %v4315, %v4351
      %v4372 = vadd.f32 %v4317, %v4351
      %v4373 = vadd.f32 %v4320, %v4351
      %v4374 = vadd.f32 %v4322, %v4351
      %v4375 = vadd.f32 %v4325, %v4351
      %v4376 = vadd.f32 %v4327, %v4351
      %v4377 = vadd.f32 %v4330, %v4351
      %v4378 = vadd.f32 %v4332, %v4351
      %v4379 = vadd.f32 %v4335, %v4351
      %v4380 = vadd.f32 %v4337, %v4351
      %v4381 = vadd.f32 %v4340, %v4351
      %v4382 = vadd.f32 %v4342, %v4351
      %v4383 = vadd.f32 %v4345, %v4351
      %v4384 = vadd.f32 %v4347, %v4351
      %4385 = vst [vmem:[%s729] sm:$0xff] %v4353
      %4386 = vst [vmem:[%s729 + $0x8] sm:$0xff] %v4354
      %4387 = vst [vmem:[%s729 + $0x10] sm:$0xff] %v4355
      %4388 = vst [vmem:[%s729 + $0x18] sm:$0xff] %v4356
      %4389 = vst [vmem:[%s729 + $0x20] sm:$0xff] %v4357
      %4390 = vst [vmem:[%s729 + $0x28] sm:$0xff] %v4358
      %4391 = vst [vmem:[%s729 + $0x30] sm:$0xff] %v4359
      %4392 = vst [vmem:[%s729 + $0x38] sm:$0xff] %v4360
      %4393 = vst [vmem:[%s729 + $0x40] sm:$0xff] %v4361
      %4394 = vst [vmem:[%s729 + $0x48] sm:$0xff] %v4362
      %4395 = vst [vmem:[%s729 + $0x50] sm:$0xff] %v4363
      %4396 = vst [vmem:[%s729 + $0x58] sm:$0xff] %v4364
      %4397 = vst [vmem:[%s729 + $0x60] sm:$0xff] %v4365
      %4398 = vst [vmem:[%s729 + $0x68] sm:$0xff] %v4366
      %4399 = vst [vmem:[%s729 + $0x70] sm:$0xff] %v4367
      %4400 = vst [vmem:[%s729 + $0x78] sm:$0xff] %v4368
      %4401 = vst [vmem:[%s729 + $0x80] sm:$0xff] %v4369
      %4402 = vst [vmem:[%s729 + $0x88] sm:$0xff] %v4370
      %4403 = vst [vmem:[%s729 + $0x90] sm:$0xff] %v4371
      %4404 = vst [vmem:[%s729 + $0x98] sm:$0xff] %v4372
      %4405 = vst [vmem:[%s729 + $0xa0] sm:$0xff] %v4373
      %4406 = vst [vmem:[%s729 + $0xa8] sm:$0xff] %v4374
      %4407 = vst [vmem:[%s729 + $0xb0] sm:$0xff] %v4375
      %4408 = vst [vmem:[%s729 + $0xb8] sm:$0xff] %v4376
      %4409 = vst [vmem:[%s729 + $0xc0] sm:$0xff] %v4377
      %4410 = vst [vmem:[%s729 + $0xc8] sm:$0xff] %v4378
      %4411 = vst [vmem:[%s729 + $0xd0] sm:$0xff] %v4379
      %4412 = vst [vmem:[%s729 + $0xd8] sm:$0xff] %v4380
      %4413 = vst [vmem:[%s729 + $0xe0] sm:$0xff] %v4381
      %4414 = vst [vmem:[%s729 + $0xe8] sm:$0xff] %v4382
      %4415 = vst [vmem:[%s729 + $0xf0] sm:$0xff] %v4383
      %4416 = vst [vmem:[%s729 + $0xf8] sm:$0xff] %v4384
      %s4417 = smul.u32 32, %s33
      %p4418 = scmp.lt.s32.totalorder %s4417, 63
      %s4419 = scalar_select %p4418, %s4417, 63
      %s4420 = smul.addr %s4419, 8
      %s4421 = scalar_lea.vmem %s22, %s4420
      // Predicated region
      $region109: #{nerf_mlp_forward.1} parent=107 // pred_check
        %p4422 = pneg %p528
      $region110: #{nerf_mlp_forward.1} parent=107 // pred_check_branch
        %4424 = sbr.rel (%p4422) target = $region112
      $region111: #{nerf_mlp_forward.1} parent=107 // pred_region
        %s4425 = smul.u32 32, %s33
      $region112: #{nerf_mlp_forward.1} parent=107 // pred_fallthru
        _
    $region108: #{nerf_mlp_forward.1} parent=5 // pred_fallthru
      _
    %p4426 = scmp.le.s32.totalorder 2, %s28
    // Predicated region
    $region113: #{nerf_mlp_forward.1} parent=5 // pred_check
      %p4427 = pneg %p4426
    $region114: #{nerf_mlp_forward.1} parent=5 // pred_check_branch
      %4429 = sbr.rel (%p4427) target = $region116
    $region115: #{nerf_mlp_forward.1} parent=5 // pred_region
      %s4430 = ssub.s32 %s28, 2
      // Predicated region
      $region117: #{nerf_mlp_forward.1} parent=115 // pred_check
        %p4431 = pneg %p534
      $region118: #{nerf_mlp_forward.1} parent=115 // pred_check_branch
        %4433 = sbr.rel (%p4431) target = $region120
      $region119: #{nerf_mlp_forward.1} parent=115 // pred_region
        %s4434 = smul.u32 32, %s34
        %p4435 = scmp.lt.s32.totalorder %s4434, 63
        %s4436 = scalar_select %p4435, %s4434, 63
        %s4437 = smul.addr %s4436, 8
        %s4438 = scalar_lea.vmem %s22, %s4437
      $region120: #{nerf_mlp_forward.1} parent=115 // pred_fallthru
        _
    $region116: #{nerf_mlp_forward.1} parent=5 // pred_fallthru
      _
  $region6: #{nerf_mlp_forward.1} parent=0 // loop_footer
    %s32 = sadd.s32 1, %s28
  $region7: #{nerf_mlp_forward.1} parent=0 // loop_footer_branch
    %27 = sbr.rel target = $region3
  $region8: #{nerf_mlp_forward.1} parent=0 // loop_exit
    _

</llo_original>
